<compile_context>
chip_gen: v5e
topology: v5e:2x2
jax: 0.10.0
libtpu: 0.0.40
codegen_flags: <defaults>
</compile_context>

<pallas_src>
import math
import jax
import jax.numpy as jnp
from jax.experimental import pallas as pl
from jax.experimental.pallas import tpu as pltpu

# ----------------------------- model config (small, synthetic) -----------------------------
D_MODEL = 32
N_LAYER = 2
VOCAB_SIZE = 100
PAD_VOCAB_MULTIPLE = 8
VOCAB_PADDED = VOCAB_SIZE + (PAD_VOCAB_MULTIPLE - VOCAB_SIZE % PAD_VOCAB_MULTIPLE) % PAD_VOCAB_MULTIPLE
LM_HEAD_PAD = ((VOCAB_PADDED + 127) // 128) * 128   # lane-dense lm_head width (128)
EXPAND = 2
D_INNER = EXPAND * D_MODEL            # 64
D_STATE = 16
D_CONV = 4
DT_RANK = math.ceil(D_MODEL / 16)     # 2
RMS_EPS = 1e-5

BATCH = 2
SEQLEN = 8
BL = BATCH * SEQLEN
DP = BATCH * D_INNER                  # 128 — lane-packed scan width (lanes 0:64 = batch 0)
assert DP == 128, "lane-packed scan assumes BATCH * d_inner == 128"

NORM_F_LANE = 64                      # lane offset of norm_f weight inside layer-0 vec slab

# MXU operand dtype. fp32 for strict parity with the fp32 PyTorch module. bf16 (with fp32
# accumulation) gives higher MXU throughput on ALL generations (v5e/v6e/v7x are bf16-native;
# fp32 matmul is multi-pass) and halves weight DMA bytes, at the cost of bit-exact parity.
MXU_DTYPE = jnp.float32


# ----------------------------------- fused Pallas kernel ----------------------------------
def _fused_forward_kernel(ids_ref, emb_ref, vec_ref, in_proj_ref, wmix_ref, ssm_ref,
                          logits_ref,
                          dA_scr, dBu_scr, cpk_scr, y_scr):
    def rmsnorm(x, w):
        var = jnp.mean(x * x, axis=-1, keepdims=True)
        return x * jax.lax.rsqrt(var + RMS_EPS) * w

    def sigmoid(x):
        # exact sigmoid (fp32 parity with torch) — exp on EUP, plain divide.
        return 1.0 / (1.0 + jnp.exp(-x))

    def silu(x):
        return x * sigmoid(x)

    def softplus(x):
        # matches F.softplus(threshold=20); exp(x) branch keeps accuracy for very negative x.
        mid = jnp.log(1.0 + jnp.exp(jnp.clip(x, -20.0, 20.0)))
        return jnp.where(x > 20.0, x, jnp.where(x < -20.0, jnp.exp(x), mid))

    def mm(a, b):
        return jnp.dot(a.astype(MXU_DTYPE), b.astype(MXU_DTYPE),
                       preferred_element_type=jnp.float32)

    def mm_nt(a, b):  # a @ b.T without materializing a transpose
        return jax.lax.dot_general(a.astype(MXU_DTYPE), b.astype(MXU_DTYPE),
                                   (((1,), (1,)), ((), ())),
                                   preferred_element_type=jnp.float32)

    # ---- in-kernel embedding gather: one-hot @ emb on the (otherwise idle) MXU ----
    emb = emb_ref[...]                                            # (128, d_model), rows>=104 zero
    lane = jax.lax.broadcasted_iota(jnp.int32, (BL, LM_HEAD_PAD), 1)
    onehot = (lane == ids_ref[...]).astype(jnp.float32)           # (B*L, 128)
    hidden = mm(onehot, emb)                                      # (B*L, d_model)
    residual = jnp.zeros_like(hidden)

    # ---- conv position masks: layer-invariant, hoisted out of the layer loop ----
    pos = jax.lax.broadcasted_iota(jnp.int32, (BL, D_INNER), 0) % SEQLEN
    conv_masks = [pos >= j for j in range(1, D_CONV)]

    for layer in range(N_LAYER):
        # per-layer small vectors, all packed in one (8,128) slab
        norm_w = vec_ref[layer, 0:1, 0:D_MODEL]                   # (1, d_model)
        conv_b = vec_ref[layer, 1:2, 0:D_INNER]                   # (1, d_inner)
        dt_bias = vec_ref[layer, 2:3, 0:D_INNER]                  # (1, d_inner)
        D_skip = vec_ref[layer, 3:4, 0:D_INNER]                   # (1, d_inner)
        w_conv = vec_ref[layer, 4:4 + D_CONV, 0:D_INNER]          # (K, d_inner)

        residual = hidden + residual
        normed = rmsnorm(residual, norm_w)

        # ---- in_proj: one lane-dense (B*L, 2*d_inner)=(16,128) matmul, split into x / z ----
        xz = mm(normed, in_proj_ref[layer])
        x = xz[:, :D_INNER]
        z = xz[:, D_INNER:]

        # ---- causal depthwise conv1d + SiLU (XLU rolls + hoisted position masks) ----
        acc = conv_b + x * w_conv[D_CONV - 1:D_CONV, :]
        for j in range(1, D_CONV):
            shifted = pltpu.roll(x, shift=j, axis=0)              # row r <- row r-j (wraps)
            shifted = jnp.where(conv_masks[j - 1], shifted, 0.0)  # kill wrap / cross-batch rows
            acc = acc + shifted * w_conv[D_CONV - 1 - j:D_CONV - j, :]
        xc = silu(acc)                                            # (B*L, d_inner)

        # ---- projections: dt_proj folded into x_proj; B/C fused in one NT matmul ----
        w_delta_T = wmix_ref[layer, :, 0:D_INNER]                 # (d_inner, d_inner)
        out_proj_T = wmix_ref[layer, :, D_INNER:D_INNER + D_MODEL]  # (d_inner, d_model)
        w_BC = ssm_ref[layer, 0:2 * D_STATE, 0:D_INNER]           # (2*d_state, d_inner)
        A_pack = ssm_ref[layer, 2 * D_STATE:2 * D_STATE + D_STATE, :]  # (d_state, 128), batch-tiled A.T

        delta = softplus(mm(xc, w_delta_T) + dt_bias)             # (B*L, d_inner)
        du = delta * xc                                           # delta * u
        BC_T = mm_nt(w_BC, xc)                                    # (2*d_state, B*L)
        B_T = BC_T[:D_STATE, :]                                   # (d_state, B*L)  (aligned split)
        C_T = BC_T[D_STATE:, :]                                   # (d_state, B*L)

        # lane-pack the batch: lanes 0..63 = batch 0, lanes 64..127 = batch 1
        delta_pack = jnp.concatenate([delta[:SEQLEN], delta[SEQLEN:]], axis=1)  # (L, 128)
        du_pack = jnp.concatenate([du[:SEQLEN], du[SEQLEN:]], axis=1)           # (L, 128)

        # ---- precompute dA / dBu / packed-C into VMEM scratch (off the scan critical path) ----
        for l in range(SEQLEN):
            dA_scr[l] = jnp.exp(delta_pack[l:l + 1, :] * A_pack)                 # (d_state, 128)
            b_col = jnp.concatenate(
                [jnp.broadcast_to(B_T[:, l:l + 1], (D_STATE, D_INNER)),
                 jnp.broadcast_to(B_T[:, SEQLEN + l:SEQLEN + l + 1], (D_STATE, D_INNER))],
                axis=1)                                                          # (d_state, 128)
            dBu_scr[l] = du_pack[l:l + 1, :] * b_col
            cpk_scr[l] = jnp.concatenate(
                [jnp.broadcast_to(C_T[:, l:l + 1], (D_STATE, D_INNER)),
                 jnp.broadcast_to(C_T[:, SEQLEN + l:SEQLEN + l + 1], (D_STATE, D_INNER))],
                axis=1)

        # ---- selective scan: 8 dependent fma steps on a (d_state, 128) state ----
        state = jnp.zeros((D_STATE, DP), jnp.float32)
        for l in range(SEQLEN):
            state = dA_scr[l] * state + dBu_scr[l]
            y_scr[l:l + 1, :] = jnp.sum(state * cpk_scr[l], axis=0, keepdims=True)

        y_pack = y_scr[...]                                                      # (L, 128)
        y = jnp.concatenate([y_pack[:, :D_INNER], y_pack[:, D_INNER:]], axis=0)  # (B*L, d_inner)

        y = (y + xc * D_skip) * silu(z)
        hidden = mm(y, out_proj_T)                                               # (B*L, d_model)

    residual = hidden + residual
    norm_f = vec_ref[0, 0:1, NORM_F_LANE:NORM_F_LANE + D_MODEL]
    hf = rmsnorm(residual, norm_f)
    # tied lm_head (= zero-padded embedding), NT matmul -> full-lane (unmasked) (B*L, 128) store
    logits_ref[...] = mm_nt(hf, emb)


# ----------------------------------- model forward ----------------------------------------
def forward(input_ids, kp):
    Bt, L = input_ids.shape
    assert (Bt, L) == (BATCH, SEQLEN)
    ids = input_ids.reshape(Bt * L, 1).astype(jnp.int32)
    logits = pl.pallas_call(
        _fused_forward_kernel,
        out_shape=jax.ShapeDtypeStruct((Bt * L, LM_HEAD_PAD), jnp.float32),
        scratch_shapes=[
            pltpu.VMEM((SEQLEN, D_STATE, DP), jnp.float32),   # dA  = exp(delta*A), all steps
            pltpu.VMEM((SEQLEN, D_STATE, DP), jnp.float32),   # dBu = delta*u*B,    all steps
            pltpu.VMEM((SEQLEN, D_STATE, DP), jnp.float32),   # packed C,           all steps
            pltpu.VMEM((SEQLEN, DP), jnp.float32),            # y rows (lane-packed)
        ],
        # no grid / no BlockSpecs: single invocation, every operand fully resident in VMEM
    )(ids, kp["emb_pad"], kp["vec_slab"], kp["in_proj_wT"], kp["wmix"], kp["ssm_slab"])
    # NOTE: returned logits are lane-padded to 128 columns. Columns >= VOCAB_PADDED are exact
    # zeros; columns VOCAB_SIZE..VOCAB_PADDED-1 carry values from randomly-initialized padded
    # embedding rows (exactly as in the PyTorch module) — mask both before any softmax/argmax.
    return logits.reshape(Bt, L, LM_HEAD_PAD)


# ------------------------------------ param init ------------------------------------------
def init_params(key):
    keys = list(jax.random.split(key, 8 * N_LAYER + 4))
    kit = iter(keys)

    def nrm(shape, scale):
        return scale * jax.random.normal(next(kit), shape, dtype=jnp.float32)

    emb = nrm((VOCAB_PADDED, D_MODEL), 0.02)
    layers = []
    for _ in range(N_LAYER):
        layers.append(dict(
            norm_w=jnp.ones((1, D_MODEL), jnp.float32),
            in_proj_w=nrm((2 * D_INNER, D_MODEL), 0.05),
            conv_w=nrm((D_CONV, D_INNER), 0.2),                    # = torch (d_inner,1,K) transposed
            conv_b=jnp.zeros((1, D_INNER), jnp.float32),
            x_proj_w=nrm((DT_RANK + 2 * D_STATE, D_INNER), 0.05),
            dt_proj_w=nrm((D_INNER, DT_RANK), DT_RANK ** -0.5),
            dt_proj_b=jnp.log(jnp.expm1(jnp.linspace(1e-3, 0.1, D_INNER)))
                         .reshape(1, D_INNER).astype(jnp.float32),  # inv-softplus of dt init
            A_log=jnp.log(jnp.tile(jnp.arange(1, D_STATE + 1, dtype=jnp.float32)[None, :],
                                   (D_INNER, 1))),
            D=jnp.ones((1, D_INNER), jnp.float32),
            out_proj_w=nrm((D_MODEL, D_INNER), 0.05),
        ))
    return dict(emb=emb, layers=layers, norm_f_w=jnp.ones((1, D_MODEL), jnp.float32))


def build_kernel_params(params):
    """One-time weight prep: fold dt_proj into x_proj, fuse B/C weights, precompute the
    batch-tiled A = -exp(A_log), pack small per-layer vectors into one (8,128) slab per layer,
    and zero-pad the tied embedding/lm_head table to a 128-row slab."""
    emb_pad = jnp.pad(params["emb"], ((0, LM_HEAD_PAD - VOCAB_PADDED), (0, 0)))   # (128, d_model)

    vec_slabs, in_proj_T, wmix, ssm = [], [], [], []
    for li, lp in enumerate(params["layers"]):
        vec = jnp.zeros((8, 128), jnp.float32)
        vec = vec.at[0, :D_MODEL].set(lp["norm_w"].reshape(-1))
        if li == 0:
            vec = vec.at[0, NORM_F_LANE:NORM_F_LANE + D_MODEL].set(params["norm_f_w"].reshape(-1))
        vec = vec.at[1, :D_INNER].set(lp["conv_b"].reshape(-1))
        vec = vec.at[2, :D_INNER].set(lp["dt_proj_b"].reshape(-1))
        vec = vec.at[3, :D_INNER].set(lp["D"].reshape(-1))
        vec = vec.at[4:4 + D_CONV, :D_INNER].set(lp["conv_w"])
        vec_slabs.append(vec)

        in_proj_T.append(lp["in_proj_w"].T)                                       # (d_model, 2*d_inner)

        w_delta_T = lp["x_proj_w"][:DT_RANK].T @ lp["dt_proj_w"].T                # (d_inner, d_inner)
        wm = jnp.zeros((D_INNER, 128), jnp.float32)
        wm = wm.at[:, :D_INNER].set(w_delta_T)
        wm = wm.at[:, D_INNER:D_INNER + D_MODEL].set(lp["out_proj_w"].T)          # (d_inner, d_model)
        wmix.append(wm)

        w_BC = lp["x_proj_w"][DT_RANK:]                                           # (2*d_state, d_inner)
        A_T = (-jnp.exp(lp["A_log"])).T                                           # (d_state, d_inner)
        A_pack = jnp.concatenate([A_T, A_T], axis=1)                              # (d_state, 128)
        ss = jnp.zeros((2 * D_STATE + D_STATE, 128), jnp.float32)                 # (48, 128)
        ss = ss.at[:2 * D_STATE, :D_INNER].set(w_BC)
        ss = ss.at[2 * D_STATE:, :].set(A_pack)
        ssm.append(ss)

    return dict(
        emb_pad=emb_pad,                                    # (128, d_model): gather + tied lm_head
        vec_slab=jnp.stack(vec_slabs, axis=0),              # (NL, 8, 128)
        in_proj_wT=jnp.stack(in_proj_T, axis=0),            # (NL, d_model, 2*d_inner)
        wmix=jnp.stack(wmix, axis=0),                       # (NL, d_inner, 128)
        ssm_slab=jnp.stack(ssm, axis=0),                    # (NL, 48, 128)
    )


# ---------------------------------------- main ---------------------------------------------
if __name__ == "__main__":
    key = jax.random.PRNGKey(0)
    k_param, k_ids = jax.random.split(key)
    params = init_params(k_param)
    kparams = build_kernel_params(params)
    input_ids = jax.random.randint(k_ids, (BATCH, SEQLEN), 0, VOCAB_SIZE, dtype=jnp.int32)

    logits = jax.jit(forward)(input_ids, kparams)
    logits = jax.block_until_ready(logits)
    assert logits.shape == (BATCH, SEQLEN, LM_HEAD_PAD)
    assert bool(jnp.all(jnp.isfinite(logits)))
    # columns beyond the padded vocab are exact zeros (zero-padded tied weight rows)
    assert bool(jnp.all(logits[..., VOCAB_PADDED:] == 0.0))
    print("KERNEL_OK")
</pallas_src>

<mosaic_0001>
module attributes {stable_mosaic.version = 11 : i64} {
  func.func @_fused_forward_kernel(%arg0: memref<16x1xi32, #tpu.memory_space<vmem>>, %arg1: memref<128x32xf32, #tpu.memory_space<vmem>>, %arg2: memref<2x8x128xf32, #tpu.memory_space<vmem>>, %arg3: memref<2x32x128xf32, #tpu.memory_space<vmem>>, %arg4: memref<2x64x128xf32, #tpu.memory_space<vmem>>, %arg5: memref<2x48x128xf32, #tpu.memory_space<vmem>>, %arg6: memref<16x128xf32, #tpu.memory_space<vmem>>, %arg7: memref<8x16x128xf32, #tpu.memory_space<vmem>>, %arg8: memref<8x16x128xf32, #tpu.memory_space<vmem>>, %arg9: memref<8x16x128xf32, #tpu.memory_space<vmem>>, %arg10: memref<8x128xf32, #tpu.memory_space<vmem>>) attributes {dimension_semantics = [], scalar_prefetch = 0 : i64, scratch_operands = 4 : i64, tpu.core_type = #tpu.core_type<tc>} {
    %c0 = arith.constant 0 : index
    %c0_0 = arith.constant 0 : index
    %0 = vector.load %arg1[%c0, %c0_0] : memref<128x32xf32, #tpu.memory_space<vmem>>, vector<128x32xf32>
    %1 = tpu.iota {dimensions = array<i32: 1>} : vector<16x128xi32>
    %c0_1 = arith.constant 0 : index
    %c0_2 = arith.constant 0 : index
    %2 = vector.load %arg0[%c0_1, %c0_2] : memref<16x1xi32, #tpu.memory_space<vmem>>, vector<16x1xi32>
    %3 = vector.broadcast %2 : vector<16x1xi32> to vector<16x128xi32>
    %4 = arith.cmpi eq, %1, %3 : vector<16x128xi32>
    %5 = arith.extui %4 : vector<16x128xi1> to vector<16x128xi32>
    %6 = arith.sitofp %5 : vector<16x128xi32> to vector<16x128xf32>
    %cst = arith.constant dense<0.000000e+00> : vector<16x32xf32>
    %7 = tpu.matmul %6, %0, %cst {dimension_numbers = #tpu.dot_dimension_numbers<[1], [0], [0], [1], [0, 0, 1, 1], [], []>} : vector<16x128xf32>, vector<128x32xf32>, vector<16x32xf32> -> vector<16x32xf32>
    %cst_3 = arith.constant 0.000000e+00 : f32
    %8 = vector.broadcast %cst_3 : f32 to vector<16x32xf32>
    %9 = tpu.iota {dimensions = array<i32: 0>} : vector<16x64xi32>
    %c8_i32 = arith.constant 8 : i32
    %c0_i32 = arith.constant 0 : i32
    %10 = arith.cmpi eq, %c8_i32, %c0_i32 : i32
    %c1_i32 = arith.constant 1 : i32
    %11 = arith.select %10, %c1_i32, %c8_i32 : i32
    %12 = vector.broadcast %11 : i32 to vector<16x64xi32>
    %13 = arith.remsi %9, %12 : vector<16x64xi32>
    %c0_i32_4 = arith.constant 0 : i32
    %14 = vector.broadcast %c0_i32_4 : i32 to vector<16x64xi32>
    %15 = arith.cmpi ne, %13, %14 : vector<16x64xi32>
    %c0_i32_5 = arith.constant 0 : i32
    %16 = vector.broadcast %c0_i32_5 : i32 to vector<16x64xi32>
    %17 = arith.cmpi slt, %13, %16 : vector<16x64xi32>
    %c0_i32_6 = arith.constant 0 : i32
    %18 = arith.cmpi slt, %11, %c0_i32_6 : i32
    %19 = vector.broadcast %18 : i1 to vector<16x64xi1>
    %20 = vector.broadcast %19 : vector<16x64xi1> to vector<16x64xi1>
    %21 = arith.xori %17, %20 : vector<16x64xi1>
    %22 = arith.andi %21, %15 : vector<16x64xi1>
    %23 = vector.broadcast %11 : i32 to vector<16x64xi32>
    %24 = arith.addi %13, %23 : vector<16x64xi32>
    %25 = arith.select %22, %24, %13 : vector<16x64xi1>, vector<16x64xi32>
    %c1_i32_7 = arith.constant 1 : i32
    %26 = vector.broadcast %c1_i32_7 : i32 to vector<16x64xi32>
    %27 = arith.cmpi sge, %25, %26 : vector<16x64xi32>
    %c2_i32 = arith.constant 2 : i32
    %28 = vector.broadcast %c2_i32 : i32 to vector<16x64xi32>
    %29 = arith.cmpi sge, %25, %28 : vector<16x64xi32>
    %c3_i32 = arith.constant 3 : i32
    %30 = vector.broadcast %c3_i32 : i32 to vector<16x64xi32>
    %31 = arith.cmpi sge, %25, %30 : vector<16x64xi32>
    %c0_8 = arith.constant 0 : index
    %c0_9 = arith.constant 0 : index
    %c0_10 = arith.constant 0 : index
    %32 = vector.load %arg2[%c0_8, %c0_9, %c0_10] : memref<2x8x128xf32, #tpu.memory_space<vmem>>, vector<1x1x32xf32>
    %33 = vector.shape_cast %32 : vector<1x1x32xf32> to vector<1x32xf32>
    %c0_11 = arith.constant 0 : index
    %c1 = arith.constant 1 : index
    %c0_12 = arith.constant 0 : index
    %34 = vector.load %arg2[%c0_11, %c1, %c0_12] : memref<2x8x128xf32, #tpu.memory_space<vmem>>, vector<1x1x64xf32>
    %35 = vector.shape_cast %34 : vector<1x1x64xf32> to vector<1x64xf32>
    %c0_13 = arith.constant 0 : index
    %c2 = arith.constant 2 : index
    %c0_14 = arith.constant 0 : index
    %36 = vector.load %arg2[%c0_13, %c2, %c0_14] : memref<2x8x128xf32, #tpu.memory_space<vmem>>, vector<1x1x64xf32>
    %37 = vector.shape_cast %36 : vector<1x1x64xf32> to vector<1x64xf32>
    %c0_15 = arith.constant 0 : index
    %c3 = arith.constant 3 : index
    %c0_16 = arith.constant 0 : index
    %38 = vector.load %arg2[%c0_15, %c3, %c0_16] : memref<2x8x128xf32, #tpu.memory_space<vmem>>, vector<1x1x64xf32>
    %39 = vector.shape_cast %38 : vector<1x1x64xf32> to vector<1x64xf32>
    %c0_17 = arith.constant 0 : index
    %c4 = arith.constant 4 : index
    %c0_18 = arith.constant 0 : index
    %40 = vector.load %arg2[%c0_17, %c4, %c0_18] : memref<2x8x128xf32, #tpu.memory_space<vmem>>, vector<1x4x64xf32>
    %41 = vector.shape_cast %40 : vector<1x4x64xf32> to vector<4x64xf32>
    %42 = arith.addf %7, %8 : vector<16x32xf32>
    %43 = arith.mulf %42, %42 : vector<16x32xf32>
    %cst_19 = arith.constant dense<0.000000e+00> : vector<16xf32>
    %44 = vector.multi_reduction <add>, %43, %cst_19 [1] : vector<16x32xf32> to vector<16xf32>
    %45 = vector.shape_cast %44 : vector<16xf32> to vector<16x1xf32>
    %cst_20 = arith.constant 3.200000e+01 : f32
    %46 = vector.broadcast %cst_20 : f32 to vector<16x1xf32>
    %47 = arith.divf %45, %46 : vector<16x1xf32>
    %cst_21 = arith.constant 9.99999974E-6 : f32
    %48 = vector.broadcast %cst_21 : f32 to vector<16x1xf32>
    %49 = arith.addf %47, %48 : vector<16x1xf32>
    %50 = math.rsqrt %49 : vector<16x1xf32>
    %51 = vector.broadcast %50 : vector<16x1xf32> to vector<16x32xf32>
    %52 = arith.mulf %42, %51 : vector<16x32xf32>
    %53 = vector.broadcast %33 : vector<1x32xf32> to vector<16x32xf32>
    %54 = arith.mulf %52, %53 : vector<16x32xf32>
    %c0_22 = arith.constant 0 : index
    %c0_23 = arith.constant 0 : index
    %c0_24 = arith.constant 0 : index
    %55 = vector.load %arg3[%c0_22, %c0_23, %c0_24] : memref<2x32x128xf32, #tpu.memory_space<vmem>>, vector<1x32x128xf32>
    %56 = vector.shape_cast %55 : vector<1x32x128xf32> to vector<32x128xf32>
    %cst_25 = arith.constant dense<0.000000e+00> : vector<16x128xf32>
    %57 = tpu.matmul %54, %56, %cst_25 {dimension_numbers = #tpu.dot_dimension_numbers<[1], [0], [0], [1], [0, 0, 1, 1], [], []>} : vector<16x32xf32>, vector<32x128xf32>, vector<16x128xf32> -> vector<16x128xf32>
    %58 = vector.extract_strided_slice %57 {offsets = [0, 0], sizes = [16, 64], strides = [1, 1]} : vector<16x128xf32> to vector<16x64xf32>
    %59 = vector.extract_strided_slice %57 {offsets = [0, 64], sizes = [16, 64], strides = [1, 1]} : vector<16x128xf32> to vector<16x64xf32>
    %60 = vector.extract_strided_slice %41 {offsets = [3, 0], sizes = [1, 64], strides = [1, 1]} : vector<4x64xf32> to vector<1x64xf32>
    %61 = vector.broadcast %60 : vector<1x64xf32> to vector<16x64xf32>
    %62 = arith.mulf %58, %61 : vector<16x64xf32>
    %63 = vector.broadcast %35 : vector<1x64xf32> to vector<16x64xf32>
    %64 = arith.addf %63, %62 : vector<16x64xf32>
    %c1_i32_26 = arith.constant 1 : i32
    %65 = tpu.dynamic_rotate %58 by %c1_i32_26 dim 0 : vector<16x64xf32>, i32 -> vector<16x64xf32>
    %cst_27 = arith.constant 0.000000e+00 : f32
    %66 = vector.broadcast %cst_27 : f32 to vector<16x64xf32>
    %67 = arith.select %27, %65, %66 : vector<16x64xi1>, vector<16x64xf32>
    %68 = vector.extract_strided_slice %41 {offsets = [2, 0], sizes = [1, 64], strides = [1, 1]} : vector<4x64xf32> to vector<1x64xf32>
    %69 = vector.broadcast %68 : vector<1x64xf32> to vector<16x64xf32>
    %70 = arith.mulf %67, %69 : vector<16x64xf32>
    %71 = arith.addf %64, %70 : vector<16x64xf32>
    %c2_i32_28 = arith.constant 2 : i32
    %72 = tpu.dynamic_rotate %58 by %c2_i32_28 dim 0 : vector<16x64xf32>, i32 -> vector<16x64xf32>
    %cst_29 = arith.constant 0.000000e+00 : f32
    %73 = vector.broadcast %cst_29 : f32 to vector<16x64xf32>
    %74 = arith.select %29, %72, %73 : vector<16x64xi1>, vector<16x64xf32>
    %75 = vector.extract_strided_slice %41 {offsets = [1, 0], sizes = [1, 64], strides = [1, 1]} : vector<4x64xf32> to vector<1x64xf32>
    %76 = vector.broadcast %75 : vector<1x64xf32> to vector<16x64xf32>
    %77 = arith.mulf %74, %76 : vector<16x64xf32>
    %78 = arith.addf %71, %77 : vector<16x64xf32>
    %c3_i32_30 = arith.constant 3 : i32
    %79 = tpu.dynamic_rotate %58 by %c3_i32_30 dim 0 : vector<16x64xf32>, i32 -> vector<16x64xf32>
    %cst_31 = arith.constant 0.000000e+00 : f32
    %80 = vector.broadcast %cst_31 : f32 to vector<16x64xf32>
    %81 = arith.select %31, %79, %80 : vector<16x64xi1>, vector<16x64xf32>
    %82 = vector.extract_strided_slice %41 {offsets = [0, 0], sizes = [1, 64], strides = [1, 1]} : vector<4x64xf32> to vector<1x64xf32>
    %83 = vector.broadcast %82 : vector<1x64xf32> to vector<16x64xf32>
    %84 = arith.mulf %81, %83 : vector<16x64xf32>
    %85 = arith.addf %78, %84 : vector<16x64xf32>
    %cst_32 = arith.constant 0.000000e+00 : f32
    %86 = vector.broadcast %cst_32 : f32 to vector<16x64xf32>
    %87 = arith.subf %86, %85 : vector<16x64xf32>
    %88 = math.exp %87 : vector<16x64xf32>
    %cst_33 = arith.constant 1.000000e+00 : f32
    %89 = vector.broadcast %cst_33 : f32 to vector<16x64xf32>
    %90 = arith.addf %89, %88 : vector<16x64xf32>
    %cst_34 = arith.constant 1.000000e+00 : f32
    %91 = vector.broadcast %cst_34 : f32 to vector<16x64xf32>
    %92 = arith.divf %91, %90 : vector<16x64xf32>
    %93 = arith.mulf %85, %92 : vector<16x64xf32>
    %c0_35 = arith.constant 0 : index
    %c0_36 = arith.constant 0 : index
    %c0_37 = arith.constant 0 : index
    %94 = vector.load %arg4[%c0_35, %c0_36, %c0_37] : memref<2x64x128xf32, #tpu.memory_space<vmem>>, vector<1x64x64xf32>
    %95 = vector.shape_cast %94 : vector<1x64x64xf32> to vector<64x64xf32>
    %c0_38 = arith.constant 0 : index
    %c0_39 = arith.constant 0 : index
    %c64 = arith.constant 64 : index
    %96 = vector.load %arg4[%c0_38, %c0_39, %c64] : memref<2x64x128xf32, #tpu.memory_space<vmem>>, vector<1x64x32xf32>
    %97 = vector.shape_cast %96 : vector<1x64x32xf32> to vector<64x32xf32>
    %c0_40 = arith.constant 0 : index
    %c0_41 = arith.constant 0 : index
    %c0_42 = arith.constant 0 : index
    %98 = vector.load %arg5[%c0_40, %c0_41, %c0_42] : memref<2x48x128xf32, #tpu.memory_space<vmem>>, vector<1x32x64xf32>
    %99 = vector.shape_cast %98 : vector<1x32x64xf32> to vector<32x64xf32>
    %c0_43 = arith.constant 0 : index
    %c32 = arith.constant 32 : index
    %c0_44 = arith.constant 0 : index
    %100 = vector.load %arg5[%c0_43, %c32, %c0_44] : memref<2x48x128xf32, #tpu.memory_space<vmem>>, vector<1x16x128xf32>
    %101 = vector.shape_cast %100 : vector<1x16x128xf32> to vector<16x128xf32>
    %cst_45 = arith.constant dense<0.000000e+00> : vector<16x64xf32>
    %102 = tpu.matmul %93, %95, %cst_45 {dimension_numbers = #tpu.dot_dimension_numbers<[1], [0], [0], [1], [0, 0, 1, 1], [], []>} : vector<16x64xf32>, vector<64x64xf32>, vector<16x64xf32> -> vector<16x64xf32>
    %103 = vector.broadcast %37 : vector<1x64xf32> to vector<16x64xf32>
    %104 = arith.addf %102, %103 : vector<16x64xf32>
    %cst_46 = arith.constant -2.000000e+01 : f32
    %cst_47 = arith.constant 2.000000e+01 : f32
    %105 = vector.broadcast %cst_46 : f32 to vector<16x64xf32>
    %106 = arith.maximumf %105, %104 : vector<16x64xf32>
    %107 = vector.broadcast %cst_47 : f32 to vector<16x64xf32>
    %108 = arith.minimumf %107, %106 : vector<16x64xf32>
    %109 = math.exp %108 : vector<16x64xf32>
    %cst_48 = arith.constant 1.000000e+00 : f32
    %110 = vector.broadcast %cst_48 : f32 to vector<16x64xf32>
    %111 = arith.addf %110, %109 : vector<16x64xf32>
    %112 = math.log %111 : vector<16x64xf32>
    %cst_49 = arith.constant 2.000000e+01 : f32
    %113 = vector.broadcast %cst_49 : f32 to vector<16x64xf32>
    %114 = arith.cmpf ogt, %104, %113 : vector<16x64xf32>
    %cst_50 = arith.constant -2.000000e+01 : f32
    %115 = vector.broadcast %cst_50 : f32 to vector<16x64xf32>
    %116 = arith.cmpf olt, %104, %115 : vector<16x64xf32>
    %117 = math.exp %104 : vector<16x64xf32>
    %118 = arith.select %116, %117, %112 : vector<16x64xi1>, vector<16x64xf32>
    %119 = arith.select %114, %104, %118 : vector<16x64xi1>, vector<16x64xf32>
    %120 = arith.mulf %119, %93 : vector<16x64xf32>
    %cst_51 = arith.constant dense<0.000000e+00> : vector<32x16xf32>
    %121 = tpu.matmul %99, %93, %cst_51 {dimension_numbers = #tpu.dot_dimension_numbers<[1], [1], [0], [0], [0, 0, 1, 0], [], []>} : vector<32x64xf32>, vector<16x64xf32>, vector<32x16xf32> -> vector<32x16xf32>
    %122 = vector.extract_strided_slice %121 {offsets = [0, 0], sizes = [16, 16], strides = [1, 1]} : vector<32x16xf32> to vector<16x16xf32>
    %123 = vector.extract_strided_slice %121 {offsets = [16, 0], sizes = [16, 16], strides = [1, 1]} : vector<32x16xf32> to vector<16x16xf32>
    %124 = vector.extract_strided_slice %119 {offsets = [0, 0], sizes = [8, 64], strides = [1, 1]} : vector<16x64xf32> to vector<8x64xf32>
    %125 = vector.extract_strided_slice %119 {offsets = [8, 0], sizes = [8, 64], strides = [1, 1]} : vector<16x64xf32> to vector<8x64xf32>
    %126 = tpu.concatenate %124, %125 in 1 : vector<8x64xf32>, vector<8x64xf32> -> vector<8x128xf32>
    %127 = vector.extract_strided_slice %120 {offsets = [0, 0], sizes = [8, 64], strides = [1, 1]} : vector<16x64xf32> to vector<8x64xf32>
    %128 = vector.extract_strided_slice %120 {offsets = [8, 0], sizes = [8, 64], strides = [1, 1]} : vector<16x64xf32> to vector<8x64xf32>
    %129 = tpu.concatenate %127, %128 in 1 : vector<8x64xf32>, vector<8x64xf32> -> vector<8x128xf32>
    %130 = vector.extract_strided_slice %126 {offsets = [0, 0], sizes = [1, 128], strides = [1, 1]} : vector<8x128xf32> to vector<1x128xf32>
    %131 = vector.broadcast %130 : vector<1x128xf32> to vector<16x128xf32>
    %132 = arith.mulf %131, %101 : vector<16x128xf32>
    %133 = math.exp %132 : vector<16x128xf32>
    %c0_52 = arith.constant 0 : index
    %c0_53 = arith.constant 0 : index
    %c0_54 = arith.constant 0 : index
    %134 = vector.load %arg7[%c0_52, %c0_53, %c0_54] : memref<8x16x128xf32, #tpu.memory_space<vmem>>, vector<1x16x128xf32>
    %135 = vector.shape_cast %134 : vector<1x16x128xf32> to vector<16x128xf32>
    %136 = vector.shape_cast %133 : vector<16x128xf32> to vector<1x16x128xf32>
    tpu.vector_store %arg7[%c0_52, %c0_53, %c0_54], %136 {strides = array<i32>} : memref<8x16x128xf32, #tpu.memory_space<vmem>>, vector<1x16x128xf32>,
    %137 = vector.extract_strided_slice %122 {offsets = [0, 0], sizes = [16, 1], strides = [1, 1]} : vector<16x16xf32> to vector<16x1xf32>
    %138 = vector.shape_cast %137 : vector<16x1xf32> to vector<16x1xf32>
    %139 = vector.broadcast %138 : vector<16x1xf32> to vector<16x64xf32>
    %140 = vector.extract_strided_slice %122 {offsets = [0, 8], sizes = [16, 1], strides = [1, 1]} : vector<16x16xf32> to vector<16x1xf32>
    %141 = vector.shape_cast %140 : vector<16x1xf32> to vector<16x1xf32>
    %142 = vector.broadcast %141 : vector<16x1xf32> to vector<16x64xf32>
    %143 = tpu.concatenate %139, %142 in 1 : vector<16x64xf32>, vector<16x64xf32> -> vector<16x128xf32>
    %144 = vector.extract_strided_slice %129 {offsets = [0, 0], sizes = [1, 128], strides = [1, 1]} : vector<8x128xf32> to vector<1x128xf32>
    %145 = vector.broadcast %144 : vector<1x128xf32> to vector<16x128xf32>
    %146 = arith.mulf %145, %143 : vector<16x128xf32>
    %c0_55 = arith.constant 0 : index
    %c0_56 = arith.constant 0 : index
    %c0_57 = arith.constant 0 : index
    %147 = vector.load %arg8[%c0_55, %c0_56, %c0_57] : memref<8x16x128xf32, #tpu.memory_space<vmem>>, vector<1x16x128xf32>
    %148 = vector.shape_cast %147 : vector<1x16x128xf32> to vector<16x128xf32>
    %149 = vector.shape_cast %146 : vector<16x128xf32> to vector<1x16x128xf32>
    tpu.vector_store %arg8[%c0_55, %c0_56, %c0_57], %149 {strides = array<i32>} : memref<8x16x128xf32, #tpu.memory_space<vmem>>, vector<1x16x128xf32>,
    %150 = vector.extract_strided_slice %123 {offsets = [0, 0], sizes = [16, 1], strides = [1, 1]} : vector<16x16xf32> to vector<16x1xf32>
    %151 = vector.shape_cast %150 : vector<16x1xf32> to vector<16x1xf32>
    %152 = vector.broadcast %151 : vector<16x1xf32> to vector<16x64xf32>
    %153 = vector.extract_strided_slice %123 {offsets = [0, 8], sizes = [16, 1], strides = [1, 1]} : vector<16x16xf32> to vector<16x1xf32>
    %154 = vector.shape_cast %153 : vector<16x1xf32> to vector<16x1xf32>
    %155 = vector.broadcast %154 : vector<16x1xf32> to vector<16x64xf32>
    %156 = tpu.concatenate %152, %155 in 1 : vector<16x64xf32>, vector<16x64xf32> -> vector<16x128xf32>
    %c0_58 = arith.constant 0 : index
    %c0_59 = arith.constant 0 : index
    %c0_60 = arith.constant 0 : index
    %157 = vector.load %arg9[%c0_58, %c0_59, %c0_60] : memref<8x16x128xf32, #tpu.memory_space<vmem>>, vector<1x16x128xf32>
    %158 = vector.shape_cast %157 : vector<1x16x128xf32> to vector<16x128xf32>
    %159 = vector.shape_cast %156 : vector<16x128xf32> to vector<1x16x128xf32>
    tpu.vector_store %arg9[%c0_58, %c0_59, %c0_60], %159 {strides = array<i32>} : memref<8x16x128xf32, #tpu.memory_space<vmem>>, vector<1x16x128xf32>,
    %160 = vector.extract_strided_slice %126 {offsets = [1, 0], sizes = [1, 128], strides = [1, 1]} : vector<8x128xf32> to vector<1x128xf32>
    %161 = vector.broadcast %160 : vector<1x128xf32> to vector<16x128xf32>
    %162 = arith.mulf %161, %101 : vector<16x128xf32>
    %163 = math.exp %162 : vector<16x128xf32>
    %c1_61 = arith.constant 1 : index
    %c0_62 = arith.constant 0 : index
    %c0_63 = arith.constant 0 : index
    %164 = vector.load %arg7[%c1_61, %c0_62, %c0_63] : memref<8x16x128xf32, #tpu.memory_space<vmem>>, vector<1x16x128xf32>
    %165 = vector.shape_cast %164 : vector<1x16x128xf32> to vector<16x128xf32>
    %166 = vector.shape_cast %163 : vector<16x128xf32> to vector<1x16x128xf32>
    tpu.vector_store %arg7[%c1_61, %c0_62, %c0_63], %166 {strides = array<i32>} : memref<8x16x128xf32, #tpu.memory_space<vmem>>, vector<1x16x128xf32>,
    %167 = vector.extract_strided_slice %122 {offsets = [0, 1], sizes = [16, 1], strides = [1, 1]} : vector<16x16xf32> to vector<16x1xf32>
    %168 = vector.shape_cast %167 : vector<16x1xf32> to vector<16x1xf32>
    %169 = vector.broadcast %168 : vector<16x1xf32> to vector<16x64xf32>
    %170 = vector.extract_strided_slice %122 {offsets = [0, 9], sizes = [16, 1], strides = [1, 1]} : vector<16x16xf32> to vector<16x1xf32>
    %171 = vector.shape_cast %170 : vector<16x1xf32> to vector<16x1xf32>
    %172 = vector.broadcast %171 : vector<16x1xf32> to vector<16x64xf32>
    %173 = tpu.concatenate %169, %172 in 1 : vector<16x64xf32>, vector<16x64xf32> -> vector<16x128xf32>
    %174 = vector.extract_strided_slice %129 {offsets = [1, 0], sizes = [1, 128], strides = [1, 1]} : vector<8x128xf32> to vector<1x128xf32>
    %175 = vector.broadcast %174 : vector<1x128xf32> to vector<16x128xf32>
    %176 = arith.mulf %175, %173 : vector<16x128xf32>
    %c1_64 = arith.constant 1 : index
    %c0_65 = arith.constant 0 : index
    %c0_66 = arith.constant 0 : index
    %177 = vector.load %arg8[%c1_64, %c0_65, %c0_66] : memref<8x16x128xf32, #tpu.memory_space<vmem>>, vector<1x16x128xf32>
    %178 = vector.shape_cast %177 : vector<1x16x128xf32> to vector<16x128xf32>
    %179 = vector.shape_cast %176 : vector<16x128xf32> to vector<1x16x128xf32>
    tpu.vector_store %arg8[%c1_64, %c0_65, %c0_66], %179 {strides = array<i32>} : memref<8x16x128xf32, #tpu.memory_space<vmem>>, vector<1x16x128xf32>,
    %180 = vector.extract_strided_slice %123 {offsets = [0, 1], sizes = [16, 1], strides = [1, 1]} : vector<16x16xf32> to vector<16x1xf32>
    %181 = vector.shape_cast %180 : vector<16x1xf32> to vector<16x1xf32>
    %182 = vector.broadcast %181 : vector<16x1xf32> to vector<16x64xf32>
    %183 = vector.extract_strided_slice %123 {offsets = [0, 9], sizes = [16, 1], strides = [1, 1]} : vector<16x16xf32> to vector<16x1xf32>
    %184 = vector.shape_cast %183 : vector<16x1xf32> to vector<16x1xf32>
    %185 = vector.broadcast %184 : vector<16x1xf32> to vector<16x64xf32>
    %186 = tpu.concatenate %182, %185 in 1 : vector<16x64xf32>, vector<16x64xf32> -> vector<16x128xf32>
    %c1_67 = arith.constant 1 : index
    %c0_68 = arith.constant 0 : index
    %c0_69 = arith.constant 0 : index
    %187 = vector.load %arg9[%c1_67, %c0_68, %c0_69] : memref<8x16x128xf32, #tpu.memory_space<vmem>>, vector<1x16x128xf32>
    %188 = vector.shape_cast %187 : vector<1x16x128xf32> to vector<16x128xf32>
    %189 = vector.shape_cast %186 : vector<16x128xf32> to vector<1x16x128xf32>
    tpu.vector_store %arg9[%c1_67, %c0_68, %c0_69], %189 {strides = array<i32>} : memref<8x16x128xf32, #tpu.memory_space<vmem>>, vector<1x16x128xf32>,
    %190 = vector.extract_strided_slice %126 {offsets = [2, 0], sizes = [1, 128], strides = [1, 1]} : vector<8x128xf32> to vector<1x128xf32>
    %191 = vector.broadcast %190 : vector<1x128xf32> to vector<16x128xf32>
    %192 = arith.mulf %191, %101 : vector<16x128xf32>
    %193 = math.exp %192 : vector<16x128xf32>
    %c2_70 = arith.constant 2 : index
    %c0_71 = arith.constant 0 : index
    %c0_72 = arith.constant 0 : index
    %194 = vector.load %arg7[%c2_70, %c0_71, %c0_72] : memref<8x16x128xf32, #tpu.memory_space<vmem>>, vector<1x16x128xf32>
    %195 = vector.shape_cast %194 : vector<1x16x128xf32> to vector<16x128xf32>
    %196 = vector.shape_cast %193 : vector<16x128xf32> to vector<1x16x128xf32>
    tpu.vector_store %arg7[%c2_70, %c0_71, %c0_72], %196 {strides = array<i32>} : memref<8x16x128xf32, #tpu.memory_space<vmem>>, vector<1x16x128xf32>,
    %197 = vector.extract_strided_slice %122 {offsets = [0, 2], sizes = [16, 1], strides = [1, 1]} : vector<16x16xf32> to vector<16x1xf32>
    %198 = vector.shape_cast %197 : vector<16x1xf32> to vector<16x1xf32>
    %199 = vector.broadcast %198 : vector<16x1xf32> to vector<16x64xf32>
    %200 = vector.extract_strided_slice %122 {offsets = [0, 10], sizes = [16, 1], strides = [1, 1]} : vector<16x16xf32> to vector<16x1xf32>
    %201 = vector.shape_cast %200 : vector<16x1xf32> to vector<16x1xf32>
    %202 = vector.broadcast %201 : vector<16x1xf32> to vector<16x64xf32>
    %203 = tpu.concatenate %199, %202 in 1 : vector<16x64xf32>, vector<16x64xf32> -> vector<16x128xf32>
    %204 = vector.extract_strided_slice %129 {offsets = [2, 0], sizes = [1, 128], strides = [1, 1]} : vector<8x128xf32> to vector<1x128xf32>
    %205 = vector.broadcast %204 : vector<1x128xf32> to vector<16x128xf32>
    %206 = arith.mulf %205, %203 : vector<16x128xf32>
    %c2_73 = arith.constant 2 : index
    %c0_74 = arith.constant 0 : index
    %c0_75 = arith.constant 0 : index
    %207 = vector.load %arg8[%c2_73, %c0_74, %c0_75] : memref<8x16x128xf32, #tpu.memory_space<vmem>>, vector<1x16x128xf32>
    %208 = vector.shape_cast %207 : vector<1x16x128xf32> to vector<16x128xf32>
    %209 = vector.shape_cast %206 : vector<16x128xf32> to vector<1x16x128xf32>
    tpu.vector_store %arg8[%c2_73, %c0_74, %c0_75], %209 {strides = array<i32>} : memref<8x16x128xf32, #tpu.memory_space<vmem>>, vector<1x16x128xf32>,
    %210 = vector.extract_strided_slice %123 {offsets = [0, 2], sizes = [16, 1], strides = [1, 1]} : vector<16x16xf32> to vector<16x1xf32>
    %211 = vector.shape_cast %210 : vector<16x1xf32> to vector<16x1xf32>
    %212 = vector.broadcast %211 : vector<16x1xf32> to vector<16x64xf32>
    %213 = vector.extract_strided_slice %123 {offsets = [0, 10], sizes = [16, 1], strides = [1, 1]} : vector<16x16xf32> to vector<16x1xf32>
    %214 = vector.shape_cast %213 : vector<16x1xf32> to vector<16x1xf32>
    %215 = vector.broadcast %214 : vector<16x1xf32> to vector<16x64xf32>
    %216 = tpu.concatenate %212, %215 in 1 : vector<16x64xf32>, vector<16x64xf32> -> vector<16x128xf32>
    %c2_76 = arith.constant 2 : index
    %c0_77 = arith.constant 0 : index
    %c0_78 = arith.constant 0 : index
    %217 = vector.load %arg9[%c2_76, %c0_77, %c0_78] : memref<8x16x128xf32, #tpu.memory_space<vmem>>, vector<1x16x128xf32>
    %218 = vector.shape_cast %217 : vector<1x16x128xf32> to vector<16x128xf32>
    %219 = vector.shape_cast %216 : vector<16x128xf32> to vector<1x16x128xf32>
    tpu.vector_store %arg9[%c2_76, %c0_77, %c0_78], %219 {strides = array<i32>} : memref<8x16x128xf32, #tpu.memory_space<vmem>>, vector<1x16x128xf32>,
    %220 = vector.extract_strided_slice %126 {offsets = [3, 0], sizes = [1, 128], strides = [1, 1]} : vector<8x128xf32> to vector<1x128xf32>
    %221 = vector.broadcast %220 : vector<1x128xf32> to vector<16x128xf32>
    %222 = arith.mulf %221, %101 : vector<16x128xf32>
    %223 = math.exp %222 : vector<16x128xf32>
    %c3_79 = arith.constant 3 : index
    %c0_80 = arith.constant 0 : index
    %c0_81 = arith.constant 0 : index
    %224 = vector.load %arg7[%c3_79, %c0_80, %c0_81] : memref<8x16x128xf32, #tpu.memory_space<vmem>>, vector<1x16x128xf32>
    %225 = vector.shape_cast %224 : vector<1x16x128xf32> to vector<16x128xf32>
    %226 = vector.shape_cast %223 : vector<16x128xf32> to vector<1x16x128xf32>
    tpu.vector_store %arg7[%c3_79, %c0_80, %c0_81], %226 {strides = array<i32>} : memref<8x16x128xf32, #tpu.memory_space<vmem>>, vector<1x16x128xf32>,
    %227 = vector.extract_strided_slice %122 {offsets = [0, 3], sizes = [16, 1], strides = [1, 1]} : vector<16x16xf32> to vector<16x1xf32>
    %228 = vector.shape_cast %227 : vector<16x1xf32> to vector<16x1xf32>
    %229 = vector.broadcast %228 : vector<16x1xf32> to vector<16x64xf32>
    %230 = vector.extract_strided_slice %122 {offsets = [0, 11], sizes = [16, 1], strides = [1, 1]} : vector<16x16xf32> to vector<16x1xf32>
    %231 = vector.shape_cast %230 : vector<16x1xf32> to vector<16x1xf32>
    %232 = vector.broadcast %231 : vector<16x1xf32> to vector<16x64xf32>
    %233 = tpu.concatenate %229, %232 in 1 : vector<16x64xf32>, vector<16x64xf32> -> vector<16x128xf32>
    %234 = vector.extract_strided_slice %129 {offsets = [3, 0], sizes = [1, 128], strides = [1, 1]} : vector<8x128xf32> to vector<1x128xf32>
    %235 = vector.broadcast %234 : vector<1x128xf32> to vector<16x128xf32>
    %236 = arith.mulf %235, %233 : vector<16x128xf32>
    %c3_82 = arith.constant 3 : index
    %c0_83 = arith.constant 0 : index
    %c0_84 = arith.constant 0 : index
    %237 = vector.load %arg8[%c3_82, %c0_83, %c0_84] : memref<8x16x128xf32, #tpu.memory_space<vmem>>, vector<1x16x128xf32>
    %238 = vector.shape_cast %237 : vector<1x16x128xf32> to vector<16x128xf32>
    %239 = vector.shape_cast %236 : vector<16x128xf32> to vector<1x16x128xf32>
    tpu.vector_store %arg8[%c3_82, %c0_83, %c0_84], %239 {strides = array<i32>} : memref<8x16x128xf32, #tpu.memory_space<vmem>>, vector<1x16x128xf32>,
    %240 = vector.extract_strided_slice %123 {offsets = [0, 3], sizes = [16, 1], strides = [1, 1]} : vector<16x16xf32> to vector<16x1xf32>
    %241 = vector.shape_cast %240 : vector<16x1xf32> to vector<16x1xf32>
    %242 = vector.broadcast %241 : vector<16x1xf32> to vector<16x64xf32>
    %243 = vector.extract_strided_slice %123 {offsets = [0, 11], sizes = [16, 1], strides = [1, 1]} : vector<16x16xf32> to vector<16x1xf32>
    %244 = vector.shape_cast %243 : vector<16x1xf32> to vector<16x1xf32>
    %245 = vector.broadcast %244 : vector<16x1xf32> to vector<16x64xf32>
    %246 = tpu.concatenate %242, %245 in 1 : vector<16x64xf32>, vector<16x64xf32> -> vector<16x128xf32>
    %c3_85 = arith.constant 3 : index
    %c0_86 = arith.constant 0 : index
    %c0_87 = arith.constant 0 : index
    %247 = vector.load %arg9[%c3_85, %c0_86, %c0_87] : memref<8x16x128xf32, #tpu.memory_space<vmem>>, vector<1x16x128xf32>
    %248 = vector.shape_cast %247 : vector<1x16x128xf32> to vector<16x128xf32>
    %249 = vector.shape_cast %246 : vector<16x128xf32> to vector<1x16x128xf32>
    tpu.vector_store %arg9[%c3_85, %c0_86, %c0_87], %249 {strides = array<i32>} : memref<8x16x128xf32, #tpu.memory_space<vmem>>, vector<1x16x128xf32>,
    %250 = vector.extract_strided_slice %126 {offsets = [4, 0], sizes = [1, 128], strides = [1, 1]} : vector<8x128xf32> to vector<1x128xf32>
    %251 = vector.broadcast %250 : vector<1x128xf32> to vector<16x128xf32>
    %252 = arith.mulf %251, %101 : vector<16x128xf32>
    %253 = math.exp %252 : vector<16x128xf32>
    %c4_88 = arith.constant 4 : index
    %c0_89 = arith.constant 0 : index
    %c0_90 = arith.constant 0 : index
    %254 = vector.load %arg7[%c4_88, %c0_89, %c0_90] : memref<8x16x128xf32, #tpu.memory_space<vmem>>, vector<1x16x128xf32>
    %255 = vector.shape_cast %254 : vector<1x16x128xf32> to vector<16x128xf32>
    %256 = vector.shape_cast %253 : vector<16x128xf32> to vector<1x16x128xf32>
    tpu.vector_store %arg7[%c4_88, %c0_89, %c0_90], %256 {strides = array<i32>} : memref<8x16x128xf32, #tpu.memory_space<vmem>>, vector<1x16x128xf32>,
    %257 = vector.extract_strided_slice %122 {offsets = [0, 4], sizes = [16, 1], strides = [1, 1]} : vector<16x16xf32> to vector<16x1xf32>
    %258 = vector.shape_cast %257 : vector<16x1xf32> to vector<16x1xf32>
    %259 = vector.broadcast %258 : vector<16x1xf32> to vector<16x64xf32>
    %260 = vector.extract_strided_slice %122 {offsets = [0, 12], sizes = [16, 1], strides = [1, 1]} : vector<16x16xf32> to vector<16x1xf32>
    %261 = vector.shape_cast %260 : vector<16x1xf32> to vector<16x1xf32>
    %262 = vector.broadcast %261 : vector<16x1xf32> to vector<16x64xf32>
    %263 = tpu.concatenate %259, %262 in 1 : vector<16x64xf32>, vector<16x64xf32> -> vector<16x128xf32>
    %264 = vector.extract_strided_slice %129 {offsets = [4, 0], sizes = [1, 128], strides = [1, 1]} : vector<8x128xf32> to vector<1x128xf32>
    %265 = vector.broadcast %264 : vector<1x128xf32> to vector<16x128xf32>
    %266 = arith.mulf %265, %263 : vector<16x128xf32>
    %c4_91 = arith.constant 4 : index
    %c0_92 = arith.constant 0 : index
    %c0_93 = arith.constant 0 : index
    %267 = vector.load %arg8[%c4_91, %c0_92, %c0_93] : memref<8x16x128xf32, #tpu.memory_space<vmem>>, vector<1x16x128xf32>
    %268 = vector.shape_cast %267 : vector<1x16x128xf32> to vector<16x128xf32>
    %269 = vector.shape_cast %266 : vector<16x128xf32> to vector<1x16x128xf32>
    tpu.vector_store %arg8[%c4_91, %c0_92, %c0_93], %269 {strides = array<i32>} : memref<8x16x128xf32, #tpu.memory_space<vmem>>, vector<1x16x128xf32>,
    %270 = vector.extract_strided_slice %123 {offsets = [0, 4], sizes = [16, 1], strides = [1, 1]} : vector<16x16xf32> to vector<16x1xf32>
    %271 = vector.shape_cast %270 : vector<16x1xf32> to vector<16x1xf32>
    %272 = vector.broadcast %271 : vector<16x1xf32> to vector<16x64xf32>
    %273 = vector.extract_strided_slice %123 {offsets = [0, 12], sizes = [16, 1], strides = [1, 1]} : vector<16x16xf32> to vector<16x1xf32>
    %274 = vector.shape_cast %273 : vector<16x1xf32> to vector<16x1xf32>
    %275 = vector.broadcast %274 : vector<16x1xf32> to vector<16x64xf32>
    %276 = tpu.concatenate %272, %275 in 1 : vector<16x64xf32>, vector<16x64xf32> -> vector<16x128xf32>
    %c4_94 = arith.constant 4 : index
    %c0_95 = arith.constant 0 : index
    %c0_96 = arith.constant 0 : index
    %277 = vector.load %arg9[%c4_94, %c0_95, %c0_96] : memref<8x16x128xf32, #tpu.memory_space<vmem>>, vector<1x16x128xf32>
    %278 = vector.shape_cast %277 : vector<1x16x128xf32> to vector<16x128xf32>
    %279 = vector.shape_cast %276 : vector<16x128xf32> to vector<1x16x128xf32>
    tpu.vector_store %arg9[%c4_94, %c0_95, %c0_96], %279 {strides = array<i32>} : memref<8x16x128xf32, #tpu.memory_space<vmem>>, vector<1x16x128xf32>,
    %280 = vector.extract_strided_slice %126 {offsets = [5, 0], sizes = [1, 128], strides = [1, 1]} : vector<8x128xf32> to vector<1x128xf32>
    %281 = vector.broadcast %280 : vector<1x128xf32> to vector<16x128xf32>
    %282 = arith.mulf %281, %101 : vector<16x128xf32>
    %283 = math.exp %282 : vector<16x128xf32>
    %c5 = arith.constant 5 : index
    %c0_97 = arith.constant 0 : index
    %c0_98 = arith.constant 0 : index
    %284 = vector.load %arg7[%c5, %c0_97, %c0_98] : memref<8x16x128xf32, #tpu.memory_space<vmem>>, vector<1x16x128xf32>
    %285 = vector.shape_cast %284 : vector<1x16x128xf32> to vector<16x128xf32>
    %286 = vector.shape_cast %283 : vector<16x128xf32> to vector<1x16x128xf32>
    tpu.vector_store %arg7[%c5, %c0_97, %c0_98], %286 {strides = array<i32>} : memref<8x16x128xf32, #tpu.memory_space<vmem>>, vector<1x16x128xf32>,
    %287 = vector.extract_strided_slice %122 {offsets = [0, 5], sizes = [16, 1], strides = [1, 1]} : vector<16x16xf32> to vector<16x1xf32>
    %288 = vector.shape_cast %287 : vector<16x1xf32> to vector<16x1xf32>
    %289 = vector.broadcast %288 : vector<16x1xf32> to vector<16x64xf32>
    %290 = vector.extract_strided_slice %122 {offsets = [0, 13], sizes = [16, 1], strides = [1, 1]} : vector<16x16xf32> to vector<16x1xf32>
    %291 = vector.shape_cast %290 : vector<16x1xf32> to vector<16x1xf32>
    %292 = vector.broadcast %291 : vector<16x1xf32> to vector<16x64xf32>
    %293 = tpu.concatenate %289, %292 in 1 : vector<16x64xf32>, vector<16x64xf32> -> vector<16x128xf32>
    %294 = vector.extract_strided_slice %129 {offsets = [5, 0], sizes = [1, 128], strides = [1, 1]} : vector<8x128xf32> to vector<1x128xf32>
    %295 = vector.broadcast %294 : vector<1x128xf32> to vector<16x128xf32>
    %296 = arith.mulf %295, %293 : vector<16x128xf32>
    %c5_99 = arith.constant 5 : index
    %c0_100 = arith.constant 0 : index
    %c0_101 = arith.constant 0 : index
    %297 = vector.load %arg8[%c5_99, %c0_100, %c0_101] : memref<8x16x128xf32, #tpu.memory_space<vmem>>, vector<1x16x128xf32>
    %298 = vector.shape_cast %297 : vector<1x16x128xf32> to vector<16x128xf32>
    %299 = vector.shape_cast %296 : vector<16x128xf32> to vector<1x16x128xf32>
    tpu.vector_store %arg8[%c5_99, %c0_100, %c0_101], %299 {strides = array<i32>} : memref<8x16x128xf32, #tpu.memory_space<vmem>>, vector<1x16x128xf32>,
    %300 = vector.extract_strided_slice %123 {offsets = [0, 5], sizes = [16, 1], strides = [1, 1]} : vector<16x16xf32> to vector<16x1xf32>
    %301 = vector.shape_cast %300 : vector<16x1xf32> to vector<16x1xf32>
    %302 = vector.broadcast %301 : vector<16x1xf32> to vector<16x64xf32>
    %303 = vector.extract_strided_slice %123 {offsets = [0, 13], sizes = [16, 1], strides = [1, 1]} : vector<16x16xf32> to vector<16x1xf32>
    %304 = vector.shape_cast %303 : vector<16x1xf32> to vector<16x1xf32>
    %305 = vector.broadcast %304 : vector<16x1xf32> to vector<16x64xf32>
    %306 = tpu.concatenate %302, %305 in 1 : vector<16x64xf32>, vector<16x64xf32> -> vector<16x128xf32>
    %c5_102 = arith.constant 5 : index
    %c0_103 = arith.constant 0 : index
    %c0_104 = arith.constant 0 : index
    %307 = vector.load %arg9[%c5_102, %c0_103, %c0_104] : memref<8x16x128xf32, #tpu.memory_space<vmem>>, vector<1x16x128xf32>
    %308 = vector.shape_cast %307 : vector<1x16x128xf32> to vector<16x128xf32>
    %309 = vector.shape_cast %306 : vector<16x128xf32> to vector<1x16x128xf32>
    tpu.vector_store %arg9[%c5_102, %c0_103, %c0_104], %309 {strides = array<i32>} : memref<8x16x128xf32, #tpu.memory_space<vmem>>, vector<1x16x128xf32>,
    %310 = vector.extract_strided_slice %126 {offsets = [6, 0], sizes = [1, 128], strides = [1, 1]} : vector<8x128xf32> to vector<1x128xf32>
    %311 = vector.broadcast %310 : vector<1x128xf32> to vector<16x128xf32>
    %312 = arith.mulf %311, %101 : vector<16x128xf32>
    %313 = math.exp %312 : vector<16x128xf32>
    %c6 = arith.constant 6 : index
    %c0_105 = arith.constant 0 : index
    %c0_106 = arith.constant 0 : index
    %314 = vector.load %arg7[%c6, %c0_105, %c0_106] : memref<8x16x128xf32, #tpu.memory_space<vmem>>, vector<1x16x128xf32>
    %315 = vector.shape_cast %314 : vector<1x16x128xf32> to vector<16x128xf32>
    %316 = vector.shape_cast %313 : vector<16x128xf32> to vector<1x16x128xf32>
    tpu.vector_store %arg7[%c6, %c0_105, %c0_106], %316 {strides = array<i32>} : memref<8x16x128xf32, #tpu.memory_space<vmem>>, vector<1x16x128xf32>,
    %317 = vector.extract_strided_slice %122 {offsets = [0, 6], sizes = [16, 1], strides = [1, 1]} : vector<16x16xf32> to vector<16x1xf32>
    %318 = vector.shape_cast %317 : vector<16x1xf32> to vector<16x1xf32>
    %319 = vector.broadcast %318 : vector<16x1xf32> to vector<16x64xf32>
    %320 = vector.extract_strided_slice %122 {offsets = [0, 14], sizes = [16, 1], strides = [1, 1]} : vector<16x16xf32> to vector<16x1xf32>
    %321 = vector.shape_cast %320 : vector<16x1xf32> to vector<16x1xf32>
    %322 = vector.broadcast %321 : vector<16x1xf32> to vector<16x64xf32>
    %323 = tpu.concatenate %319, %322 in 1 : vector<16x64xf32>, vector<16x64xf32> -> vector<16x128xf32>
    %324 = vector.extract_strided_slice %129 {offsets = [6, 0], sizes = [1, 128], strides = [1, 1]} : vector<8x128xf32> to vector<1x128xf32>
    %325 = vector.broadcast %324 : vector<1x128xf32> to vector<16x128xf32>
    %326 = arith.mulf %325, %323 : vector<16x128xf32>
    %c6_107 = arith.constant 6 : index
    %c0_108 = arith.constant 0 : index
    %c0_109 = arith.constant 0 : index
    %327 = vector.load %arg8[%c6_107, %c0_108, %c0_109] : memref<8x16x128xf32, #tpu.memory_space<vmem>>, vector<1x16x128xf32>
    %328 = vector.shape_cast %327 : vector<1x16x128xf32> to vector<16x128xf32>
    %329 = vector.shape_cast %326 : vector<16x128xf32> to vector<1x16x128xf32>
    tpu.vector_store %arg8[%c6_107, %c0_108, %c0_109], %329 {strides = array<i32>} : memref<8x16x128xf32, #tpu.memory_space<vmem>>, vector<1x16x128xf32>,
    %330 = vector.extract_strided_slice %123 {offsets = [0, 6], sizes = [16, 1], strides = [1, 1]} : vector<16x16xf32> to vector<16x1xf32>
    %331 = vector.shape_cast %330 : vector<16x1xf32> to vector<16x1xf32>
    %332 = vector.broadcast %331 : vector<16x1xf32> to vector<16x64xf32>
    %333 = vector.extract_strided_slice %123 {offsets = [0, 14], sizes = [16, 1], strides = [1, 1]} : vector<16x16xf32> to vector<16x1xf32>
    %334 = vector.shape_cast %333 : vector<16x1xf32> to vector<16x1xf32>
    %335 = vector.broadcast %334 : vector<16x1xf32> to vector<16x64xf32>
    %336 = tpu.concatenate %332, %335 in 1 : vector<16x64xf32>, vector<16x64xf32> -> vector<16x128xf32>
    %c6_110 = arith.constant 6 : index
    %c0_111 = arith.constant 0 : index
    %c0_112 = arith.constant 0 : index
    %337 = vector.load %arg9[%c6_110, %c0_111, %c0_112] : memref<8x16x128xf32, #tpu.memory_space<vmem>>, vector<1x16x128xf32>
    %338 = vector.shape_cast %337 : vector<1x16x128xf32> to vector<16x128xf32>
    %339 = vector.shape_cast %336 : vector<16x128xf32> to vector<1x16x128xf32>
    tpu.vector_store %arg9[%c6_110, %c0_111, %c0_112], %339 {strides = array<i32>} : memref<8x16x128xf32, #tpu.memory_space<vmem>>, vector<1x16x128xf32>,
    %340 = vector.extract_strided_slice %126 {offsets = [7, 0], sizes = [1, 128], strides = [1, 1]} : vector<8x128xf32> to vector<1x128xf32>
    %341 = vector.broadcast %340 : vector<1x128xf32> to vector<16x128xf32>
    %342 = arith.mulf %341, %101 : vector<16x128xf32>
    %343 = math.exp %342 : vector<16x128xf32>
    %c7 = arith.constant 7 : index
    %c0_113 = arith.constant 0 : index
    %c0_114 = arith.constant 0 : index
    %344 = vector.load %arg7[%c7, %c0_113, %c0_114] : memref<8x16x128xf32, #tpu.memory_space<vmem>>, vector<1x16x128xf32>
    %345 = vector.shape_cast %344 : vector<1x16x128xf32> to vector<16x128xf32>
    %346 = vector.shape_cast %343 : vector<16x128xf32> to vector<1x16x128xf32>
    tpu.vector_store %arg7[%c7, %c0_113, %c0_114], %346 {strides = array<i32>} : memref<8x16x128xf32, #tpu.memory_space<vmem>>, vector<1x16x128xf32>,
    %347 = vector.extract_strided_slice %122 {offsets = [0, 7], sizes = [16, 1], strides = [1, 1]} : vector<16x16xf32> to vector<16x1xf32>
    %348 = vector.shape_cast %347 : vector<16x1xf32> to vector<16x1xf32>
    %349 = vector.broadcast %348 : vector<16x1xf32> to vector<16x64xf32>
    %350 = vector.extract_strided_slice %122 {offsets = [0, 15], sizes = [16, 1], strides = [1, 1]} : vector<16x16xf32> to vector<16x1xf32>
    %351 = vector.shape_cast %350 : vector<16x1xf32> to vector<16x1xf32>
    %352 = vector.broadcast %351 : vector<16x1xf32> to vector<16x64xf32>
    %353 = tpu.concatenate %349, %352 in 1 : vector<16x64xf32>, vector<16x64xf32> -> vector<16x128xf32>
    %354 = vector.extract_strided_slice %129 {offsets = [7, 0], sizes = [1, 128], strides = [1, 1]} : vector<8x128xf32> to vector<1x128xf32>
    %355 = vector.broadcast %354 : vector<1x128xf32> to vector<16x128xf32>
    %356 = arith.mulf %355, %353 : vector<16x128xf32>
    %c7_115 = arith.constant 7 : index
    %c0_116 = arith.constant 0 : index
    %c0_117 = arith.constant 0 : index
    %357 = vector.load %arg8[%c7_115, %c0_116, %c0_117] : memref<8x16x128xf32, #tpu.memory_space<vmem>>, vector<1x16x128xf32>
    %358 = vector.shape_cast %357 : vector<1x16x128xf32> to vector<16x128xf32>
    %359 = vector.shape_cast %356 : vector<16x128xf32> to vector<1x16x128xf32>
    tpu.vector_store %arg8[%c7_115, %c0_116, %c0_117], %359 {strides = array<i32>} : memref<8x16x128xf32, #tpu.memory_space<vmem>>, vector<1x16x128xf32>,
    %360 = vector.extract_strided_slice %123 {offsets = [0, 7], sizes = [16, 1], strides = [1, 1]} : vector<16x16xf32> to vector<16x1xf32>
    %361 = vector.shape_cast %360 : vector<16x1xf32> to vector<16x1xf32>
    %362 = vector.broadcast %361 : vector<16x1xf32> to vector<16x64xf32>
    %363 = vector.extract_strided_slice %123 {offsets = [0, 15], sizes = [16, 1], strides = [1, 1]} : vector<16x16xf32> to vector<16x1xf32>
    %364 = vector.shape_cast %363 : vector<16x1xf32> to vector<16x1xf32>
    %365 = vector.broadcast %364 : vector<16x1xf32> to vector<16x64xf32>
    %366 = tpu.concatenate %362, %365 in 1 : vector<16x64xf32>, vector<16x64xf32> -> vector<16x128xf32>
    %c7_118 = arith.constant 7 : index
    %c0_119 = arith.constant 0 : index
    %c0_120 = arith.constant 0 : index
    %367 = vector.load %arg9[%c7_118, %c0_119, %c0_120] : memref<8x16x128xf32, #tpu.memory_space<vmem>>, vector<1x16x128xf32>
    %368 = vector.shape_cast %367 : vector<1x16x128xf32> to vector<16x128xf32>
    %369 = vector.shape_cast %366 : vector<16x128xf32> to vector<1x16x128xf32>
    tpu.vector_store %arg9[%c7_118, %c0_119, %c0_120], %369 {strides = array<i32>} : memref<8x16x128xf32, #tpu.memory_space<vmem>>, vector<1x16x128xf32>,
    %cst_121 = arith.constant 0.000000e+00 : f32
    %370 = vector.broadcast %cst_121 : f32 to vector<16x128xf32>
    %c0_122 = arith.constant 0 : index
    %c0_123 = arith.constant 0 : index
    %c0_124 = arith.constant 0 : index
    %371 = vector.load %arg7[%c0_122, %c0_123, %c0_124] : memref<8x16x128xf32, #tpu.memory_space<vmem>>, vector<1x16x128xf32>
    %372 = vector.shape_cast %371 : vector<1x16x128xf32> to vector<16x128xf32>
    %373 = arith.mulf %372, %370 : vector<16x128xf32>
    %c0_125 = arith.constant 0 : index
    %c0_126 = arith.constant 0 : index
    %c0_127 = arith.constant 0 : index
    %374 = vector.load %arg8[%c0_125, %c0_126, %c0_127] : memref<8x16x128xf32, #tpu.memory_space<vmem>>, vector<1x16x128xf32>
    %375 = vector.shape_cast %374 : vector<1x16x128xf32> to vector<16x128xf32>
    %376 = arith.addf %373, %375 : vector<16x128xf32>
    %c0_128 = arith.constant 0 : index
    %c0_129 = arith.constant 0 : index
    %c0_130 = arith.constant 0 : index
    %377 = vector.load %arg9[%c0_128, %c0_129, %c0_130] : memref<8x16x128xf32, #tpu.memory_space<vmem>>, vector<1x16x128xf32>
    %378 = vector.shape_cast %377 : vector<1x16x128xf32> to vector<16x128xf32>
    %379 = arith.mulf %376, %378 : vector<16x128xf32>
    %cst_131 = arith.constant dense<0.000000e+00> : vector<128xf32>
    %380 = vector.multi_reduction <add>, %379, %cst_131 [0] : vector<16x128xf32> to vector<128xf32>
    %381 = vector.shape_cast %380 : vector<128xf32> to vector<1x128xf32>
    %c0_132 = arith.constant 0 : index
    %c0_133 = arith.constant 0 : index
    %382 = vector.load %arg10[%c0_132, %c0_133] : memref<8x128xf32, #tpu.memory_space<vmem>>, vector<1x128xf32>
    tpu.vector_store %arg10[%c0_132, %c0_133], %381 {strides = array<i32>} : memref<8x128xf32, #tpu.memory_space<vmem>>, vector<1x128xf32>,
    %c1_134 = arith.constant 1 : index
    %c0_135 = arith.constant 0 : index
    %c0_136 = arith.constant 0 : index
    %383 = vector.load %arg7[%c1_134, %c0_135, %c0_136] : memref<8x16x128xf32, #tpu.memory_space<vmem>>, vector<1x16x128xf32>
    %384 = vector.shape_cast %383 : vector<1x16x128xf32> to vector<16x128xf32>
    %385 = arith.mulf %384, %376 : vector<16x128xf32>
    %c1_137 = arith.constant 1 : index
    %c0_138 = arith.constant 0 : index
    %c0_139 = arith.constant 0 : index
    %386 = vector.load %arg8[%c1_137, %c0_138, %c0_139] : memref<8x16x128xf32, #tpu.memory_space<vmem>>, vector<1x16x128xf32>
    %387 = vector.shape_cast %386 : vector<1x16x128xf32> to vector<16x128xf32>
    %388 = arith.addf %385, %387 : vector<16x128xf32>
    %c1_140 = arith.constant 1 : index
    %c0_141 = arith.constant 0 : index
    %c0_142 = arith.constant 0 : index
    %389 = vector.load %arg9[%c1_140, %c0_141, %c0_142] : memref<8x16x128xf32, #tpu.memory_space<vmem>>, vector<1x16x128xf32>
    %390 = vector.shape_cast %389 : vector<1x16x128xf32> to vector<16x128xf32>
    %391 = arith.mulf %388, %390 : vector<16x128xf32>
    %cst_143 = arith.constant dense<0.000000e+00> : vector<128xf32>
    %392 = vector.multi_reduction <add>, %391, %cst_143 [0] : vector<16x128xf32> to vector<128xf32>
    %393 = vector.shape_cast %392 : vector<128xf32> to vector<1x128xf32>
    %c1_144 = arith.constant 1 : index
    %c0_145 = arith.constant 0 : index
    %394 = vector.load %arg10[%c1_144, %c0_145] : memref<8x128xf32, #tpu.memory_space<vmem>>, vector<1x128xf32>
    tpu.vector_store %arg10[%c1_144, %c0_145], %393 {strides = array<i32>} : memref<8x128xf32, #tpu.memory_space<vmem>>, vector<1x128xf32>,
    %c2_146 = arith.constant 2 : index
    %c0_147 = arith.constant 0 : index
    %c0_148 = arith.constant 0 : index
    %395 = vector.load %arg7[%c2_146, %c0_147, %c0_148] : memref<8x16x128xf32, #tpu.memory_space<vmem>>, vector<1x16x128xf32>
    %396 = vector.shape_cast %395 : vector<1x16x128xf32> to vector<16x128xf32>
    %397 = arith.mulf %396, %388 : vector<16x128xf32>
    %c2_149 = arith.constant 2 : index
    %c0_150 = arith.constant 0 : index
    %c0_151 = arith.constant 0 : index
    %398 = vector.load %arg8[%c2_149, %c0_150, %c0_151] : memref<8x16x128xf32, #tpu.memory_space<vmem>>, vector<1x16x128xf32>
    %399 = vector.shape_cast %398 : vector<1x16x128xf32> to vector<16x128xf32>
    %400 = arith.addf %397, %399 : vector<16x128xf32>
    %c2_152 = arith.constant 2 : index
    %c0_153 = arith.constant 0 : index
    %c0_154 = arith.constant 0 : index
    %401 = vector.load %arg9[%c2_152, %c0_153, %c0_154] : memref<8x16x128xf32, #tpu.memory_space<vmem>>, vector<1x16x128xf32>
    %402 = vector.shape_cast %401 : vector<1x16x128xf32> to vector<16x128xf32>
    %403 = arith.mulf %400, %402 : vector<16x128xf32>
    %cst_155 = arith.constant dense<0.000000e+00> : vector<128xf32>
    %404 = vector.multi_reduction <add>, %403, %cst_155 [0] : vector<16x128xf32> to vector<128xf32>
    %405 = vector.shape_cast %404 : vector<128xf32> to vector<1x128xf32>
    %c2_156 = arith.constant 2 : index
    %c0_157 = arith.constant 0 : index
    %406 = vector.load %arg10[%c2_156, %c0_157] : memref<8x128xf32, #tpu.memory_space<vmem>>, vector<1x128xf32>
    tpu.vector_store %arg10[%c2_156, %c0_157], %405 {strides = array<i32>} : memref<8x128xf32, #tpu.memory_space<vmem>>, vector<1x128xf32>,
    %c3_158 = arith.constant 3 : index
    %c0_159 = arith.constant 0 : index
    %c0_160 = arith.constant 0 : index
    %407 = vector.load %arg7[%c3_158, %c0_159, %c0_160] : memref<8x16x128xf32, #tpu.memory_space<vmem>>, vector<1x16x128xf32>
    %408 = vector.shape_cast %407 : vector<1x16x128xf32> to vector<16x128xf32>
    %409 = arith.mulf %408, %400 : vector<16x128xf32>
    %c3_161 = arith.constant 3 : index
    %c0_162 = arith.constant 0 : index
    %c0_163 = arith.constant 0 : index
    %410 = vector.load %arg8[%c3_161, %c0_162, %c0_163] : memref<8x16x128xf32, #tpu.memory_space<vmem>>, vector<1x16x128xf32>
    %411 = vector.shape_cast %410 : vector<1x16x128xf32> to vector<16x128xf32>
    %412 = arith.addf %409, %411 : vector<16x128xf32>
    %c3_164 = arith.constant 3 : index
    %c0_165 = arith.constant 0 : index
    %c0_166 = arith.constant 0 : index
    %413 = vector.load %arg9[%c3_164, %c0_165, %c0_166] : memref<8x16x128xf32, #tpu.memory_space<vmem>>, vector<1x16x128xf32>
    %414 = vector.shape_cast %413 : vector<1x16x128xf32> to vector<16x128xf32>
    %415 = arith.mulf %412, %414 : vector<16x128xf32>
    %cst_167 = arith.constant dense<0.000000e+00> : vector<128xf32>
    %416 = vector.multi_reduction <add>, %415, %cst_167 [0] : vector<16x128xf32> to vector<128xf32>
    %417 = vector.shape_cast %416 : vector<128xf32> to vector<1x128xf32>
    %c3_168 = arith.constant 3 : index
    %c0_169 = arith.constant 0 : index
    %418 = vector.load %arg10[%c3_168, %c0_169] : memref<8x128xf32, #tpu.memory_space<vmem>>, vector<1x128xf32>
    tpu.vector_store %arg10[%c3_168, %c0_169], %417 {strides = array<i32>} : memref<8x128xf32, #tpu.memory_space<vmem>>, vector<1x128xf32>,
    %c4_170 = arith.constant 4 : index
    %c0_171 = arith.constant 0 : index
    %c0_172 = arith.constant 0 : index
    %419 = vector.load %arg7[%c4_170, %c0_171, %c0_172] : memref<8x16x128xf32, #tpu.memory_space<vmem>>, vector<1x16x128xf32>
    %420 = vector.shape_cast %419 : vector<1x16x128xf32> to vector<16x128xf32>
    %421 = arith.mulf %420, %412 : vector<16x128xf32>
    %c4_173 = arith.constant 4 : index
    %c0_174 = arith.constant 0 : index
    %c0_175 = arith.constant 0 : index
    %422 = vector.load %arg8[%c4_173, %c0_174, %c0_175] : memref<8x16x128xf32, #tpu.memory_space<vmem>>, vector<1x16x128xf32>
    %423 = vector.shape_cast %422 : vector<1x16x128xf32> to vector<16x128xf32>
    %424 = arith.addf %421, %423 : vector<16x128xf32>
    %c4_176 = arith.constant 4 : index
    %c0_177 = arith.constant 0 : index
    %c0_178 = arith.constant 0 : index
    %425 = vector.load %arg9[%c4_176, %c0_177, %c0_178] : memref<8x16x128xf32, #tpu.memory_space<vmem>>, vector<1x16x128xf32>
    %426 = vector.shape_cast %425 : vector<1x16x128xf32> to vector<16x128xf32>
    %427 = arith.mulf %424, %426 : vector<16x128xf32>
    %cst_179 = arith.constant dense<0.000000e+00> : vector<128xf32>
    %428 = vector.multi_reduction <add>, %427, %cst_179 [0] : vector<16x128xf32> to vector<128xf32>
    %429 = vector.shape_cast %428 : vector<128xf32> to vector<1x128xf32>
    %c4_180 = arith.constant 4 : index
    %c0_181 = arith.constant 0 : index
    %430 = vector.load %arg10[%c4_180, %c0_181] : memref<8x128xf32, #tpu.memory_space<vmem>>, vector<1x128xf32>
    tpu.vector_store %arg10[%c4_180, %c0_181], %429 {strides = array<i32>} : memref<8x128xf32, #tpu.memory_space<vmem>>, vector<1x128xf32>,
    %c5_182 = arith.constant 5 : index
    %c0_183 = arith.constant 0 : index
    %c0_184 = arith.constant 0 : index
    %431 = vector.load %arg7[%c5_182, %c0_183, %c0_184] : memref<8x16x128xf32, #tpu.memory_space<vmem>>, vector<1x16x128xf32>
    %432 = vector.shape_cast %431 : vector<1x16x128xf32> to vector<16x128xf32>
    %433 = arith.mulf %432, %424 : vector<16x128xf32>
    %c5_185 = arith.constant 5 : index
    %c0_186 = arith.constant 0 : index
    %c0_187 = arith.constant 0 : index
    %434 = vector.load %arg8[%c5_185, %c0_186, %c0_187] : memref<8x16x128xf32, #tpu.memory_space<vmem>>, vector<1x16x128xf32>
    %435 = vector.shape_cast %434 : vector<1x16x128xf32> to vector<16x128xf32>
    %436 = arith.addf %433, %435 : vector<16x128xf32>
    %c5_188 = arith.constant 5 : index
    %c0_189 = arith.constant 0 : index
    %c0_190 = arith.constant 0 : index
    %437 = vector.load %arg9[%c5_188, %c0_189, %c0_190] : memref<8x16x128xf32, #tpu.memory_space<vmem>>, vector<1x16x128xf32>
    %438 = vector.shape_cast %437 : vector<1x16x128xf32> to vector<16x128xf32>
    %439 = arith.mulf %436, %438 : vector<16x128xf32>
    %cst_191 = arith.constant dense<0.000000e+00> : vector<128xf32>
    %440 = vector.multi_reduction <add>, %439, %cst_191 [0] : vector<16x128xf32> to vector<128xf32>
    %441 = vector.shape_cast %440 : vector<128xf32> to vector<1x128xf32>
    %c5_192 = arith.constant 5 : index
    %c0_193 = arith.constant 0 : index
    %442 = vector.load %arg10[%c5_192, %c0_193] : memref<8x128xf32, #tpu.memory_space<vmem>>, vector<1x128xf32>
    tpu.vector_store %arg10[%c5_192, %c0_193], %441 {strides = array<i32>} : memref<8x128xf32, #tpu.memory_space<vmem>>, vector<1x128xf32>,
    %c6_194 = arith.constant 6 : index
    %c0_195 = arith.constant 0 : index
    %c0_196 = arith.constant 0 : index
    %443 = vector.load %arg7[%c6_194, %c0_195, %c0_196] : memref<8x16x128xf32, #tpu.memory_space<vmem>>, vector<1x16x128xf32>
    %444 = vector.shape_cast %443 : vector<1x16x128xf32> to vector<16x128xf32>
    %445 = arith.mulf %444, %436 : vector<16x128xf32>
    %c6_197 = arith.constant 6 : index
    %c0_198 = arith.constant 0 : index
    %c0_199 = arith.constant 0 : index
    %446 = vector.load %arg8[%c6_197, %c0_198, %c0_199] : memref<8x16x128xf32, #tpu.memory_space<vmem>>, vector<1x16x128xf32>
    %447 = vector.shape_cast %446 : vector<1x16x128xf32> to vector<16x128xf32>
    %448 = arith.addf %445, %447 : vector<16x128xf32>
    %c6_200 = arith.constant 6 : index
    %c0_201 = arith.constant 0 : index
    %c0_202 = arith.constant 0 : index
    %449 = vector.load %arg9[%c6_200, %c0_201, %c0_202] : memref<8x16x128xf32, #tpu.memory_space<vmem>>, vector<1x16x128xf32>
    %450 = vector.shape_cast %449 : vector<1x16x128xf32> to vector<16x128xf32>
    %451 = arith.mulf %448, %450 : vector<16x128xf32>
    %cst_203 = arith.constant dense<0.000000e+00> : vector<128xf32>
    %452 = vector.multi_reduction <add>, %451, %cst_203 [0] : vector<16x128xf32> to vector<128xf32>
    %453 = vector.shape_cast %452 : vector<128xf32> to vector<1x128xf32>
    %c6_204 = arith.constant 6 : index
    %c0_205 = arith.constant 0 : index
    %454 = vector.load %arg10[%c6_204, %c0_205] : memref<8x128xf32, #tpu.memory_space<vmem>>, vector<1x128xf32>
    tpu.vector_store %arg10[%c6_204, %c0_205], %453 {strides = array<i32>} : memref<8x128xf32, #tpu.memory_space<vmem>>, vector<1x128xf32>,
    %c7_206 = arith.constant 7 : index
    %c0_207 = arith.constant 0 : index
    %c0_208 = arith.constant 0 : index
    %455 = vector.load %arg7[%c7_206, %c0_207, %c0_208] : memref<8x16x128xf32, #tpu.memory_space<vmem>>, vector<1x16x128xf32>
    %456 = vector.shape_cast %455 : vector<1x16x128xf32> to vector<16x128xf32>
    %457 = arith.mulf %456, %448 : vector<16x128xf32>
    %c7_209 = arith.constant 7 : index
    %c0_210 = arith.constant 0 : index
    %c0_211 = arith.constant 0 : index
    %458 = vector.load %arg8[%c7_209, %c0_210, %c0_211] : memref<8x16x128xf32, #tpu.memory_space<vmem>>, vector<1x16x128xf32>
    %459 = vector.shape_cast %458 : vector<1x16x128xf32> to vector<16x128xf32>
    %460 = arith.addf %457, %459 : vector<16x128xf32>
    %c7_212 = arith.constant 7 : index
    %c0_213 = arith.constant 0 : index
    %c0_214 = arith.constant 0 : index
    %461 = vector.load %arg9[%c7_212, %c0_213, %c0_214] : memref<8x16x128xf32, #tpu.memory_space<vmem>>, vector<1x16x128xf32>
    %462 = vector.shape_cast %461 : vector<1x16x128xf32> to vector<16x128xf32>
    %463 = arith.mulf %460, %462 : vector<16x128xf32>
    %cst_215 = arith.constant dense<0.000000e+00> : vector<128xf32>
    %464 = vector.multi_reduction <add>, %463, %cst_215 [0] : vector<16x128xf32> to vector<128xf32>
    %465 = vector.shape_cast %464 : vector<128xf32> to vector<1x128xf32>
    %c7_216 = arith.constant 7 : index
    %c0_217 = arith.constant 0 : index
    %466 = vector.load %arg10[%c7_216, %c0_217] : memref<8x128xf32, #tpu.memory_space<vmem>>, vector<1x128xf32>
    tpu.vector_store %arg10[%c7_216, %c0_217], %465 {strides = array<i32>} : memref<8x128xf32, #tpu.memory_space<vmem>>, vector<1x128xf32>,
    %c0_218 = arith.constant 0 : index
    %c0_219 = arith.constant 0 : index
    %467 = vector.load %arg10[%c0_218, %c0_219] : memref<8x128xf32, #tpu.memory_space<vmem>>, vector<8x128xf32>
    %468 = vector.extract_strided_slice %467 {offsets = [0, 0], sizes = [8, 64], strides = [1, 1]} : vector<8x128xf32> to vector<8x64xf32>
    %469 = vector.extract_strided_slice %467 {offsets = [0, 64], sizes = [8, 64], strides = [1, 1]} : vector<8x128xf32> to vector<8x64xf32>
    %470 = tpu.concatenate %468, %469 in 0 : vector<8x64xf32>, vector<8x64xf32> -> vector<16x64xf32>
    %471 = vector.broadcast %39 : vector<1x64xf32> to vector<16x64xf32>
    %472 = arith.mulf %93, %471 : vector<16x64xf32>
    %473 = arith.addf %470, %472 : vector<16x64xf32>
    %cst_220 = arith.constant 0.000000e+00 : f32
    %474 = vector.broadcast %cst_220 : f32 to vector<16x64xf32>
    %475 = arith.subf %474, %59 : vector<16x64xf32>
    %476 = math.exp %475 : vector<16x64xf32>
    %cst_221 = arith.constant 1.000000e+00 : f32
    %477 = vector.broadcast %cst_221 : f32 to vector<16x64xf32>
    %478 = arith.addf %477, %476 : vector<16x64xf32>
    %cst_222 = arith.constant 1.000000e+00 : f32
    %479 = vector.broadcast %cst_222 : f32 to vector<16x64xf32>
    %480 = arith.divf %479, %478 : vector<16x64xf32>
    %481 = arith.mulf %59, %480 : vector<16x64xf32>
    %482 = arith.mulf %473, %481 : vector<16x64xf32>
    %cst_223 = arith.constant dense<0.000000e+00> : vector<16x32xf32>
    %483 = tpu.matmul %482, %97, %cst_223 {dimension_numbers = #tpu.dot_dimension_numbers<[1], [0], [0], [1], [0, 0, 1, 1], [], []>} : vector<16x64xf32>, vector<64x32xf32>, vector<16x32xf32> -> vector<16x32xf32>
    %c1_224 = arith.constant 1 : index
    %c0_225 = arith.constant 0 : index
    %c0_226 = arith.constant 0 : index
    %484 = vector.load %arg2[%c1_224, %c0_225, %c0_226] : memref<2x8x128xf32, #tpu.memory_space<vmem>>, vector<1x1x32xf32>
    %485 = vector.shape_cast %484 : vector<1x1x32xf32> to vector<1x32xf32>
    %c1_227 = arith.constant 1 : index
    %c1_228 = arith.constant 1 : index
    %c0_229 = arith.constant 0 : index
    %486 = vector.load %arg2[%c1_227, %c1_228, %c0_229] : memref<2x8x128xf32, #tpu.memory_space<vmem>>, vector<1x1x64xf32>
    %487 = vector.shape_cast %486 : vector<1x1x64xf32> to vector<1x64xf32>
    %c1_230 = arith.constant 1 : index
    %c2_231 = arith.constant 2 : index
    %c0_232 = arith.constant 0 : index
    %488 = vector.load %arg2[%c1_230, %c2_231, %c0_232] : memref<2x8x128xf32, #tpu.memory_space<vmem>>, vector<1x1x64xf32>
    %489 = vector.shape_cast %488 : vector<1x1x64xf32> to vector<1x64xf32>
    %c1_233 = arith.constant 1 : index
    %c3_234 = arith.constant 3 : index
    %c0_235 = arith.constant 0 : index
    %490 = vector.load %arg2[%c1_233, %c3_234, %c0_235] : memref<2x8x128xf32, #tpu.memory_space<vmem>>, vector<1x1x64xf32>
    %491 = vector.shape_cast %490 : vector<1x1x64xf32> to vector<1x64xf32>
    %c1_236 = arith.constant 1 : index
    %c4_237 = arith.constant 4 : index
    %c0_238 = arith.constant 0 : index
    %492 = vector.load %arg2[%c1_236, %c4_237, %c0_238] : memref<2x8x128xf32, #tpu.memory_space<vmem>>, vector<1x4x64xf32>
    %493 = vector.shape_cast %492 : vector<1x4x64xf32> to vector<4x64xf32>
    %494 = arith.addf %483, %42 : vector<16x32xf32>
    %495 = arith.mulf %494, %494 : vector<16x32xf32>
    %cst_239 = arith.constant dense<0.000000e+00> : vector<16xf32>
    %496 = vector.multi_reduction <add>, %495, %cst_239 [1] : vector<16x32xf32> to vector<16xf32>
    %497 = vector.shape_cast %496 : vector<16xf32> to vector<16x1xf32>
    %cst_240 = arith.constant 3.200000e+01 : f32
    %498 = vector.broadcast %cst_240 : f32 to vector<16x1xf32>
    %499 = arith.divf %497, %498 : vector<16x1xf32>
    %cst_241 = arith.constant 9.99999974E-6 : f32
    %500 = vector.broadcast %cst_241 : f32 to vector<16x1xf32>
    %501 = arith.addf %499, %500 : vector<16x1xf32>
    %502 = math.rsqrt %501 : vector<16x1xf32>
    %503 = vector.broadcast %502 : vector<16x1xf32> to vector<16x32xf32>
    %504 = arith.mulf %494, %503 : vector<16x32xf32>
    %505 = vector.broadcast %485 : vector<1x32xf32> to vector<16x32xf32>
    %506 = arith.mulf %504, %505 : vector<16x32xf32>
    %c1_242 = arith.constant 1 : index
    %c0_243 = arith.constant 0 : index
    %c0_244 = arith.constant 0 : index
    %507 = vector.load %arg3[%c1_242, %c0_243, %c0_244] : memref<2x32x128xf32, #tpu.memory_space<vmem>>, vector<1x32x128xf32>
    %508 = vector.shape_cast %507 : vector<1x32x128xf32> to vector<32x128xf32>
    %cst_245 = arith.constant dense<0.000000e+00> : vector<16x128xf32>
    %509 = tpu.matmul %506, %508, %cst_245 {dimension_numbers = #tpu.dot_dimension_numbers<[1], [0], [0], [1], [0, 0, 1, 1], [], []>} : vector<16x32xf32>, vector<32x128xf32>, vector<16x128xf32> -> vector<16x128xf32>
    %510 = vector.extract_strided_slice %509 {offsets = [0, 0], sizes = [16, 64], strides = [1, 1]} : vector<16x128xf32> to vector<16x64xf32>
    %511 = vector.extract_strided_slice %509 {offsets = [0, 64], sizes = [16, 64], strides = [1, 1]} : vector<16x128xf32> to vector<16x64xf32>
    %512 = vector.extract_strided_slice %493 {offsets = [3, 0], sizes = [1, 64], strides = [1, 1]} : vector<4x64xf32> to vector<1x64xf32>
    %513 = vector.broadcast %512 : vector<1x64xf32> to vector<16x64xf32>
    %514 = arith.mulf %510, %513 : vector<16x64xf32>
    %515 = vector.broadcast %487 : vector<1x64xf32> to vector<16x64xf32>
    %516 = arith.addf %515, %514 : vector<16x64xf32>
    %c1_i32_246 = arith.constant 1 : i32
    %517 = tpu.dynamic_rotate %510 by %c1_i32_246 dim 0 : vector<16x64xf32>, i32 -> vector<16x64xf32>
    %cst_247 = arith.constant 0.000000e+00 : f32
    %518 = vector.broadcast %cst_247 : f32 to vector<16x64xf32>
    %519 = arith.select %27, %517, %518 : vector<16x64xi1>, vector<16x64xf32>
    %520 = vector.extract_strided_slice %493 {offsets = [2, 0], sizes = [1, 64], strides = [1, 1]} : vector<4x64xf32> to vector<1x64xf32>
    %521 = vector.broadcast %520 : vector<1x64xf32> to vector<16x64xf32>
    %522 = arith.mulf %519, %521 : vector<16x64xf32>
    %523 = arith.addf %516, %522 : vector<16x64xf32>
    %c2_i32_248 = arith.constant 2 : i32
    %524 = tpu.dynamic_rotate %510 by %c2_i32_248 dim 0 : vector<16x64xf32>, i32 -> vector<16x64xf32>
    %cst_249 = arith.constant 0.000000e+00 : f32
    %525 = vector.broadcast %cst_249 : f32 to vector<16x64xf32>
    %526 = arith.select %29, %524, %525 : vector<16x64xi1>, vector<16x64xf32>
    %527 = vector.extract_strided_slice %493 {offsets = [1, 0], sizes = [1, 64], strides = [1, 1]} : vector<4x64xf32> to vector<1x64xf32>
    %528 = vector.broadcast %527 : vector<1x64xf32> to vector<16x64xf32>
    %529 = arith.mulf %526, %528 : vector<16x64xf32>
    %530 = arith.addf %523, %529 : vector<16x64xf32>
    %c3_i32_250 = arith.constant 3 : i32
    %531 = tpu.dynamic_rotate %510 by %c3_i32_250 dim 0 : vector<16x64xf32>, i32 -> vector<16x64xf32>
    %cst_251 = arith.constant 0.000000e+00 : f32
    %532 = vector.broadcast %cst_251 : f32 to vector<16x64xf32>
    %533 = arith.select %31, %531, %532 : vector<16x64xi1>, vector<16x64xf32>
    %534 = vector.extract_strided_slice %493 {offsets = [0, 0], sizes = [1, 64], strides = [1, 1]} : vector<4x64xf32> to vector<1x64xf32>
    %535 = vector.broadcast %534 : vector<1x64xf32> to vector<16x64xf32>
    %536 = arith.mulf %533, %535 : vector<16x64xf32>
    %537 = arith.addf %530, %536 : vector<16x64xf32>
    %cst_252 = arith.constant 0.000000e+00 : f32
    %538 = vector.broadcast %cst_252 : f32 to vector<16x64xf32>
    %539 = arith.subf %538, %537 : vector<16x64xf32>
    %540 = math.exp %539 : vector<16x64xf32>
    %cst_253 = arith.constant 1.000000e+00 : f32
    %541 = vector.broadcast %cst_253 : f32 to vector<16x64xf32>
    %542 = arith.addf %541, %540 : vector<16x64xf32>
    %cst_254 = arith.constant 1.000000e+00 : f32
    %543 = vector.broadcast %cst_254 : f32 to vector<16x64xf32>
    %544 = arith.divf %543, %542 : vector<16x64xf32>
    %545 = arith.mulf %537, %544 : vector<16x64xf32>
    %c1_255 = arith.constant 1 : index
    %c0_256 = arith.constant 0 : index
    %c0_257 = arith.constant 0 : index
    %546 = vector.load %arg4[%c1_255, %c0_256, %c0_257] : memref<2x64x128xf32, #tpu.memory_space<vmem>>, vector<1x64x64xf32>
    %547 = vector.shape_cast %546 : vector<1x64x64xf32> to vector<64x64xf32>
    %c1_258 = arith.constant 1 : index
    %c0_259 = arith.constant 0 : index
    %c64_260 = arith.constant 64 : index
    %548 = vector.load %arg4[%c1_258, %c0_259, %c64_260] : memref<2x64x128xf32, #tpu.memory_space<vmem>>, vector<1x64x32xf32>
    %549 = vector.shape_cast %548 : vector<1x64x32xf32> to vector<64x32xf32>
    %c1_261 = arith.constant 1 : index
    %c0_262 = arith.constant 0 : index
    %c0_263 = arith.constant 0 : index
    %550 = vector.load %arg5[%c1_261, %c0_262, %c0_263] : memref<2x48x128xf32, #tpu.memory_space<vmem>>, vector<1x32x64xf32>
    %551 = vector.shape_cast %550 : vector<1x32x64xf32> to vector<32x64xf32>
    %c1_264 = arith.constant 1 : index
    %c32_265 = arith.constant 32 : index
    %c0_266 = arith.constant 0 : index
    %552 = vector.load %arg5[%c1_264, %c32_265, %c0_266] : memref<2x48x128xf32, #tpu.memory_space<vmem>>, vector<1x16x128xf32>
    %553 = vector.shape_cast %552 : vector<1x16x128xf32> to vector<16x128xf32>
    %cst_267 = arith.constant dense<0.000000e+00> : vector<16x64xf32>
    %554 = tpu.matmul %545, %547, %cst_267 {dimension_numbers = #tpu.dot_dimension_numbers<[1], [0], [0], [1], [0, 0, 1, 1], [], []>} : vector<16x64xf32>, vector<64x64xf32>, vector<16x64xf32> -> vector<16x64xf32>
    %555 = vector.broadcast %489 : vector<1x64xf32> to vector<16x64xf32>
    %556 = arith.addf %554, %555 : vector<16x64xf32>
    %cst_268 = arith.constant -2.000000e+01 : f32
    %cst_269 = arith.constant 2.000000e+01 : f32
    %557 = vector.broadcast %cst_268 : f32 to vector<16x64xf32>
    %558 = arith.maximumf %557, %556 : vector<16x64xf32>
    %559 = vector.broadcast %cst_269 : f32 to vector<16x64xf32>
    %560 = arith.minimumf %559, %558 : vector<16x64xf32>
    %561 = math.exp %560 : vector<16x64xf32>
    %cst_270 = arith.constant 1.000000e+00 : f32
    %562 = vector.broadcast %cst_270 : f32 to vector<16x64xf32>
    %563 = arith.addf %562, %561 : vector<16x64xf32>
    %564 = math.log %563 : vector<16x64xf32>
    %cst_271 = arith.constant 2.000000e+01 : f32
    %565 = vector.broadcast %cst_271 : f32 to vector<16x64xf32>
    %566 = arith.cmpf ogt, %556, %565 : vector<16x64xf32>
    %cst_272 = arith.constant -2.000000e+01 : f32
    %567 = vector.broadcast %cst_272 : f32 to vector<16x64xf32>
    %568 = arith.cmpf olt, %556, %567 : vector<16x64xf32>
    %569 = math.exp %556 : vector<16x64xf32>
    %570 = arith.select %568, %569, %564 : vector<16x64xi1>, vector<16x64xf32>
    %571 = arith.select %566, %556, %570 : vector<16x64xi1>, vector<16x64xf32>
    %572 = arith.mulf %571, %545 : vector<16x64xf32>
    %cst_273 = arith.constant dense<0.000000e+00> : vector<32x16xf32>
    %573 = tpu.matmul %551, %545, %cst_273 {dimension_numbers = #tpu.dot_dimension_numbers<[1], [1], [0], [0], [0, 0, 1, 0], [], []>} : vector<32x64xf32>, vector<16x64xf32>, vector<32x16xf32> -> vector<32x16xf32>
    %574 = vector.extract_strided_slice %573 {offsets = [0, 0], sizes = [16, 16], strides = [1, 1]} : vector<32x16xf32> to vector<16x16xf32>
    %575 = vector.extract_strided_slice %573 {offsets = [16, 0], sizes = [16, 16], strides = [1, 1]} : vector<32x16xf32> to vector<16x16xf32>
    %576 = vector.extract_strided_slice %571 {offsets = [0, 0], sizes = [8, 64], strides = [1, 1]} : vector<16x64xf32> to vector<8x64xf32>
    %577 = vector.extract_strided_slice %571 {offsets = [8, 0], sizes = [8, 64], strides = [1, 1]} : vector<16x64xf32> to vector<8x64xf32>
    %578 = tpu.concatenate %576, %577 in 1 : vector<8x64xf32>, vector<8x64xf32> -> vector<8x128xf32>
    %579 = vector.extract_strided_slice %572 {offsets = [0, 0], sizes = [8, 64], strides = [1, 1]} : vector<16x64xf32> to vector<8x64xf32>
    %580 = vector.extract_strided_slice %572 {offsets = [8, 0], sizes = [8, 64], strides = [1, 1]} : vector<16x64xf32> to vector<8x64xf32>
    %581 = tpu.concatenate %579, %580 in 1 : vector<8x64xf32>, vector<8x64xf32> -> vector<8x128xf32>
    %582 = vector.extract_strided_slice %578 {offsets = [0, 0], sizes = [1, 128], strides = [1, 1]} : vector<8x128xf32> to vector<1x128xf32>
    %583 = vector.broadcast %582 : vector<1x128xf32> to vector<16x128xf32>
    %584 = arith.mulf %583, %553 : vector<16x128xf32>
    %585 = math.exp %584 : vector<16x128xf32>
    %c0_274 = arith.constant 0 : index
    %c0_275 = arith.constant 0 : index
    %c0_276 = arith.constant 0 : index
    %586 = vector.load %arg7[%c0_274, %c0_275, %c0_276] : memref<8x16x128xf32, #tpu.memory_space<vmem>>, vector<1x16x128xf32>
    %587 = vector.shape_cast %586 : vector<1x16x128xf32> to vector<16x128xf32>
    %588 = vector.shape_cast %585 : vector<16x128xf32> to vector<1x16x128xf32>
    tpu.vector_store %arg7[%c0_274, %c0_275, %c0_276], %588 {strides = array<i32>} : memref<8x16x128xf32, #tpu.memory_space<vmem>>, vector<1x16x128xf32>,
    %589 = vector.extract_strided_slice %574 {offsets = [0, 0], sizes = [16, 1], strides = [1, 1]} : vector<16x16xf32> to vector<16x1xf32>
    %590 = vector.shape_cast %589 : vector<16x1xf32> to vector<16x1xf32>
    %591 = vector.broadcast %590 : vector<16x1xf32> to vector<16x64xf32>
    %592 = vector.extract_strided_slice %574 {offsets = [0, 8], sizes = [16, 1], strides = [1, 1]} : vector<16x16xf32> to vector<16x1xf32>
    %593 = vector.shape_cast %592 : vector<16x1xf32> to vector<16x1xf32>
    %594 = vector.broadcast %593 : vector<16x1xf32> to vector<16x64xf32>
    %595 = tpu.concatenate %591, %594 in 1 : vector<16x64xf32>, vector<16x64xf32> -> vector<16x128xf32>
    %596 = vector.extract_strided_slice %581 {offsets = [0, 0], sizes = [1, 128], strides = [1, 1]} : vector<8x128xf32> to vector<1x128xf32>
    %597 = vector.broadcast %596 : vector<1x128xf32> to vector<16x128xf32>
    %598 = arith.mulf %597, %595 : vector<16x128xf32>
    %c0_277 = arith.constant 0 : index
    %c0_278 = arith.constant 0 : index
    %c0_279 = arith.constant 0 : index
    %599 = vector.load %arg8[%c0_277, %c0_278, %c0_279] : memref<8x16x128xf32, #tpu.memory_space<vmem>>, vector<1x16x128xf32>
    %600 = vector.shape_cast %599 : vector<1x16x128xf32> to vector<16x128xf32>
    %601 = vector.shape_cast %598 : vector<16x128xf32> to vector<1x16x128xf32>
    tpu.vector_store %arg8[%c0_277, %c0_278, %c0_279], %601 {strides = array<i32>} : memref<8x16x128xf32, #tpu.memory_space<vmem>>, vector<1x16x128xf32>,
    %602 = vector.extract_strided_slice %575 {offsets = [0, 0], sizes = [16, 1], strides = [1, 1]} : vector<16x16xf32> to vector<16x1xf32>
    %603 = vector.shape_cast %602 : vector<16x1xf32> to vector<16x1xf32>
    %604 = vector.broadcast %603 : vector<16x1xf32> to vector<16x64xf32>
    %605 = vector.extract_strided_slice %575 {offsets = [0, 8], sizes = [16, 1], strides = [1, 1]} : vector<16x16xf32> to vector<16x1xf32>
    %606 = vector.shape_cast %605 : vector<16x1xf32> to vector<16x1xf32>
    %607 = vector.broadcast %606 : vector<16x1xf32> to vector<16x64xf32>
    %608 = tpu.concatenate %604, %607 in 1 : vector<16x64xf32>, vector<16x64xf32> -> vector<16x128xf32>
    %c0_280 = arith.constant 0 : index
    %c0_281 = arith.constant 0 : index
    %c0_282 = arith.constant 0 : index
    %609 = vector.load %arg9[%c0_280, %c0_281, %c0_282] : memref<8x16x128xf32, #tpu.memory_space<vmem>>, vector<1x16x128xf32>
    %610 = vector.shape_cast %609 : vector<1x16x128xf32> to vector<16x128xf32>
    %611 = vector.shape_cast %608 : vector<16x128xf32> to vector<1x16x128xf32>
    tpu.vector_store %arg9[%c0_280, %c0_281, %c0_282], %611 {strides = array<i32>} : memref<8x16x128xf32, #tpu.memory_space<vmem>>, vector<1x16x128xf32>,
    %612 = vector.extract_strided_slice %578 {offsets = [1, 0], sizes = [1, 128], strides = [1, 1]} : vector<8x128xf32> to vector<1x128xf32>
    %613 = vector.broadcast %612 : vector<1x128xf32> to vector<16x128xf32>
    %614 = arith.mulf %613, %553 : vector<16x128xf32>
    %615 = math.exp %614 : vector<16x128xf32>
    %c1_283 = arith.constant 1 : index
    %c0_284 = arith.constant 0 : index
    %c0_285 = arith.constant 0 : index
    %616 = vector.load %arg7[%c1_283, %c0_284, %c0_285] : memref<8x16x128xf32, #tpu.memory_space<vmem>>, vector<1x16x128xf32>
    %617 = vector.shape_cast %616 : vector<1x16x128xf32> to vector<16x128xf32>
    %618 = vector.shape_cast %615 : vector<16x128xf32> to vector<1x16x128xf32>
    tpu.vector_store %arg7[%c1_283, %c0_284, %c0_285], %618 {strides = array<i32>} : memref<8x16x128xf32, #tpu.memory_space<vmem>>, vector<1x16x128xf32>,
    %619 = vector.extract_strided_slice %574 {offsets = [0, 1], sizes = [16, 1], strides = [1, 1]} : vector<16x16xf32> to vector<16x1xf32>
    %620 = vector.shape_cast %619 : vector<16x1xf32> to vector<16x1xf32>
    %621 = vector.broadcast %620 : vector<16x1xf32> to vector<16x64xf32>
    %622 = vector.extract_strided_slice %574 {offsets = [0, 9], sizes = [16, 1], strides = [1, 1]} : vector<16x16xf32> to vector<16x1xf32>
    %623 = vector.shape_cast %622 : vector<16x1xf32> to vector<16x1xf32>
    %624 = vector.broadcast %623 : vector<16x1xf32> to vector<16x64xf32>
    %625 = tpu.concatenate %621, %624 in 1 : vector<16x64xf32>, vector<16x64xf32> -> vector<16x128xf32>
    %626 = vector.extract_strided_slice %581 {offsets = [1, 0], sizes = [1, 128], strides = [1, 1]} : vector<8x128xf32> to vector<1x128xf32>
    %627 = vector.broadcast %626 : vector<1x128xf32> to vector<16x128xf32>
    %628 = arith.mulf %627, %625 : vector<16x128xf32>
    %c1_286 = arith.constant 1 : index
    %c0_287 = arith.constant 0 : index
    %c0_288 = arith.constant 0 : index
    %629 = vector.load %arg8[%c1_286, %c0_287, %c0_288] : memref<8x16x128xf32, #tpu.memory_space<vmem>>, vector<1x16x128xf32>
    %630 = vector.shape_cast %629 : vector<1x16x128xf32> to vector<16x128xf32>
    %631 = vector.shape_cast %628 : vector<16x128xf32> to vector<1x16x128xf32>
    tpu.vector_store %arg8[%c1_286, %c0_287, %c0_288], %631 {strides = array<i32>} : memref<8x16x128xf32, #tpu.memory_space<vmem>>, vector<1x16x128xf32>,
    %632 = vector.extract_strided_slice %575 {offsets = [0, 1], sizes = [16, 1], strides = [1, 1]} : vector<16x16xf32> to vector<16x1xf32>
    %633 = vector.shape_cast %632 : vector<16x1xf32> to vector<16x1xf32>
    %634 = vector.broadcast %633 : vector<16x1xf32> to vector<16x64xf32>
    %635 = vector.extract_strided_slice %575 {offsets = [0, 9], sizes = [16, 1], strides = [1, 1]} : vector<16x16xf32> to vector<16x1xf32>
    %636 = vector.shape_cast %635 : vector<16x1xf32> to vector<16x1xf32>
    %637 = vector.broadcast %636 : vector<16x1xf32> to vector<16x64xf32>
    %638 = tpu.concatenate %634, %637 in 1 : vector<16x64xf32>, vector<16x64xf32> -> vector<16x128xf32>
    %c1_289 = arith.constant 1 : index
    %c0_290 = arith.constant 0 : index
    %c0_291 = arith.constant 0 : index
    %639 = vector.load %arg9[%c1_289, %c0_290, %c0_291] : memref<8x16x128xf32, #tpu.memory_space<vmem>>, vector<1x16x128xf32>
    %640 = vector.shape_cast %639 : vector<1x16x128xf32> to vector<16x128xf32>
    %641 = vector.shape_cast %638 : vector<16x128xf32> to vector<1x16x128xf32>
    tpu.vector_store %arg9[%c1_289, %c0_290, %c0_291], %641 {strides = array<i32>} : memref<8x16x128xf32, #tpu.memory_space<vmem>>, vector<1x16x128xf32>,
    %642 = vector.extract_strided_slice %578 {offsets = [2, 0], sizes = [1, 128], strides = [1, 1]} : vector<8x128xf32> to vector<1x128xf32>
    %643 = vector.broadcast %642 : vector<1x128xf32> to vector<16x128xf32>
    %644 = arith.mulf %643, %553 : vector<16x128xf32>
    %645 = math.exp %644 : vector<16x128xf32>
    %c2_292 = arith.constant 2 : index
    %c0_293 = arith.constant 0 : index
    %c0_294 = arith.constant 0 : index
    %646 = vector.load %arg7[%c2_292, %c0_293, %c0_294] : memref<8x16x128xf32, #tpu.memory_space<vmem>>, vector<1x16x128xf32>
    %647 = vector.shape_cast %646 : vector<1x16x128xf32> to vector<16x128xf32>
    %648 = vector.shape_cast %645 : vector<16x128xf32> to vector<1x16x128xf32>
    tpu.vector_store %arg7[%c2_292, %c0_293, %c0_294], %648 {strides = array<i32>} : memref<8x16x128xf32, #tpu.memory_space<vmem>>, vector<1x16x128xf32>,
    %649 = vector.extract_strided_slice %574 {offsets = [0, 2], sizes = [16, 1], strides = [1, 1]} : vector<16x16xf32> to vector<16x1xf32>
    %650 = vector.shape_cast %649 : vector<16x1xf32> to vector<16x1xf32>
    %651 = vector.broadcast %650 : vector<16x1xf32> to vector<16x64xf32>
    %652 = vector.extract_strided_slice %574 {offsets = [0, 10], sizes = [16, 1], strides = [1, 1]} : vector<16x16xf32> to vector<16x1xf32>
    %653 = vector.shape_cast %652 : vector<16x1xf32> to vector<16x1xf32>
    %654 = vector.broadcast %653 : vector<16x1xf32> to vector<16x64xf32>
    %655 = tpu.concatenate %651, %654 in 1 : vector<16x64xf32>, vector<16x64xf32> -> vector<16x128xf32>
    %656 = vector.extract_strided_slice %581 {offsets = [2, 0], sizes = [1, 128], strides = [1, 1]} : vector<8x128xf32> to vector<1x128xf32>
    %657 = vector.broadcast %656 : vector<1x128xf32> to vector<16x128xf32>
    %658 = arith.mulf %657, %655 : vector<16x128xf32>
    %c2_295 = arith.constant 2 : index
    %c0_296 = arith.constant 0 : index
    %c0_297 = arith.constant 0 : index
    %659 = vector.load %arg8[%c2_295, %c0_296, %c0_297] : memref<8x16x128xf32, #tpu.memory_space<vmem>>, vector<1x16x128xf32>
    %660 = vector.shape_cast %659 : vector<1x16x128xf32> to vector<16x128xf32>
    %661 = vector.shape_cast %658 : vector<16x128xf32> to vector<1x16x128xf32>
    tpu.vector_store %arg8[%c2_295, %c0_296, %c0_297], %661 {strides = array<i32>} : memref<8x16x128xf32, #tpu.memory_space<vmem>>, vector<1x16x128xf32>,
    %662 = vector.extract_strided_slice %575 {offsets = [0, 2], sizes = [16, 1], strides = [1, 1]} : vector<16x16xf32> to vector<16x1xf32>
    %663 = vector.shape_cast %662 : vector<16x1xf32> to vector<16x1xf32>
    %664 = vector.broadcast %663 : vector<16x1xf32> to vector<16x64xf32>
    %665 = vector.extract_strided_slice %575 {offsets = [0, 10], sizes = [16, 1], strides = [1, 1]} : vector<16x16xf32> to vector<16x1xf32>
    %666 = vector.shape_cast %665 : vector<16x1xf32> to vector<16x1xf32>
    %667 = vector.broadcast %666 : vector<16x1xf32> to vector<16x64xf32>
    %668 = tpu.concatenate %664, %667 in 1 : vector<16x64xf32>, vector<16x64xf32> -> vector<16x128xf32>
    %c2_298 = arith.constant 2 : index
    %c0_299 = arith.constant 0 : index
    %c0_300 = arith.constant 0 : index
    %669 = vector.load %arg9[%c2_298, %c0_299, %c0_300] : memref<8x16x128xf32, #tpu.memory_space<vmem>>, vector<1x16x128xf32>
    %670 = vector.shape_cast %669 : vector<1x16x128xf32> to vector<16x128xf32>
    %671 = vector.shape_cast %668 : vector<16x128xf32> to vector<1x16x128xf32>
    tpu.vector_store %arg9[%c2_298, %c0_299, %c0_300], %671 {strides = array<i32>} : memref<8x16x128xf32, #tpu.memory_space<vmem>>, vector<1x16x128xf32>,
    %672 = vector.extract_strided_slice %578 {offsets = [3, 0], sizes = [1, 128], strides = [1, 1]} : vector<8x128xf32> to vector<1x128xf32>
    %673 = vector.broadcast %672 : vector<1x128xf32> to vector<16x128xf32>
    %674 = arith.mulf %673, %553 : vector<16x128xf32>
    %675 = math.exp %674 : vector<16x128xf32>
    %c3_301 = arith.constant 3 : index
    %c0_302 = arith.constant 0 : index
    %c0_303 = arith.constant 0 : index
    %676 = vector.load %arg7[%c3_301, %c0_302, %c0_303] : memref<8x16x128xf32, #tpu.memory_space<vmem>>, vector<1x16x128xf32>
    %677 = vector.shape_cast %676 : vector<1x16x128xf32> to vector<16x128xf32>
    %678 = vector.shape_cast %675 : vector<16x128xf32> to vector<1x16x128xf32>
    tpu.vector_store %arg7[%c3_301, %c0_302, %c0_303], %678 {strides = array<i32>} : memref<8x16x128xf32, #tpu.memory_space<vmem>>, vector<1x16x128xf32>,
    %679 = vector.extract_strided_slice %574 {offsets = [0, 3], sizes = [16, 1], strides = [1, 1]} : vector<16x16xf32> to vector<16x1xf32>
    %680 = vector.shape_cast %679 : vector<16x1xf32> to vector<16x1xf32>
    %681 = vector.broadcast %680 : vector<16x1xf32> to vector<16x64xf32>
    %682 = vector.extract_strided_slice %574 {offsets = [0, 11], sizes = [16, 1], strides = [1, 1]} : vector<16x16xf32> to vector<16x1xf32>
    %683 = vector.shape_cast %682 : vector<16x1xf32> to vector<16x1xf32>
    %684 = vector.broadcast %683 : vector<16x1xf32> to vector<16x64xf32>
    %685 = tpu.concatenate %681, %684 in 1 : vector<16x64xf32>, vector<16x64xf32> -> vector<16x128xf32>
    %686 = vector.extract_strided_slice %581 {offsets = [3, 0], sizes = [1, 128], strides = [1, 1]} : vector<8x128xf32> to vector<1x128xf32>
    %687 = vector.broadcast %686 : vector<1x128xf32> to vector<16x128xf32>
    %688 = arith.mulf %687, %685 : vector<16x128xf32>
    %c3_304 = arith.constant 3 : index
    %c0_305 = arith.constant 0 : index
    %c0_306 = arith.constant 0 : index
    %689 = vector.load %arg8[%c3_304, %c0_305, %c0_306] : memref<8x16x128xf32, #tpu.memory_space<vmem>>, vector<1x16x128xf32>
    %690 = vector.shape_cast %689 : vector<1x16x128xf32> to vector<16x128xf32>
    %691 = vector.shape_cast %688 : vector<16x128xf32> to vector<1x16x128xf32>
    tpu.vector_store %arg8[%c3_304, %c0_305, %c0_306], %691 {strides = array<i32>} : memref<8x16x128xf32, #tpu.memory_space<vmem>>, vector<1x16x128xf32>,
    %692 = vector.extract_strided_slice %575 {offsets = [0, 3], sizes = [16, 1], strides = [1, 1]} : vector<16x16xf32> to vector<16x1xf32>
    %693 = vector.shape_cast %692 : vector<16x1xf32> to vector<16x1xf32>
    %694 = vector.broadcast %693 : vector<16x1xf32> to vector<16x64xf32>
    %695 = vector.extract_strided_slice %575 {offsets = [0, 11], sizes = [16, 1], strides = [1, 1]} : vector<16x16xf32> to vector<16x1xf32>
    %696 = vector.shape_cast %695 : vector<16x1xf32> to vector<16x1xf32>
    %697 = vector.broadcast %696 : vector<16x1xf32> to vector<16x64xf32>
    %698 = tpu.concatenate %694, %697 in 1 : vector<16x64xf32>, vector<16x64xf32> -> vector<16x128xf32>
    %c3_307 = arith.constant 3 : index
    %c0_308 = arith.constant 0 : index
    %c0_309 = arith.constant 0 : index
    %699 = vector.load %arg9[%c3_307, %c0_308, %c0_309] : memref<8x16x128xf32, #tpu.memory_space<vmem>>, vector<1x16x128xf32>
    %700 = vector.shape_cast %699 : vector<1x16x128xf32> to vector<16x128xf32>
    %701 = vector.shape_cast %698 : vector<16x128xf32> to vector<1x16x128xf32>
    tpu.vector_store %arg9[%c3_307, %c0_308, %c0_309], %701 {strides = array<i32>} : memref<8x16x128xf32, #tpu.memory_space<vmem>>, vector<1x16x128xf32>,
    %702 = vector.extract_strided_slice %578 {offsets = [4, 0], sizes = [1, 128], strides = [1, 1]} : vector<8x128xf32> to vector<1x128xf32>
    %703 = vector.broadcast %702 : vector<1x128xf32> to vector<16x128xf32>
    %704 = arith.mulf %703, %553 : vector<16x128xf32>
    %705 = math.exp %704 : vector<16x128xf32>
    %c4_310 = arith.constant 4 : index
    %c0_311 = arith.constant 0 : index
    %c0_312 = arith.constant 0 : index
    %706 = vector.load %arg7[%c4_310, %c0_311, %c0_312] : memref<8x16x128xf32, #tpu.memory_space<vmem>>, vector<1x16x128xf32>
    %707 = vector.shape_cast %706 : vector<1x16x128xf32> to vector<16x128xf32>
    %708 = vector.shape_cast %705 : vector<16x128xf32> to vector<1x16x128xf32>
    tpu.vector_store %arg7[%c4_310, %c0_311, %c0_312], %708 {strides = array<i32>} : memref<8x16x128xf32, #tpu.memory_space<vmem>>, vector<1x16x128xf32>,
    %709 = vector.extract_strided_slice %574 {offsets = [0, 4], sizes = [16, 1], strides = [1, 1]} : vector<16x16xf32> to vector<16x1xf32>
    %710 = vector.shape_cast %709 : vector<16x1xf32> to vector<16x1xf32>
    %711 = vector.broadcast %710 : vector<16x1xf32> to vector<16x64xf32>
    %712 = vector.extract_strided_slice %574 {offsets = [0, 12], sizes = [16, 1], strides = [1, 1]} : vector<16x16xf32> to vector<16x1xf32>
    %713 = vector.shape_cast %712 : vector<16x1xf32> to vector<16x1xf32>
    %714 = vector.broadcast %713 : vector<16x1xf32> to vector<16x64xf32>
    %715 = tpu.concatenate %711, %714 in 1 : vector<16x64xf32>, vector<16x64xf32> -> vector<16x128xf32>
    %716 = vector.extract_strided_slice %581 {offsets = [4, 0], sizes = [1, 128], strides = [1, 1]} : vector<8x128xf32> to vector<1x128xf32>
    %717 = vector.broadcast %716 : vector<1x128xf32> to vector<16x128xf32>
    %718 = arith.mulf %717, %715 : vector<16x128xf32>
    %c4_313 = arith.constant 4 : index
    %c0_314 = arith.constant 0 : index
    %c0_315 = arith.constant 0 : index
    %719 = vector.load %arg8[%c4_313, %c0_314, %c0_315] : memref<8x16x128xf32, #tpu.memory_space<vmem>>, vector<1x16x128xf32>
    %720 = vector.shape_cast %719 : vector<1x16x128xf32> to vector<16x128xf32>
    %721 = vector.shape_cast %718 : vector<16x128xf32> to vector<1x16x128xf32>
    tpu.vector_store %arg8[%c4_313, %c0_314, %c0_315], %721 {strides = array<i32>} : memref<8x16x128xf32, #tpu.memory_space<vmem>>, vector<1x16x128xf32>,
    %722 = vector.extract_strided_slice %575 {offsets = [0, 4], sizes = [16, 1], strides = [1, 1]} : vector<16x16xf32> to vector<16x1xf32>
    %723 = vector.shape_cast %722 : vector<16x1xf32> to vector<16x1xf32>
    %724 = vector.broadcast %723 : vector<16x1xf32> to vector<16x64xf32>
    %725 = vector.extract_strided_slice %575 {offsets = [0, 12], sizes = [16, 1], strides = [1, 1]} : vector<16x16xf32> to vector<16x1xf32>
    %726 = vector.shape_cast %725 : vector<16x1xf32> to vector<16x1xf32>
    %727 = vector.broadcast %726 : vector<16x1xf32> to vector<16x64xf32>
    %728 = tpu.concatenate %724, %727 in 1 : vector<16x64xf32>, vector<16x64xf32> -> vector<16x128xf32>
    %c4_316 = arith.constant 4 : index
    %c0_317 = arith.constant 0 : index
    %c0_318 = arith.constant 0 : index
    %729 = vector.load %arg9[%c4_316, %c0_317, %c0_318] : memref<8x16x128xf32, #tpu.memory_space<vmem>>, vector<1x16x128xf32>
    %730 = vector.shape_cast %729 : vector<1x16x128xf32> to vector<16x128xf32>
    %731 = vector.shape_cast %728 : vector<16x128xf32> to vector<1x16x128xf32>
    tpu.vector_store %arg9[%c4_316, %c0_317, %c0_318], %731 {strides = array<i32>} : memref<8x16x128xf32, #tpu.memory_space<vmem>>, vector<1x16x128xf32>,
    %732 = vector.extract_strided_slice %578 {offsets = [5, 0], sizes = [1, 128], strides = [1, 1]} : vector<8x128xf32> to vector<1x128xf32>
    %733 = vector.broadcast %732 : vector<1x128xf32> to vector<16x128xf32>
    %734 = arith.mulf %733, %553 : vector<16x128xf32>
    %735 = math.exp %734 : vector<16x128xf32>
    %c5_319 = arith.constant 5 : index
    %c0_320 = arith.constant 0 : index
    %c0_321 = arith.constant 0 : index
    %736 = vector.load %arg7[%c5_319, %c0_320, %c0_321] : memref<8x16x128xf32, #tpu.memory_space<vmem>>, vector<1x16x128xf32>
    %737 = vector.shape_cast %736 : vector<1x16x128xf32> to vector<16x128xf32>
    %738 = vector.shape_cast %735 : vector<16x128xf32> to vector<1x16x128xf32>
    tpu.vector_store %arg7[%c5_319, %c0_320, %c0_321], %738 {strides = array<i32>} : memref<8x16x128xf32, #tpu.memory_space<vmem>>, vector<1x16x128xf32>,
    %739 = vector.extract_strided_slice %574 {offsets = [0, 5], sizes = [16, 1], strides = [1, 1]} : vector<16x16xf32> to vector<16x1xf32>
    %740 = vector.shape_cast %739 : vector<16x1xf32> to vector<16x1xf32>
    %741 = vector.broadcast %740 : vector<16x1xf32> to vector<16x64xf32>
    %742 = vector.extract_strided_slice %574 {offsets = [0, 13], sizes = [16, 1], strides = [1, 1]} : vector<16x16xf32> to vector<16x1xf32>
    %743 = vector.shape_cast %742 : vector<16x1xf32> to vector<16x1xf32>
    %744 = vector.broadcast %743 : vector<16x1xf32> to vector<16x64xf32>
    %745 = tpu.concatenate %741, %744 in 1 : vector<16x64xf32>, vector<16x64xf32> -> vector<16x128xf32>
    %746 = vector.extract_strided_slice %581 {offsets = [5, 0], sizes = [1, 128], strides = [1, 1]} : vector<8x128xf32> to vector<1x128xf32>
    %747 = vector.broadcast %746 : vector<1x128xf32> to vector<16x128xf32>
    %748 = arith.mulf %747, %745 : vector<16x128xf32>
    %c5_322 = arith.constant 5 : index
    %c0_323 = arith.constant 0 : index
    %c0_324 = arith.constant 0 : index
    %749 = vector.load %arg8[%c5_322, %c0_323, %c0_324] : memref<8x16x128xf32, #tpu.memory_space<vmem>>, vector<1x16x128xf32>
    %750 = vector.shape_cast %749 : vector<1x16x128xf32> to vector<16x128xf32>
    %751 = vector.shape_cast %748 : vector<16x128xf32> to vector<1x16x128xf32>
    tpu.vector_store %arg8[%c5_322, %c0_323, %c0_324], %751 {strides = array<i32>} : memref<8x16x128xf32, #tpu.memory_space<vmem>>, vector<1x16x128xf32>,
    %752 = vector.extract_strided_slice %575 {offsets = [0, 5], sizes = [16, 1], strides = [1, 1]} : vector<16x16xf32> to vector<16x1xf32>
    %753 = vector.shape_cast %752 : vector<16x1xf32> to vector<16x1xf32>
    %754 = vector.broadcast %753 : vector<16x1xf32> to vector<16x64xf32>
    %755 = vector.extract_strided_slice %575 {offsets = [0, 13], sizes = [16, 1], strides = [1, 1]} : vector<16x16xf32> to vector<16x1xf32>
    %756 = vector.shape_cast %755 : vector<16x1xf32> to vector<16x1xf32>
    %757 = vector.broadcast %756 : vector<16x1xf32> to vector<16x64xf32>
    %758 = tpu.concatenate %754, %757 in 1 : vector<16x64xf32>, vector<16x64xf32> -> vector<16x128xf32>
    %c5_325 = arith.constant 5 : index
    %c0_326 = arith.constant 0 : index
    %c0_327 = arith.constant 0 : index
    %759 = vector.load %arg9[%c5_325, %c0_326, %c0_327] : memref<8x16x128xf32, #tpu.memory_space<vmem>>, vector<1x16x128xf32>
    %760 = vector.shape_cast %759 : vector<1x16x128xf32> to vector<16x128xf32>
    %761 = vector.shape_cast %758 : vector<16x128xf32> to vector<1x16x128xf32>
    tpu.vector_store %arg9[%c5_325, %c0_326, %c0_327], %761 {strides = array<i32>} : memref<8x16x128xf32, #tpu.memory_space<vmem>>, vector<1x16x128xf32>,
    %762 = vector.extract_strided_slice %578 {offsets = [6, 0], sizes = [1, 128], strides = [1, 1]} : vector<8x128xf32> to vector<1x128xf32>
    %763 = vector.broadcast %762 : vector<1x128xf32> to vector<16x128xf32>
    %764 = arith.mulf %763, %553 : vector<16x128xf32>
    %765 = math.exp %764 : vector<16x128xf32>
    %c6_328 = arith.constant 6 : index
    %c0_329 = arith.constant 0 : index
    %c0_330 = arith.constant 0 : index
    %766 = vector.load %arg7[%c6_328, %c0_329, %c0_330] : memref<8x16x128xf32, #tpu.memory_space<vmem>>, vector<1x16x128xf32>
    %767 = vector.shape_cast %766 : vector<1x16x128xf32> to vector<16x128xf32>
    %768 = vector.shape_cast %765 : vector<16x128xf32> to vector<1x16x128xf32>
    tpu.vector_store %arg7[%c6_328, %c0_329, %c0_330], %768 {strides = array<i32>} : memref<8x16x128xf32, #tpu.memory_space<vmem>>, vector<1x16x128xf32>,
    %769 = vector.extract_strided_slice %574 {offsets = [0, 6], sizes = [16, 1], strides = [1, 1]} : vector<16x16xf32> to vector<16x1xf32>
    %770 = vector.shape_cast %769 : vector<16x1xf32> to vector<16x1xf32>
    %771 = vector.broadcast %770 : vector<16x1xf32> to vector<16x64xf32>
    %772 = vector.extract_strided_slice %574 {offsets = [0, 14], sizes = [16, 1], strides = [1, 1]} : vector<16x16xf32> to vector<16x1xf32>
    %773 = vector.shape_cast %772 : vector<16x1xf32> to vector<16x1xf32>
    %774 = vector.broadcast %773 : vector<16x1xf32> to vector<16x64xf32>
    %775 = tpu.concatenate %771, %774 in 1 : vector<16x64xf32>, vector<16x64xf32> -> vector<16x128xf32>
    %776 = vector.extract_strided_slice %581 {offsets = [6, 0], sizes = [1, 128], strides = [1, 1]} : vector<8x128xf32> to vector<1x128xf32>
    %777 = vector.broadcast %776 : vector<1x128xf32> to vector<16x128xf32>
    %778 = arith.mulf %777, %775 : vector<16x128xf32>
    %c6_331 = arith.constant 6 : index
    %c0_332 = arith.constant 0 : index
    %c0_333 = arith.constant 0 : index
    %779 = vector.load %arg8[%c6_331, %c0_332, %c0_333] : memref<8x16x128xf32, #tpu.memory_space<vmem>>, vector<1x16x128xf32>
    %780 = vector.shape_cast %779 : vector<1x16x128xf32> to vector<16x128xf32>
    %781 = vector.shape_cast %778 : vector<16x128xf32> to vector<1x16x128xf32>
    tpu.vector_store %arg8[%c6_331, %c0_332, %c0_333], %781 {strides = array<i32>} : memref<8x16x128xf32, #tpu.memory_space<vmem>>, vector<1x16x128xf32>,
    %782 = vector.extract_strided_slice %575 {offsets = [0, 6], sizes = [16, 1], strides = [1, 1]} : vector<16x16xf32> to vector<16x1xf32>
    %783 = vector.shape_cast %782 : vector<16x1xf32> to vector<16x1xf32>
    %784 = vector.broadcast %783 : vector<16x1xf32> to vector<16x64xf32>
    %785 = vector.extract_strided_slice %575 {offsets = [0, 14], sizes = [16, 1], strides = [1, 1]} : vector<16x16xf32> to vector<16x1xf32>
    %786 = vector.shape_cast %785 : vector<16x1xf32> to vector<16x1xf32>
    %787 = vector.broadcast %786 : vector<16x1xf32> to vector<16x64xf32>
    %788 = tpu.concatenate %784, %787 in 1 : vector<16x64xf32>, vector<16x64xf32> -> vector<16x128xf32>
    %c6_334 = arith.constant 6 : index
    %c0_335 = arith.constant 0 : index
    %c0_336 = arith.constant 0 : index
    %789 = vector.load %arg9[%c6_334, %c0_335, %c0_336] : memref<8x16x128xf32, #tpu.memory_space<vmem>>, vector<1x16x128xf32>
    %790 = vector.shape_cast %789 : vector<1x16x128xf32> to vector<16x128xf32>
    %791 = vector.shape_cast %788 : vector<16x128xf32> to vector<1x16x128xf32>
    tpu.vector_store %arg9[%c6_334, %c0_335, %c0_336], %791 {strides = array<i32>} : memref<8x16x128xf32, #tpu.memory_space<vmem>>, vector<1x16x128xf32>,
    %792 = vector.extract_strided_slice %578 {offsets = [7, 0], sizes = [1, 128], strides = [1, 1]} : vector<8x128xf32> to vector<1x128xf32>
    %793 = vector.broadcast %792 : vector<1x128xf32> to vector<16x128xf32>
    %794 = arith.mulf %793, %553 : vector<16x128xf32>
    %795 = math.exp %794 : vector<16x128xf32>
    %c7_337 = arith.constant 7 : index
    %c0_338 = arith.constant 0 : index
    %c0_339 = arith.constant 0 : index
    %796 = vector.load %arg7[%c7_337, %c0_338, %c0_339] : memref<8x16x128xf32, #tpu.memory_space<vmem>>, vector<1x16x128xf32>
    %797 = vector.shape_cast %796 : vector<1x16x128xf32> to vector<16x128xf32>
    %798 = vector.shape_cast %795 : vector<16x128xf32> to vector<1x16x128xf32>
    tpu.vector_store %arg7[%c7_337, %c0_338, %c0_339], %798 {strides = array<i32>} : memref<8x16x128xf32, #tpu.memory_space<vmem>>, vector<1x16x128xf32>,
    %799 = vector.extract_strided_slice %574 {offsets = [0, 7], sizes = [16, 1], strides = [1, 1]} : vector<16x16xf32> to vector<16x1xf32>
    %800 = vector.shape_cast %799 : vector<16x1xf32> to vector<16x1xf32>
    %801 = vector.broadcast %800 : vector<16x1xf32> to vector<16x64xf32>
    %802 = vector.extract_strided_slice %574 {offsets = [0, 15], sizes = [16, 1], strides = [1, 1]} : vector<16x16xf32> to vector<16x1xf32>
    %803 = vector.shape_cast %802 : vector<16x1xf32> to vector<16x1xf32>
    %804 = vector.broadcast %803 : vector<16x1xf32> to vector<16x64xf32>
    %805 = tpu.concatenate %801, %804 in 1 : vector<16x64xf32>, vector<16x64xf32> -> vector<16x128xf32>
    %806 = vector.extract_strided_slice %581 {offsets = [7, 0], sizes = [1, 128], strides = [1, 1]} : vector<8x128xf32> to vector<1x128xf32>
    %807 = vector.broadcast %806 : vector<1x128xf32> to vector<16x128xf32>
    %808 = arith.mulf %807, %805 : vector<16x128xf32>
    %c7_340 = arith.constant 7 : index
    %c0_341 = arith.constant 0 : index
    %c0_342 = arith.constant 0 : index
    %809 = vector.load %arg8[%c7_340, %c0_341, %c0_342] : memref<8x16x128xf32, #tpu.memory_space<vmem>>, vector<1x16x128xf32>
    %810 = vector.shape_cast %809 : vector<1x16x128xf32> to vector<16x128xf32>
    %811 = vector.shape_cast %808 : vector<16x128xf32> to vector<1x16x128xf32>
    tpu.vector_store %arg8[%c7_340, %c0_341, %c0_342], %811 {strides = array<i32>} : memref<8x16x128xf32, #tpu.memory_space<vmem>>, vector<1x16x128xf32>,
    %812 = vector.extract_strided_slice %575 {offsets = [0, 7], sizes = [16, 1], strides = [1, 1]} : vector<16x16xf32> to vector<16x1xf32>
    %813 = vector.shape_cast %812 : vector<16x1xf32> to vector<16x1xf32>
    %814 = vector.broadcast %813 : vector<16x1xf32> to vector<16x64xf32>
    %815 = vector.extract_strided_slice %575 {offsets = [0, 15], sizes = [16, 1], strides = [1, 1]} : vector<16x16xf32> to vector<16x1xf32>
    %816 = vector.shape_cast %815 : vector<16x1xf32> to vector<16x1xf32>
    %817 = vector.broadcast %816 : vector<16x1xf32> to vector<16x64xf32>
    %818 = tpu.concatenate %814, %817 in 1 : vector<16x64xf32>, vector<16x64xf32> -> vector<16x128xf32>
    %c7_343 = arith.constant 7 : index
    %c0_344 = arith.constant 0 : index
    %c0_345 = arith.constant 0 : index
    %819 = vector.load %arg9[%c7_343, %c0_344, %c0_345] : memref<8x16x128xf32, #tpu.memory_space<vmem>>, vector<1x16x128xf32>
    %820 = vector.shape_cast %819 : vector<1x16x128xf32> to vector<16x128xf32>
    %821 = vector.shape_cast %818 : vector<16x128xf32> to vector<1x16x128xf32>
    tpu.vector_store %arg9[%c7_343, %c0_344, %c0_345], %821 {strides = array<i32>} : memref<8x16x128xf32, #tpu.memory_space<vmem>>, vector<1x16x128xf32>,
    %cst_346 = arith.constant 0.000000e+00 : f32
    %822 = vector.broadcast %cst_346 : f32 to vector<16x128xf32>
    %c0_347 = arith.constant 0 : index
    %c0_348 = arith.constant 0 : index
    %c0_349 = arith.constant 0 : index
    %823 = vector.load %arg7[%c0_347, %c0_348, %c0_349] : memref<8x16x128xf32, #tpu.memory_space<vmem>>, vector<1x16x128xf32>
    %824 = vector.shape_cast %823 : vector<1x16x128xf32> to vector<16x128xf32>
    %825 = arith.mulf %824, %822 : vector<16x128xf32>
    %c0_350 = arith.constant 0 : index
    %c0_351 = arith.constant 0 : index
    %c0_352 = arith.constant 0 : index
    %826 = vector.load %arg8[%c0_350, %c0_351, %c0_352] : memref<8x16x128xf32, #tpu.memory_space<vmem>>, vector<1x16x128xf32>
    %827 = vector.shape_cast %826 : vector<1x16x128xf32> to vector<16x128xf32>
    %828 = arith.addf %825, %827 : vector<16x128xf32>
    %c0_353 = arith.constant 0 : index
    %c0_354 = arith.constant 0 : index
    %c0_355 = arith.constant 0 : index
    %829 = vector.load %arg9[%c0_353, %c0_354, %c0_355] : memref<8x16x128xf32, #tpu.memory_space<vmem>>, vector<1x16x128xf32>
    %830 = vector.shape_cast %829 : vector<1x16x128xf32> to vector<16x128xf32>
    %831 = arith.mulf %828, %830 : vector<16x128xf32>
    %cst_356 = arith.constant dense<0.000000e+00> : vector<128xf32>
    %832 = vector.multi_reduction <add>, %831, %cst_356 [0] : vector<16x128xf32> to vector<128xf32>
    %833 = vector.shape_cast %832 : vector<128xf32> to vector<1x128xf32>
    %c0_357 = arith.constant 0 : index
    %c0_358 = arith.constant 0 : index
    %834 = vector.load %arg10[%c0_357, %c0_358] : memref<8x128xf32, #tpu.memory_space<vmem>>, vector<1x128xf32>
    tpu.vector_store %arg10[%c0_357, %c0_358], %833 {strides = array<i32>} : memref<8x128xf32, #tpu.memory_space<vmem>>, vector<1x128xf32>,
    %c1_359 = arith.constant 1 : index
    %c0_360 = arith.constant 0 : index
    %c0_361 = arith.constant 0 : index
    %835 = vector.load %arg7[%c1_359, %c0_360, %c0_361] : memref<8x16x128xf32, #tpu.memory_space<vmem>>, vector<1x16x128xf32>
    %836 = vector.shape_cast %835 : vector<1x16x128xf32> to vector<16x128xf32>
    %837 = arith.mulf %836, %828 : vector<16x128xf32>
    %c1_362 = arith.constant 1 : index
    %c0_363 = arith.constant 0 : index
    %c0_364 = arith.constant 0 : index
    %838 = vector.load %arg8[%c1_362, %c0_363, %c0_364] : memref<8x16x128xf32, #tpu.memory_space<vmem>>, vector<1x16x128xf32>
    %839 = vector.shape_cast %838 : vector<1x16x128xf32> to vector<16x128xf32>
    %840 = arith.addf %837, %839 : vector<16x128xf32>
    %c1_365 = arith.constant 1 : index
    %c0_366 = arith.constant 0 : index
    %c0_367 = arith.constant 0 : index
    %841 = vector.load %arg9[%c1_365, %c0_366, %c0_367] : memref<8x16x128xf32, #tpu.memory_space<vmem>>, vector<1x16x128xf32>
    %842 = vector.shape_cast %841 : vector<1x16x128xf32> to vector<16x128xf32>
    %843 = arith.mulf %840, %842 : vector<16x128xf32>
    %cst_368 = arith.constant dense<0.000000e+00> : vector<128xf32>
    %844 = vector.multi_reduction <add>, %843, %cst_368 [0] : vector<16x128xf32> to vector<128xf32>
    %845 = vector.shape_cast %844 : vector<128xf32> to vector<1x128xf32>
    %c1_369 = arith.constant 1 : index
    %c0_370 = arith.constant 0 : index
    %846 = vector.load %arg10[%c1_369, %c0_370] : memref<8x128xf32, #tpu.memory_space<vmem>>, vector<1x128xf32>
    tpu.vector_store %arg10[%c1_369, %c0_370], %845 {strides = array<i32>} : memref<8x128xf32, #tpu.memory_space<vmem>>, vector<1x128xf32>,
    %c2_371 = arith.constant 2 : index
    %c0_372 = arith.constant 0 : index
    %c0_373 = arith.constant 0 : index
    %847 = vector.load %arg7[%c2_371, %c0_372, %c0_373] : memref<8x16x128xf32, #tpu.memory_space<vmem>>, vector<1x16x128xf32>
    %848 = vector.shape_cast %847 : vector<1x16x128xf32> to vector<16x128xf32>
    %849 = arith.mulf %848, %840 : vector<16x128xf32>
    %c2_374 = arith.constant 2 : index
    %c0_375 = arith.constant 0 : index
    %c0_376 = arith.constant 0 : index
    %850 = vector.load %arg8[%c2_374, %c0_375, %c0_376] : memref<8x16x128xf32, #tpu.memory_space<vmem>>, vector<1x16x128xf32>
    %851 = vector.shape_cast %850 : vector<1x16x128xf32> to vector<16x128xf32>
    %852 = arith.addf %849, %851 : vector<16x128xf32>
    %c2_377 = arith.constant 2 : index
    %c0_378 = arith.constant 0 : index
    %c0_379 = arith.constant 0 : index
    %853 = vector.load %arg9[%c2_377, %c0_378, %c0_379] : memref<8x16x128xf32, #tpu.memory_space<vmem>>, vector<1x16x128xf32>
    %854 = vector.shape_cast %853 : vector<1x16x128xf32> to vector<16x128xf32>
    %855 = arith.mulf %852, %854 : vector<16x128xf32>
    %cst_380 = arith.constant dense<0.000000e+00> : vector<128xf32>
    %856 = vector.multi_reduction <add>, %855, %cst_380 [0] : vector<16x128xf32> to vector<128xf32>
    %857 = vector.shape_cast %856 : vector<128xf32> to vector<1x128xf32>
    %c2_381 = arith.constant 2 : index
    %c0_382 = arith.constant 0 : index
    %858 = vector.load %arg10[%c2_381, %c0_382] : memref<8x128xf32, #tpu.memory_space<vmem>>, vector<1x128xf32>
    tpu.vector_store %arg10[%c2_381, %c0_382], %857 {strides = array<i32>} : memref<8x128xf32, #tpu.memory_space<vmem>>, vector<1x128xf32>,
    %c3_383 = arith.constant 3 : index
    %c0_384 = arith.constant 0 : index
    %c0_385 = arith.constant 0 : index
    %859 = vector.load %arg7[%c3_383, %c0_384, %c0_385] : memref<8x16x128xf32, #tpu.memory_space<vmem>>, vector<1x16x128xf32>
    %860 = vector.shape_cast %859 : vector<1x16x128xf32> to vector<16x128xf32>
    %861 = arith.mulf %860, %852 : vector<16x128xf32>
    %c3_386 = arith.constant 3 : index
    %c0_387 = arith.constant 0 : index
    %c0_388 = arith.constant 0 : index
    %862 = vector.load %arg8[%c3_386, %c0_387, %c0_388] : memref<8x16x128xf32, #tpu.memory_space<vmem>>, vector<1x16x128xf32>
    %863 = vector.shape_cast %862 : vector<1x16x128xf32> to vector<16x128xf32>
    %864 = arith.addf %861, %863 : vector<16x128xf32>
    %c3_389 = arith.constant 3 : index
    %c0_390 = arith.constant 0 : index
    %c0_391 = arith.constant 0 : index
    %865 = vector.load %arg9[%c3_389, %c0_390, %c0_391] : memref<8x16x128xf32, #tpu.memory_space<vmem>>, vector<1x16x128xf32>
    %866 = vector.shape_cast %865 : vector<1x16x128xf32> to vector<16x128xf32>
    %867 = arith.mulf %864, %866 : vector<16x128xf32>
    %cst_392 = arith.constant dense<0.000000e+00> : vector<128xf32>
    %868 = vector.multi_reduction <add>, %867, %cst_392 [0] : vector<16x128xf32> to vector<128xf32>
    %869 = vector.shape_cast %868 : vector<128xf32> to vector<1x128xf32>
    %c3_393 = arith.constant 3 : index
    %c0_394 = arith.constant 0 : index
    %870 = vector.load %arg10[%c3_393, %c0_394] : memref<8x128xf32, #tpu.memory_space<vmem>>, vector<1x128xf32>
    tpu.vector_store %arg10[%c3_393, %c0_394], %869 {strides = array<i32>} : memref<8x128xf32, #tpu.memory_space<vmem>>, vector<1x128xf32>,
    %c4_395 = arith.constant 4 : index
    %c0_396 = arith.constant 0 : index
    %c0_397 = arith.constant 0 : index
    %871 = vector.load %arg7[%c4_395, %c0_396, %c0_397] : memref<8x16x128xf32, #tpu.memory_space<vmem>>, vector<1x16x128xf32>
    %872 = vector.shape_cast %871 : vector<1x16x128xf32> to vector<16x128xf32>
    %873 = arith.mulf %872, %864 : vector<16x128xf32>
    %c4_398 = arith.constant 4 : index
    %c0_399 = arith.constant 0 : index
    %c0_400 = arith.constant 0 : index
    %874 = vector.load %arg8[%c4_398, %c0_399, %c0_400] : memref<8x16x128xf32, #tpu.memory_space<vmem>>, vector<1x16x128xf32>
    %875 = vector.shape_cast %874 : vector<1x16x128xf32> to vector<16x128xf32>
    %876 = arith.addf %873, %875 : vector<16x128xf32>
    %c4_401 = arith.constant 4 : index
    %c0_402 = arith.constant 0 : index
    %c0_403 = arith.constant 0 : index
    %877 = vector.load %arg9[%c4_401, %c0_402, %c0_403] : memref<8x16x128xf32, #tpu.memory_space<vmem>>, vector<1x16x128xf32>
    %878 = vector.shape_cast %877 : vector<1x16x128xf32> to vector<16x128xf32>
    %879 = arith.mulf %876, %878 : vector<16x128xf32>
    %cst_404 = arith.constant dense<0.000000e+00> : vector<128xf32>
    %880 = vector.multi_reduction <add>, %879, %cst_404 [0] : vector<16x128xf32> to vector<128xf32>
    %881 = vector.shape_cast %880 : vector<128xf32> to vector<1x128xf32>
    %c4_405 = arith.constant 4 : index
    %c0_406 = arith.constant 0 : index
    %882 = vector.load %arg10[%c4_405, %c0_406] : memref<8x128xf32, #tpu.memory_space<vmem>>, vector<1x128xf32>
    tpu.vector_store %arg10[%c4_405, %c0_406], %881 {strides = array<i32>} : memref<8x128xf32, #tpu.memory_space<vmem>>, vector<1x128xf32>,
    %c5_407 = arith.constant 5 : index
    %c0_408 = arith.constant 0 : index
    %c0_409 = arith.constant 0 : index
    %883 = vector.load %arg7[%c5_407, %c0_408, %c0_409] : memref<8x16x128xf32, #tpu.memory_space<vmem>>, vector<1x16x128xf32>
    %884 = vector.shape_cast %883 : vector<1x16x128xf32> to vector<16x128xf32>
    %885 = arith.mulf %884, %876 : vector<16x128xf32>
    %c5_410 = arith.constant 5 : index
    %c0_411 = arith.constant 0 : index
    %c0_412 = arith.constant 0 : index
    %886 = vector.load %arg8[%c5_410, %c0_411, %c0_412] : memref<8x16x128xf32, #tpu.memory_space<vmem>>, vector<1x16x128xf32>
    %887 = vector.shape_cast %886 : vector<1x16x128xf32> to vector<16x128xf32>
    %888 = arith.addf %885, %887 : vector<16x128xf32>
    %c5_413 = arith.constant 5 : index
    %c0_414 = arith.constant 0 : index
    %c0_415 = arith.constant 0 : index
    %889 = vector.load %arg9[%c5_413, %c0_414, %c0_415] : memref<8x16x128xf32, #tpu.memory_space<vmem>>, vector<1x16x128xf32>
    %890 = vector.shape_cast %889 : vector<1x16x128xf32> to vector<16x128xf32>
    %891 = arith.mulf %888, %890 : vector<16x128xf32>
    %cst_416 = arith.constant dense<0.000000e+00> : vector<128xf32>
    %892 = vector.multi_reduction <add>, %891, %cst_416 [0] : vector<16x128xf32> to vector<128xf32>
    %893 = vector.shape_cast %892 : vector<128xf32> to vector<1x128xf32>
    %c5_417 = arith.constant 5 : index
    %c0_418 = arith.constant 0 : index
    %894 = vector.load %arg10[%c5_417, %c0_418] : memref<8x128xf32, #tpu.memory_space<vmem>>, vector<1x128xf32>
    tpu.vector_store %arg10[%c5_417, %c0_418], %893 {strides = array<i32>} : memref<8x128xf32, #tpu.memory_space<vmem>>, vector<1x128xf32>,
    %c6_419 = arith.constant 6 : index
    %c0_420 = arith.constant 0 : index
    %c0_421 = arith.constant 0 : index
    %895 = vector.load %arg7[%c6_419, %c0_420, %c0_421] : memref<8x16x128xf32, #tpu.memory_space<vmem>>, vector<1x16x128xf32>
    %896 = vector.shape_cast %895 : vector<1x16x128xf32> to vector<16x128xf32>
    %897 = arith.mulf %896, %888 : vector<16x128xf32>
    %c6_422 = arith.constant 6 : index
    %c0_423 = arith.constant 0 : index
    %c0_424 = arith.constant 0 : index
    %898 = vector.load %arg8[%c6_422, %c0_423, %c0_424] : memref<8x16x128xf32, #tpu.memory_space<vmem>>, vector<1x16x128xf32>
    %899 = vector.shape_cast %898 : vector<1x16x128xf32> to vector<16x128xf32>
    %900 = arith.addf %897, %899 : vector<16x128xf32>
    %c6_425 = arith.constant 6 : index
    %c0_426 = arith.constant 0 : index
    %c0_427 = arith.constant 0 : index
    %901 = vector.load %arg9[%c6_425, %c0_426, %c0_427] : memref<8x16x128xf32, #tpu.memory_space<vmem>>, vector<1x16x128xf32>
    %902 = vector.shape_cast %901 : vector<1x16x128xf32> to vector<16x128xf32>
    %903 = arith.mulf %900, %902 : vector<16x128xf32>
    %cst_428 = arith.constant dense<0.000000e+00> : vector<128xf32>
    %904 = vector.multi_reduction <add>, %903, %cst_428 [0] : vector<16x128xf32> to vector<128xf32>
    %905 = vector.shape_cast %904 : vector<128xf32> to vector<1x128xf32>
    %c6_429 = arith.constant 6 : index
    %c0_430 = arith.constant 0 : index
    %906 = vector.load %arg10[%c6_429, %c0_430] : memref<8x128xf32, #tpu.memory_space<vmem>>, vector<1x128xf32>
    tpu.vector_store %arg10[%c6_429, %c0_430], %905 {strides = array<i32>} : memref<8x128xf32, #tpu.memory_space<vmem>>, vector<1x128xf32>,
    %c7_431 = arith.constant 7 : index
    %c0_432 = arith.constant 0 : index
    %c0_433 = arith.constant 0 : index
    %907 = vector.load %arg7[%c7_431, %c0_432, %c0_433] : memref<8x16x128xf32, #tpu.memory_space<vmem>>, vector<1x16x128xf32>
    %908 = vector.shape_cast %907 : vector<1x16x128xf32> to vector<16x128xf32>
    %909 = arith.mulf %908, %900 : vector<16x128xf32>
    %c7_434 = arith.constant 7 : index
    %c0_435 = arith.constant 0 : index
    %c0_436 = arith.constant 0 : index
    %910 = vector.load %arg8[%c7_434, %c0_435, %c0_436] : memref<8x16x128xf32, #tpu.memory_space<vmem>>, vector<1x16x128xf32>
    %911 = vector.shape_cast %910 : vector<1x16x128xf32> to vector<16x128xf32>
    %912 = arith.addf %909, %911 : vector<16x128xf32>
    %c7_437 = arith.constant 7 : index
    %c0_438 = arith.constant 0 : index
    %c0_439 = arith.constant 0 : index
    %913 = vector.load %arg9[%c7_437, %c0_438, %c0_439] : memref<8x16x128xf32, #tpu.memory_space<vmem>>, vector<1x16x128xf32>
    %914 = vector.shape_cast %913 : vector<1x16x128xf32> to vector<16x128xf32>
    %915 = arith.mulf %912, %914 : vector<16x128xf32>
    %cst_440 = arith.constant dense<0.000000e+00> : vector<128xf32>
    %916 = vector.multi_reduction <add>, %915, %cst_440 [0] : vector<16x128xf32> to vector<128xf32>
    %917 = vector.shape_cast %916 : vector<128xf32> to vector<1x128xf32>
    %c7_441 = arith.constant 7 : index
    %c0_442 = arith.constant 0 : index
    %918 = vector.load %arg10[%c7_441, %c0_442] : memref<8x128xf32, #tpu.memory_space<vmem>>, vector<1x128xf32>
    tpu.vector_store %arg10[%c7_441, %c0_442], %917 {strides = array<i32>} : memref<8x128xf32, #tpu.memory_space<vmem>>, vector<1x128xf32>,
    %c0_443 = arith.constant 0 : index
    %c0_444 = arith.constant 0 : index
    %919 = vector.load %arg10[%c0_443, %c0_444] : memref<8x128xf32, #tpu.memory_space<vmem>>, vector<8x128xf32>
    %920 = vector.extract_strided_slice %919 {offsets = [0, 0], sizes = [8, 64], strides = [1, 1]} : vector<8x128xf32> to vector<8x64xf32>
    %921 = vector.extract_strided_slice %919 {offsets = [0, 64], sizes = [8, 64], strides = [1, 1]} : vector<8x128xf32> to vector<8x64xf32>
    %922 = tpu.concatenate %920, %921 in 0 : vector<8x64xf32>, vector<8x64xf32> -> vector<16x64xf32>
    %923 = vector.broadcast %491 : vector<1x64xf32> to vector<16x64xf32>
    %924 = arith.mulf %545, %923 : vector<16x64xf32>
    %925 = arith.addf %922, %924 : vector<16x64xf32>
    %cst_445 = arith.constant 0.000000e+00 : f32
    %926 = vector.broadcast %cst_445 : f32 to vector<16x64xf32>
    %927 = arith.subf %926, %511 : vector<16x64xf32>
    %928 = math.exp %927 : vector<16x64xf32>
    %cst_446 = arith.constant 1.000000e+00 : f32
    %929 = vector.broadcast %cst_446 : f32 to vector<16x64xf32>
    %930 = arith.addf %929, %928 : vector<16x64xf32>
    %cst_447 = arith.constant 1.000000e+00 : f32
    %931 = vector.broadcast %cst_447 : f32 to vector<16x64xf32>
    %932 = arith.divf %931, %930 : vector<16x64xf32>
    %933 = arith.mulf %511, %932 : vector<16x64xf32>
    %934 = arith.mulf %925, %933 : vector<16x64xf32>
    %cst_448 = arith.constant dense<0.000000e+00> : vector<16x32xf32>
    %935 = tpu.matmul %934, %549, %cst_448 {dimension_numbers = #tpu.dot_dimension_numbers<[1], [0], [0], [1], [0, 0, 1, 1], [], []>} : vector<16x64xf32>, vector<64x32xf32>, vector<16x32xf32> -> vector<16x32xf32>
    %936 = arith.addf %935, %494 : vector<16x32xf32>
    %c0_449 = arith.constant 0 : index
    %c0_450 = arith.constant 0 : index
    %c64_451 = arith.constant 64 : index
    %937 = vector.load %arg2[%c0_449, %c0_450, %c64_451] : memref<2x8x128xf32, #tpu.memory_space<vmem>>, vector<1x1x32xf32>
    %938 = vector.shape_cast %937 : vector<1x1x32xf32> to vector<1x32xf32>
    %939 = arith.mulf %936, %936 : vector<16x32xf32>
    %cst_452 = arith.constant dense<0.000000e+00> : vector<16xf32>
    %940 = vector.multi_reduction <add>, %939, %cst_452 [1] : vector<16x32xf32> to vector<16xf32>
    %941 = vector.shape_cast %940 : vector<16xf32> to vector<16x1xf32>
    %cst_453 = arith.constant 3.200000e+01 : f32
    %942 = vector.broadcast %cst_453 : f32 to vector<16x1xf32>
    %943 = arith.divf %941, %942 : vector<16x1xf32>
    %cst_454 = arith.constant 9.99999974E-6 : f32
    %944 = vector.broadcast %cst_454 : f32 to vector<16x1xf32>
    %945 = arith.addf %943, %944 : vector<16x1xf32>
    %946 = math.rsqrt %945 : vector<16x1xf32>
    %947 = vector.broadcast %946 : vector<16x1xf32> to vector<16x32xf32>
    %948 = arith.mulf %936, %947 : vector<16x32xf32>
    %949 = vector.broadcast %938 : vector<1x32xf32> to vector<16x32xf32>
    %950 = arith.mulf %948, %949 : vector<16x32xf32>
    %cst_455 = arith.constant dense<0.000000e+00> : vector<16x128xf32>
    %951 = tpu.matmul %950, %0, %cst_455 {dimension_numbers = #tpu.dot_dimension_numbers<[1], [1], [0], [0], [0, 0, 1, 0], [], []>} : vector<16x32xf32>, vector<128x32xf32>, vector<16x128xf32> -> vector<16x128xf32>
    %c0_456 = arith.constant 0 : index
    %c0_457 = arith.constant 0 : index
    %952 = vector.load %arg6[%c0_456, %c0_457] : memref<16x128xf32, #tpu.memory_space<vmem>>, vector<16x128xf32>
    tpu.vector_store %arg6[%c0_456, %c0_457], %951 {strides = array<i32>} : memref<16x128xf32, #tpu.memory_space<vmem>>, vector<16x128xf32>,
    return
  }
}

</mosaic_0001>

<llo_original>
// kernel: forward.1
$region0: #{forward.1}
  #allocation0 [shape = 'u32[]', space=smem, size = 0x4, offset = 0x4, fixed_abs, tag = 'smem constant byte address 0x4 - core index']
  #allocation1 [shape = 'u32[72,128]{1,0:T(1,128)}', space=vmem, size = 0x9000, scoped, tag = 'internal scratch']
  #allocation2 [shape = 'f32[8,16,128]{2,1,0:T(8,128)}', space=vmem, size = 0x10000, scoped, tag = 'scratch operand']
  #allocation3 [shape = 'f32[8,16,128]{2,1,0:T(8,128)}', space=vmem, size = 0x10000, scoped, tag = 'scratch operand']
  #allocation4 [shape = 'f32[8,16,128]{2,1,0:T(8,128)}', space=vmem, size = 0x10000, scoped, tag = 'scratch operand']
  #allocation5 [shape = 'f32[8,128]{1,0:T(8,128)}', space=vmem, size = 0x1000, scoped, tag = 'scratch operand']
  %s0 = inlined_call_operand.vmem [shape: s32[16,1], index: 0, kind: input, shape index: {}]
  %s1 = inlined_call_operand.vmem [shape: f32[128,32], index: 1, kind: input, shape index: {}]
  %s2 = inlined_call_operand.vmem [shape: f32[2,8,128], index: 2, kind: input, shape index: {}]
  %s3 = inlined_call_operand.hbm [shape: f32[2,32,128], index: 3, kind: input, shape index: {}]
  %s4 = inlined_call_operand.vmem [shape: f32[2,64,128], index: 4, kind: input, shape index: {}]
  %s5 = inlined_call_operand.hbm [shape: f32[2,48,128], index: 5, kind: input, shape index: {}]
  %s6 = inlined_call_operand.hbm [shape: f32[16,128], index: 6, kind: output, shape index: {}]
  %s7 = sld [smem:[#allocation0]]
  $region42: #{forward.1} parent=0
    _
  %s9 = ssub.s32 1, %s7
  %s10 = scalar_select 0, %s9, %s7
  $region1: #{forward.1} parent=0
    #allocation6 [shape = 'u8[32768]{0}', space=vmem, size = 0x8000, scoped, tag = 'input window, operand 3, single buffered']
    #allocation7 [shape = 's32[1]{0}', space=sflag, size = 0x4, scoped, tag = 'scoped memory for forward.1']
    #allocation8 [shape = 's32[1]{0}', space=sflag, size = 0x4, scoped, tag = 'scoped memory for forward.1']
    #allocation9 [shape = 'u8[49152]{0}', space=vmem, size = 0xc000, scoped, tag = 'input window, operand 5, single buffered']
    #allocation10 [shape = 's32[1]{0}', space=sflag, size = 0x4, scoped, tag = 'scoped memory for forward.1']
    #allocation11 [shape = 'u8[8192]{0}', space=vmem, size = 0x2000, scoped, tag = 'output window, operand 0, single buffered']
    %11 = vsyncpa [#allocation7], 0
    %12 = vsyncpa [#allocation10], 0
    %13 = vsyncpa [#allocation8], 0
    // Predicated region
    $region2: #{forward.1} parent=1 // pred_check
      _
    $region3: #{forward.1} parent=1 // pred_check_branch
      %15 = sbr.rel (0) target = $region5
    $region4: #{forward.1} parent=1 // pred_region
      _
    $region5: #{forward.1} parent=1 // pred_fallthru
      _
    // Predicated region
    $region6: #{forward.1} parent=1 // pred_check
      _
    $region7: #{forward.1} parent=1 // pred_check_branch
      %17 = sbr.rel (0) target = $region9
    $region8: #{forward.1} parent=1 // pred_region
      _
    $region9: #{forward.1} parent=1 // pred_fallthru
      _
    // Predicated region
    $region10: #{forward.1} parent=1 // pred_check
      _
    $region11: #{forward.1} parent=1 // pred_check_branch
      %19 = sbr.rel (0) target = $region13
    $region12: #{forward.1} parent=1 // pred_region
      _
    $region13: #{forward.1} parent=1 // pred_fallthru
      _
    // Predicated region
    $region14: #{forward.1} parent=1 // pred_check
      _
    $region15: #{forward.1} parent=1 // pred_check_branch
      %21 = sbr.rel (0) target = $region17
    $region16: #{forward.1} parent=1 // pred_region
      %23 = vsyncadd [#allocation7], 0
      %s24 = sshll.u32 %s3, 4
      %s25 = int_to_ptr.hbm [resolvable:$true] %s24
      %s26 = sshll.u32 [#allocation6], 4
      %s27 = int_to_ptr.vmem [resolvable:$true] %s26
      %32 = dma.hbm_to_vmem [thread:$0]  %s25, 1024, %s27, [#allocation7], 128, 128, 8
    $region17: #{forward.1} parent=1 // pred_fallthru
      _
    // Predicated region
    $region18: #{forward.1} parent=1 // pred_check
      _
    $region19: #{forward.1} parent=1 // pred_check_branch
      %34 = sbr.rel (0) target = $region21
    $region20: #{forward.1} parent=1 // pred_region
      _
    $region21: #{forward.1} parent=1 // pred_fallthru
      _
    // Predicated region
    $region22: #{forward.1} parent=1 // pred_check
      _
    $region23: #{forward.1} parent=1 // pred_check_branch
      %36 = sbr.rel (0) target = $region25
    $region24: #{forward.1} parent=1 // pred_region
      %38 = vsyncadd [#allocation10], 0
      %s39 = sshll.u32 %s5, 4
      %s40 = int_to_ptr.hbm [resolvable:$true] %s39
      %s41 = sshll.u32 [#allocation9], 4
      %s42 = int_to_ptr.vmem [resolvable:$true] %s41
      %47 = dma.hbm_to_vmem [thread:$0]  %s40, 1536, %s42, [#allocation10], 128, 128, 8
    $region25: #{forward.1} parent=1 // pred_fallthru
      _
    // Predicated region
    $region26: #{forward.1} parent=1 // pred_check
      _
    $region27: #{forward.1} parent=1 // pred_check_branch
      %49 = sbr.rel (0) target = $region29
    $region28: #{forward.1} parent=1 // pred_region
      %51 = dma.done [#allocation7], 1024
    $region29: #{forward.1} parent=1 // pred_fallthru
      _
    // Predicated region
    $region30: #{forward.1} parent=1 // pred_check
      _
    $region31: #{forward.1} parent=1 // pred_check_branch
      %53 = sbr.rel (0) target = $region33
    $region32: #{forward.1} parent=1 // pred_region
      %55 = dma.done [#allocation10], 1536
    $region33: #{forward.1} parent=1 // pred_fallthru
      _
    %v56 = vld [vmem:[%s1] sm:$0xff]
    %v57 = vld [vmem:[%s1 + $0x8] sm:$0xff]
    %v58 = vld [vmem:[%s1 + $0x10] sm:$0xff]
    %v59 = vld [vmem:[%s1 + $0x18] sm:$0xff]
    %v60 = vld [vmem:[%s1 + $0x20] sm:$0xff]
    %v61 = vld [vmem:[%s1 + $0x28] sm:$0xff]
    %v62 = vld [vmem:[%s1 + $0x30] sm:$0xff]
    %v63 = vld [vmem:[%s1 + $0x38] sm:$0xff]
    %v64 = vld [vmem:[%s1 + $0x40] sm:$0xff]
    %v65 = vld [vmem:[%s1 + $0x48] sm:$0xff]
    %v66 = vld [vmem:[%s1 + $0x50] sm:$0xff]
    %v67 = vld [vmem:[%s1 + $0x58] sm:$0xff]
    %v68 = vld [vmem:[%s1 + $0x60] sm:$0xff]
    %v69 = vld [vmem:[%s1 + $0x68] sm:$0xff]
    %v70 = vld [vmem:[%s1 + $0x70] sm:$0xff]
    %v71 = vld [vmem:[%s1 + $0x78] sm:$0xff]
    %v72 = vlaneseq
    %v73 = vand.u32 %v72, 127
    %v74 = vld [vmem:[%s0] sm:$0xff]
    %v75 = vld [vmem:[%s0 + $0x8] sm:$0xff]
    %76 = vset.pattern.permute.xlu0 0
    %77 = vperm.xlu0 %76, %v74
    %v78 = vpop.permute.xlu0 %77
    %79 = vset.pattern.permute.xlu0 0
    %80 = vperm.xlu0 %79, %v75
    %v81 = vpop.permute.xlu0 %80
    %vm82 = vcmp.eq.s32.totalorder %v73, %v78
    %vm83 = vcmp.eq.s32.totalorder %v73, %v81
    %v84 = vsel %vm82, 1, 0
    %v85 = vsel %vm83, 1, 0
    %v86 = vcvt.s32.f32 %v84
    %v87 = vcvt.s32.f32 %v85
    %v88 = vlaneseq
    %v89 = vshrl.u32 %v88, 7
    %v90 = vadd.s32 %v89, 8
    %vm91 = vcmp.lt.s32.totalorder %v89, 0
    %v92 = vsub.s32 0, %v89
    %v93 = vsel %vm91, %v92, %v89
    %v94 = vshrl.u32 %v93, 3
    %v95 = vand.u32 %v93, 7
    %v96 = vsub.s32 0, %v95
    %v97 = vsel %vm91, %v96, %v95
    %vm98 = vcmp.lt.s32.totalorder %v90, 0
    %v99 = vsub.s32 0, %v90
    %v100 = vsel %vm98, %v99, %v90
    %v101 = vshrl.u32 %v100, 3
    %v102 = vand.u32 %v100, 7
    %v103 = vsub.s32 0, %v102
    %v104 = vsel %vm98, %v103, %v102
    %vm105 = vcmp.ne.s32.totalorder %v97, 0
    %vm106 = vcmp.ne.s32.totalorder %v104, 0
    %vm107 = vcmp.lt.s32.totalorder %v97, 0
    %vm108 = vcmp.lt.s32.totalorder %v104, 0
    %vm109 = vmand %vm107, %vm105
    %vm110 = vmand %vm108, %vm106
    %v111 = vadd.s32 %v97, 8
    %v112 = vadd.s32 %v104, 8
    %v113 = vsel %vm109, %v111, %v97
    %v114 = vsel %vm110, %v112, %v104
    %vm115 = vcmp.ge.s32.totalorder %v113, 1
    %vm116 = vcmp.ge.s32.totalorder %v114, 1
    %vm117 = vcmp.ge.s32.totalorder %v113, 2
    %vm118 = vcmp.ge.s32.totalorder %v114, 2
    %vm119 = vcmp.ge.s32.totalorder %v113, 3
    %vm120 = vcmp.ge.s32.totalorder %v114, 3
    %v121 = vld [vmem:[%s2] sm:$0x1]
    %v122 = vld [vmem:[%s2 + $0x1] sm:$0x1]
    %v123 = vld [vmem:[%s2 + $0x2] sm:$0x1]
    %v124 = vld [vmem:[%s2 + $0x3] sm:$0x1]
    %v125 = vld [vmem:[%s2 + $0x4] sm:$0xf]
    %126 = vmatpush.msra.mxu0 %v71
    %127 = vmatpush.msra.mxu0 %v70
    %128 = vmatpush.msra.mxu0 %v69
    %129 = vmatpush.msra.mxu0 %v68
    %130 = vmatpush.msra.mxu0 %v67
    %131 = vmatpush.msra.mxu0 %v66
    %132 = vmatpush.msra.mxu0 %v65
    %133 = vmatpush.msra.mxu0 %v64
    %134 = vmatpush.msra.mxu0 %v63
    %135 = vmatpush.msra.mxu0 %v62
    %136 = vmatpush.msra.mxu0 %v61
    %137 = vmatpush.msra.mxu0 %v60
    %138 = vmatpush.msra.mxu0 %v59
    %139 = vmatpush.msra.mxu0 %v58
    %140 = vmatpush.msra.mxu0 %v57
    %141 = vmatpush.msra.mxu0 %v56
    %142 = vmatmul.f32.gmra.mxu0 %v86
    %v143 = vpop.f32.mrf.mxu0
    %v144 = vadd.f32 0.0, %v143
    %145 = vmatmul.f32.gmra.mxu0 %v87
    %v146 = vpop.f32.mrf.mxu0
    %v147 = vadd.f32 0.0, %v146
    %148 = vdwg.mxu0
    %v149 = vmul.f32 %v144, %v144
    %v150 = vmul.f32 %v147, %v147
    %vm151 = vcmask 261120
    %v152 = vsel %vm151, %v149, 0.0
    %153 = vadd.xlane.f32.xlu0 %v152
    %v154 = vpop.xlane.xlu0 %153
    %v155 = vsel %vm151, %v150, 0.0
    %156 = vadd.xlane.f32.xlu0 %v155
    %v157 = vpop.xlane.xlu0 %156
    %v158 = vrcp.pop 32.0
    %v159 = vmul.f32 32.0, %v158
    %v160 = vsub.f32 1.0, %v159
    %v161 = vmul.f32 %v158, %v160
    %v162 = vadd.f32 %v158, %v161
    %vm163 = vweird.f32 %v158
    %v164 = vsel %vm163, %v158, %v162
    %v165 = vmul.f32 %v154, %v164
    %v166 = vmul.f32 %v157, %v164
    %v167 = vadd.f32 %v165, 1e-05
    %v168 = vadd.f32 %v166, 1e-05
    %v169 = vrsqrt.pop %v167
    %v170 = vmul.f32 %v169, %v167
    %v171 = vmul.f32 %v170, %v169
    %v172 = vmul.f32 0.5, %v171
    %v173 = vsub.f32 1.5, %v172
    %v174 = vmul.f32 %v169, %v173
    %vm175 = vweird.f32 %v167
    %vm176 = vweird.f32 %v169
    %vm177 = vmor %vm175, %vm176
    %v178 = vsel %vm177, %v169, %v174
    %v179 = vrsqrt.pop %v168
    %v180 = vmul.f32 %v179, %v168
    %v181 = vmul.f32 %v180, %v179
    %v182 = vmul.f32 0.5, %v181
    %v183 = vsub.f32 1.5, %v182
    %v184 = vmul.f32 %v179, %v183
    %vm185 = vweird.f32 %v168
    %vm186 = vweird.f32 %v179
    %vm187 = vmor %vm185, %vm186
    %v188 = vsel %vm187, %v179, %v184
    %v189 = vmul.f32 %v144, %v178
    %v190 = vmul.f32 %v147, %v188
    %v191 = vperm.slane %v121, 0
    %v192 = vmul.f32 %v189, %v191
    %v193 = vmul.f32 %v190, %v191
    %v194 = vld [vmem:[#allocation6] sm:$0xff]
    %v195 = vld [vmem:[#allocation6 + $0x8] sm:$0xff]
    %v196 = vld [vmem:[#allocation6 + $0x10] sm:$0xff]
    %v197 = vld [vmem:[#allocation6 + $0x18] sm:$0xff]
    %v199 = vsel %vm151, %v192, 0
    %v202 = vsel %vm151, %v193, 0
    %204 = vmatpush.msra.mxu0 0.0
    %205 = vmatpush.msra.mxu0 0.0
    %206 = vmatpush.msra.mxu0 0.0
    %207 = vmatpush.msra.mxu0 0.0
    %208 = vmatpush.msra.mxu0 0.0
    %209 = vmatpush.msra.mxu0 0.0
    %210 = vmatpush.msra.mxu0 0.0
    %211 = vmatpush.msra.mxu0 0.0
    %212 = vmatpush.msra.mxu0 0.0
    %213 = vmatpush.msra.mxu0 0.0
    %214 = vmatpush.msra.mxu0 0.0
    %215 = vmatpush.msra.mxu0 0.0
    %216 = vmatpush.msra.mxu0 %v197
    %217 = vmatpush.msra.mxu0 %v196
    %218 = vmatpush.msra.mxu0 %v195
    %219 = vmatpush.msra.mxu0 %v194
    %220 = vmatmul.f32.gmra.mxu0 %v199
    %v221 = vpop.f32.mrf.mxu0
    %v222 = vadd.f32 0.0, %v221
    %223 = vmatmul.f32.gmra.mxu0 %v202
    %v224 = vpop.f32.mrf.mxu0
    %v225 = vadd.f32 0.0, %v224
    %226 = vdwg.mxu0
    %v227 = vperm.slane %v125, 3
    %v228 = vmul.f32 %v222, %v227
    %v229 = vmul.f32 %v225, %v227
    %v230 = vperm.slane %v122, 0
    %v231 = vadd.f32 %v230, %v228
    %v232 = vadd.f32 %v230, %v229
    %v233 = vrot.slane %v222, 7
    %v234 = vrot.slane %v225, 7
    %vm235 = vcmp.lt.s32.totalorder %v89, 1
    %v236 = vsel %vm235, %v233, %v234
    %v237 = vsel %vm235, %v234, %v233
    %v238 = vsel %vm115, %v237, 0.0
    %v239 = vsel %vm116, %v236, 0.0
    %v240 = vperm.slane %v125, 2
    %v241 = vmul.f32 %v238, %v240
    %v242 = vmul.f32 %v239, %v240
    %v243 = vadd.f32 %v231, %v241
    %v244 = vadd.f32 %v232, %v242
    %v245 = vrot.slane %v222, 6
    %v246 = vrot.slane %v225, 6
    %vm247 = vcmp.lt.s32.totalorder %v89, 2
    %v248 = vsel %vm247, %v245, %v246
    %v249 = vsel %vm247, %v246, %v245
    %v250 = vsel %vm117, %v249, 0.0
    %v251 = vsel %vm118, %v248, 0.0
    %v252 = vperm.slane %v125, 1
    %v253 = vmul.f32 %v250, %v252
    %v254 = vmul.f32 %v251, %v252
    %v255 = vadd.f32 %v243, %v253
    %v256 = vadd.f32 %v244, %v254
    %v257 = vrot.slane %v222, 5
    %v258 = vrot.slane %v225, 5
    %vm259 = vcmp.lt.s32.totalorder %v89, 3
    %v260 = vsel %vm259, %v257, %v258
    %v261 = vsel %vm259, %v258, %v257
    %v262 = vsel %vm119, %v261, 0.0
    %v263 = vsel %vm120, %v260, 0.0
    %v264 = vperm.slane %v125, 0
    %v265 = vmul.f32 %v262, %v264
    %v266 = vmul.f32 %v263, %v264
    %v267 = vadd.f32 %v255, %v265
    %v268 = vadd.f32 %v256, %v266
    %v269 = vsub.f32 0.0, %v267
    %v270 = vsub.f32 0.0, %v268
    %v271 = vmul.f32 %v269, 1.442695
    %v272 = vpow.pop %v271
    %v273 = vmul.f32 %v270, 1.442695
    %v274 = vpow.pop %v273
    %v275 = vadd.f32 %v272, 1.0
    %v276 = vadd.f32 %v274, 1.0
    %v277 = vrcp.pop %v275
    %v278 = vmul.f32 %v275, %v277
    %v279 = vsub.f32 1.0, %v278
    %v280 = vmul.f32 %v277, %v279
    %v281 = vadd.f32 %v277, %v280
    %vm282 = vweird.f32 %v275
    %vm283 = vweird.f32 %v277
    %vm284 = vmor %vm282, %vm283
    %v285 = vsel %vm284, %v277, %v281
    %v286 = vand.u32 2147483647, %v275
    %vm287 = vcmp.eq.f32.partialorder %v286, 8.507059e+37
    %v288 = vand.u32 %v275, 2147483648
    %v289 = vor.u32 1.1754944e-38, %v288
    %v290 = vsel %vm287, %v289, %v285
    %v291 = vmul.f32 1.0, %v290
    %v292 = vrcp.pop %v276
    %v293 = vmul.f32 %v276, %v292
    %v294 = vsub.f32 1.0, %v293
    %v295 = vmul.f32 %v292, %v294
    %v296 = vadd.f32 %v292, %v295
    %vm297 = vweird.f32 %v276
    %vm298 = vweird.f32 %v292
    %vm299 = vmor %vm297, %vm298
    %v300 = vsel %vm299, %v292, %v296
    %v301 = vand.u32 2147483647, %v276
    %vm302 = vcmp.eq.f32.partialorder %v301, 8.507059e+37
    %v303 = vand.u32 %v276, 2147483648
    %v304 = vor.u32 1.1754944e-38, %v303
    %v305 = vsel %vm302, %v304, %v300
    %v306 = vmul.f32 1.0, %v305
    %v307 = vmul.f32 %v267, %v291
    %v308 = vmul.f32 %v268, %v306
    %v309 = vld [vmem:[%s4] sm:$0xff]
    %v310 = vld [vmem:[%s4 + $0x8] sm:$0xff]
    %v311 = vld [vmem:[%s4 + $0x10] sm:$0xff]
    %v312 = vld [vmem:[%s4 + $0x18] sm:$0xff]
    %v313 = vld [vmem:[%s4 + $0x20] sm:$0xff]
    %v314 = vld [vmem:[%s4 + $0x28] sm:$0xff]
    %v315 = vld [vmem:[%s4 + $0x30] sm:$0xff]
    %v316 = vld [vmem:[%s4 + $0x38] sm:$0xff]
    %v317 = vld [vmem:[#allocation9] sm:$0xff]
    %v318 = vld [vmem:[#allocation9 + $0x8] sm:$0xff]
    %v319 = vld [vmem:[#allocation9 + $0x10] sm:$0xff]
    %v320 = vld [vmem:[#allocation9 + $0x18] sm:$0xff]
    %v321 = vld [vmem:[#allocation9 + $0x20] sm:$0xff]
    %v322 = vld [vmem:[#allocation9 + $0x28] sm:$0xff]
    %v323 = vperm.slane %v123, 0
    %vm324 = vcmask 523264
    %v326 = vsel %vm324, %v307, 0
    %v329 = vsel %vm324, %v308, 0
    %331 = vmatpush.msra.mxu0 0.0
    %332 = vmatpush.msra.mxu0 0.0
    %333 = vmatpush.msra.mxu0 0.0
    %334 = vmatpush.msra.mxu0 0.0
    %335 = vmatpush.msra.mxu0 0.0
    %336 = vmatpush.msra.mxu0 0.0
    %337 = vmatpush.msra.mxu0 0.0
    %338 = vmatpush.msra.mxu0 0.0
    %339 = vmatpush.msra.mxu0 %v316
    %340 = vmatpush.msra.mxu0 %v315
    %341 = vmatpush.msra.mxu0 %v314
    %342 = vmatpush.msra.mxu0 %v313
    %343 = vmatpush.msra.mxu0 %v312
    %344 = vmatpush.msra.mxu0 %v311
    %345 = vmatpush.msra.mxu0 %v310
    %346 = vmatpush.msra.mxu0 %v309
    %347 = vmatmul.f32.gmra.mxu0 %v326
    %v348 = vpop.f32.mrf.mxu0
    %v349 = vadd.f32 %v323, %v348
    %350 = vmatmul.f32.gmra.mxu0 %v329
    %v351 = vpop.f32.mrf.mxu0
    %v352 = vadd.f32 %v323, %v351
    %353 = vdwg.mxu0
    %v354 = vmax.f32 %v349, -20.0
    %v355 = vmax.f32 %v352, -20.0
    %v356 = vmin.f32 %v354, 20.0
    %v357 = vmin.f32 %v355, 20.0
    %v358 = vmul.f32 %v356, 1.442695
    %v359 = vpow.pop %v358
    %v360 = vmul.f32 %v357, 1.442695
    %v361 = vpow.pop %v360
    %v362 = vadd.f32 %v359, 1.0
    %v363 = vadd.f32 %v361, 1.0
    %v364 = vlog2.pop %v362
    %v365 = vmul.f32 %v364, 0.6931472
    %v366 = vlog2.pop %v363
    %v367 = vmul.f32 %v366, 0.6931472
    %vm368 = vcmp.gt.f32.partialorder %v349, 20.0
    %vm369 = vcmp.gt.f32.partialorder %v352, 20.0
    %vm370 = vcmp.lt.f32.partialorder %v349, -20.0
    %vm371 = vcmp.lt.f32.partialorder %v352, -20.0
    %v372 = vmul.f32 %v349, 1.442695
    %v373 = vpow.pop %v372
    %v374 = vmul.f32 %v352, 1.442695
    %v375 = vpow.pop %v374
    %v376 = vsel %vm370, %v373, %v365
    %v377 = vsel %vm371, %v375, %v367
    %v378 = vsel %vm368, %v349, %v376
    %v379 = vsel %vm369, %v352, %v377
    %v380 = vmul.f32 %v378, %v307
    %v381 = vmul.f32 %v379, %v308
    %v383 = vsel %vm324, %v317, 0
    %v386 = vsel %vm324, %v318, 0
    %v389 = vsel %vm324, %v319, 0
    %v392 = vsel %vm324, %v320, 0
    %394 = vmatpush.xpose.msra.mxu0 0.0
    %395 = vmatpush.xpose.msra.mxu0 0.0
    %396 = vmatpush.xpose.msra.mxu0 0.0
    %397 = vmatpush.xpose.msra.mxu0 0.0
    %398 = vmatpush.xpose.msra.mxu0 0.0
    %399 = vmatpush.xpose.msra.mxu0 0.0
    %400 = vmatpush.xpose.msra.mxu0 0.0
    %401 = vmatpush.xpose.msra.mxu0 0.0
    %402 = vmatpush.xpose.msra.mxu0 0.0
    %403 = vmatpush.xpose.msra.mxu0 0.0
    %404 = vmatpush.xpose.msra.mxu0 0.0
    %405 = vmatpush.xpose.msra.mxu0 0.0
    %406 = vmatpush.xpose.msra.mxu0 0.0
    %407 = vmatpush.xpose.msra.mxu0 0.0
    %408 = vmatpush.xpose.msra.mxu0 %v329
    %409 = vmatpush.xpose.msra.mxu0 %v326
    %410 = vmatmul.f32.gmra.mxu0 %v383
    %v411 = vpop.f32.mrf.mxu0
    %v412 = vadd.f32 0.0, %v411
    %413 = vmatmul.f32.gmra.mxu0 %v386
    %v414 = vpop.f32.mrf.mxu0
    %v415 = vadd.f32 0.0, %v414
    %416 = vmatmul.f32.gmra.mxu0 %v389
    %v417 = vpop.f32.mrf.mxu0
    %v418 = vadd.f32 0.0, %v417
    %419 = vmatmul.f32.gmra.mxu0 %v392
    %v420 = vpop.f32.mrf.mxu0
    %v421 = vadd.f32 0.0, %v420
    %422 = vdwg.mxu0
    %424 = vrot.lane.b32.xlu0 %v379, 64
    %v425 = vpop.permute.xlu0 %424
    %v427 = vsel %vm324, %v378, %v425
    %429 = vrot.lane.b32.xlu0 %v381, 64
    %v430 = vpop.permute.xlu0 %429
    %v432 = vsel %vm324, %v380, %v430
    %v433 = vperm.slane %v427, 0
    %v434 = vmul.f32 %v433, %v321
    %v435 = vmul.f32 %v433, %v322
    %v436 = vmul.f32 %v434, 1.442695
    %v437 = vpow.pop %v436
    %v438 = vmul.f32 %v435, 1.442695
    %v439 = vpow.pop %v438
    %440 = vst [vmem:[#allocation2] sm:$0xff] %v437
    %441 = vst [vmem:[#allocation2 + $0x8] sm:$0xff] %v439
    %443 = vset.pattern.permute.xlu0 0
    %444 = vperm.xlu0 %443, %v412
    %v445 = vpop.permute.xlu0 %444
    %448 = vset.pattern.permute.xlu0 0
    %449 = vperm.xlu0 %448, %v415
    %v450 = vpop.permute.xlu0 %449
    %452 = vset.pattern.permute.xlu0 8
    %453 = vperm.xlu0 %452, %v412
    %v454 = vpop.permute.xlu0 %453
    %456 = vset.pattern.permute.xlu0 8
    %457 = vperm.xlu0 %456, %v415
    %v458 = vpop.permute.xlu0 %457
    %v460 = vsel %vm324, %v445, %v454
    %v461 = vsel %vm324, %v450, %v458
    %v462 = vperm.slane %v432, 0
    %v463 = vmul.f32 %v462, %v460
    %v464 = vmul.f32 %v462, %v461
    %465 = vst [vmem:[#allocation3] sm:$0xff] %v463
    %466 = vst [vmem:[#allocation3 + $0x8] sm:$0xff] %v464
    %468 = vset.pattern.permute.xlu0 0
    %469 = vperm.xlu0 %468, %v418
    %v470 = vpop.permute.xlu0 %469
    %473 = vset.pattern.permute.xlu0 0
    %474 = vperm.xlu0 %473, %v421
    %v475 = vpop.permute.xlu0 %474
    %477 = vset.pattern.permute.xlu0 8
    %478 = vperm.xlu0 %477, %v418
    %v479 = vpop.permute.xlu0 %478
    %481 = vset.pattern.permute.xlu0 8
    %482 = vperm.xlu0 %481, %v421
    %v483 = vpop.permute.xlu0 %482
    %v485 = vsel %vm324, %v470, %v479
    %v486 = vsel %vm324, %v475, %v483
    %487 = vst [vmem:[#allocation4] sm:$0xff] %v485
    %488 = vst [vmem:[#allocation4 + $0x8] sm:$0xff] %v486
    %v489 = vperm.slane %v427, 1
    %v490 = vmul.f32 %v489, %v321
    %v491 = vmul.f32 %v489, %v322
    %v492 = vmul.f32 %v490, 1.442695
    %v493 = vpow.pop %v492
    %v494 = vmul.f32 %v491, 1.442695
    %v495 = vpow.pop %v494
    %s496 = scalar_lea.vmem [#allocation2], 16
    %497 = vst [vmem:[%s496] sm:$0xff] %v493
    %498 = vst [vmem:[%s496 + $0x8] sm:$0xff] %v495
    %499 = vset.pattern.permute.xlu0 1
    %500 = vperm.xlu0 %499, %v412
    %v501 = vpop.permute.xlu0 %500
    %503 = vset.pattern.permute.xlu0 1
    %504 = vperm.xlu0 %503, %v415
    %v505 = vpop.permute.xlu0 %504
    %507 = vset.pattern.permute.xlu0 9
    %508 = vperm.xlu0 %507, %v412
    %v509 = vpop.permute.xlu0 %508
    %511 = vset.pattern.permute.xlu0 9
    %512 = vperm.xlu0 %511, %v415
    %v513 = vpop.permute.xlu0 %512
    %v515 = vsel %vm324, %v501, %v509
    %v516 = vsel %vm324, %v505, %v513
    %v517 = vperm.slane %v432, 1
    %v518 = vmul.f32 %v517, %v515
    %v519 = vmul.f32 %v517, %v516
    %s520 = scalar_lea.vmem [#allocation3], 16
    %521 = vst [vmem:[%s520] sm:$0xff] %v518
    %522 = vst [vmem:[%s520 + $0x8] sm:$0xff] %v519
    %523 = vset.pattern.permute.xlu0 1
    %524 = vperm.xlu0 %523, %v418
    %v525 = vpop.permute.xlu0 %524
    %527 = vset.pattern.permute.xlu0 1
    %528 = vperm.xlu0 %527, %v421
    %v529 = vpop.permute.xlu0 %528
    %531 = vset.pattern.permute.xlu0 9
    %532 = vperm.xlu0 %531, %v418
    %v533 = vpop.permute.xlu0 %532
    %535 = vset.pattern.permute.xlu0 9
    %536 = vperm.xlu0 %535, %v421
    %v537 = vpop.permute.xlu0 %536
    %v539 = vsel %vm324, %v525, %v533
    %v540 = vsel %vm324, %v529, %v537
    %s541 = scalar_lea.vmem [#allocation4], 16
    %542 = vst [vmem:[%s541] sm:$0xff] %v539
    %543 = vst [vmem:[%s541 + $0x8] sm:$0xff] %v540
    %v544 = vperm.slane %v427, 2
    %v545 = vmul.f32 %v544, %v321
    %v546 = vmul.f32 %v544, %v322
    %v547 = vmul.f32 %v545, 1.442695
    %v548 = vpow.pop %v547
    %v549 = vmul.f32 %v546, 1.442695
    %v550 = vpow.pop %v549
    %s551 = scalar_lea.vmem [#allocation2], 32
    %552 = vst [vmem:[%s551] sm:$0xff] %v548
    %553 = vst [vmem:[%s551 + $0x8] sm:$0xff] %v550
    %554 = vset.pattern.permute.xlu0 2
    %555 = vperm.xlu0 %554, %v412
    %v556 = vpop.permute.xlu0 %555
    %558 = vset.pattern.permute.xlu0 2
    %559 = vperm.xlu0 %558, %v415
    %v560 = vpop.permute.xlu0 %559
    %562 = vset.pattern.permute.xlu0 10
    %563 = vperm.xlu0 %562, %v412
    %v564 = vpop.permute.xlu0 %563
    %566 = vset.pattern.permute.xlu0 10
    %567 = vperm.xlu0 %566, %v415
    %v568 = vpop.permute.xlu0 %567
    %v570 = vsel %vm324, %v556, %v564
    %v571 = vsel %vm324, %v560, %v568
    %v572 = vperm.slane %v432, 2
    %v573 = vmul.f32 %v572, %v570
    %v574 = vmul.f32 %v572, %v571
    %s575 = scalar_lea.vmem [#allocation3], 32
    %576 = vst [vmem:[%s575] sm:$0xff] %v573
    %577 = vst [vmem:[%s575 + $0x8] sm:$0xff] %v574
    %578 = vset.pattern.permute.xlu0 2
    %579 = vperm.xlu0 %578, %v418
    %v580 = vpop.permute.xlu0 %579
    %582 = vset.pattern.permute.xlu0 2
    %583 = vperm.xlu0 %582, %v421
    %v584 = vpop.permute.xlu0 %583
    %586 = vset.pattern.permute.xlu0 10
    %587 = vperm.xlu0 %586, %v418
    %v588 = vpop.permute.xlu0 %587
    %590 = vset.pattern.permute.xlu0 10
    %591 = vperm.xlu0 %590, %v421
    %v592 = vpop.permute.xlu0 %591
    %v594 = vsel %vm324, %v580, %v588
    %v595 = vsel %vm324, %v584, %v592
    %s596 = scalar_lea.vmem [#allocation4], 32
    %597 = vst [vmem:[%s596] sm:$0xff] %v594
    %598 = vst [vmem:[%s596 + $0x8] sm:$0xff] %v595
    %v599 = vperm.slane %v427, 3
    %v600 = vmul.f32 %v599, %v321
    %v601 = vmul.f32 %v599, %v322
    %v602 = vmul.f32 %v600, 1.442695
    %v603 = vpow.pop %v602
    %v604 = vmul.f32 %v601, 1.442695
    %v605 = vpow.pop %v604
    %s606 = scalar_lea.vmem [#allocation2], 48
    %607 = vst [vmem:[%s606] sm:$0xff] %v603
    %608 = vst [vmem:[%s606 + $0x8] sm:$0xff] %v605
    %609 = vset.pattern.permute.xlu0 3
    %610 = vperm.xlu0 %609, %v412
    %v611 = vpop.permute.xlu0 %610
    %613 = vset.pattern.permute.xlu0 3
    %614 = vperm.xlu0 %613, %v415
    %v615 = vpop.permute.xlu0 %614
    %617 = vset.pattern.permute.xlu0 11
    %618 = vperm.xlu0 %617, %v412
    %v619 = vpop.permute.xlu0 %618
    %621 = vset.pattern.permute.xlu0 11
    %622 = vperm.xlu0 %621, %v415
    %v623 = vpop.permute.xlu0 %622
    %v625 = vsel %vm324, %v611, %v619
    %v626 = vsel %vm324, %v615, %v623
    %v627 = vperm.slane %v432, 3
    %v628 = vmul.f32 %v627, %v625
    %v629 = vmul.f32 %v627, %v626
    %s630 = scalar_lea.vmem [#allocation3], 48
    %631 = vst [vmem:[%s630] sm:$0xff] %v628
    %632 = vst [vmem:[%s630 + $0x8] sm:$0xff] %v629
    %633 = vset.pattern.permute.xlu0 3
    %634 = vperm.xlu0 %633, %v418
    %v635 = vpop.permute.xlu0 %634
    %637 = vset.pattern.permute.xlu0 3
    %638 = vperm.xlu0 %637, %v421
    %v639 = vpop.permute.xlu0 %638
    %641 = vset.pattern.permute.xlu0 11
    %642 = vperm.xlu0 %641, %v418
    %v643 = vpop.permute.xlu0 %642
    %645 = vset.pattern.permute.xlu0 11
    %646 = vperm.xlu0 %645, %v421
    %v647 = vpop.permute.xlu0 %646
    %v649 = vsel %vm324, %v635, %v643
    %v650 = vsel %vm324, %v639, %v647
    %s651 = scalar_lea.vmem [#allocation4], 48
    %652 = vst [vmem:[%s651] sm:$0xff] %v649
    %653 = vst [vmem:[%s651 + $0x8] sm:$0xff] %v650
    %v654 = vperm.slane %v427, 4
    %v655 = vmul.f32 %v654, %v321
    %v656 = vmul.f32 %v654, %v322
    %v657 = vmul.f32 %v655, 1.442695
    %v658 = vpow.pop %v657
    %v659 = vmul.f32 %v656, 1.442695
    %v660 = vpow.pop %v659
    %s661 = scalar_lea.vmem [#allocation2], 64
    %662 = vst [vmem:[%s661] sm:$0xff] %v658
    %663 = vst [vmem:[%s661 + $0x8] sm:$0xff] %v660
    %664 = vset.pattern.permute.xlu0 4
    %665 = vperm.xlu0 %664, %v412
    %v666 = vpop.permute.xlu0 %665
    %668 = vset.pattern.permute.xlu0 4
    %669 = vperm.xlu0 %668, %v415
    %v670 = vpop.permute.xlu0 %669
    %672 = vset.pattern.permute.xlu0 12
    %673 = vperm.xlu0 %672, %v412
    %v674 = vpop.permute.xlu0 %673
    %676 = vset.pattern.permute.xlu0 12
    %677 = vperm.xlu0 %676, %v415
    %v678 = vpop.permute.xlu0 %677
    %v680 = vsel %vm324, %v666, %v674
    %v681 = vsel %vm324, %v670, %v678
    %v682 = vperm.slane %v432, 4
    %v683 = vmul.f32 %v682, %v680
    %v684 = vmul.f32 %v682, %v681
    %s685 = scalar_lea.vmem [#allocation3], 64
    %686 = vst [vmem:[%s685] sm:$0xff] %v683
    %687 = vst [vmem:[%s685 + $0x8] sm:$0xff] %v684
    %688 = vset.pattern.permute.xlu0 4
    %689 = vperm.xlu0 %688, %v418
    %v690 = vpop.permute.xlu0 %689
    %692 = vset.pattern.permute.xlu0 4
    %693 = vperm.xlu0 %692, %v421
    %v694 = vpop.permute.xlu0 %693
    %696 = vset.pattern.permute.xlu0 12
    %697 = vperm.xlu0 %696, %v418
    %v698 = vpop.permute.xlu0 %697
    %700 = vset.pattern.permute.xlu0 12
    %701 = vperm.xlu0 %700, %v421
    %v702 = vpop.permute.xlu0 %701
    %v704 = vsel %vm324, %v690, %v698
    %v705 = vsel %vm324, %v694, %v702
    %s706 = scalar_lea.vmem [#allocation4], 64
    %707 = vst [vmem:[%s706] sm:$0xff] %v704
    %708 = vst [vmem:[%s706 + $0x8] sm:$0xff] %v705
    %v709 = vperm.slane %v427, 5
    %v710 = vmul.f32 %v709, %v321
    %v711 = vmul.f32 %v709, %v322
    %v712 = vmul.f32 %v710, 1.442695
    %v713 = vpow.pop %v712
    %v714 = vmul.f32 %v711, 1.442695
    %v715 = vpow.pop %v714
    %s716 = scalar_lea.vmem [#allocation2], 80
    %717 = vst [vmem:[%s716] sm:$0xff] %v713
    %718 = vst [vmem:[%s716 + $0x8] sm:$0xff] %v715
    %719 = vset.pattern.permute.xlu0 5
    %720 = vperm.xlu0 %719, %v412
    %v721 = vpop.permute.xlu0 %720
    %723 = vset.pattern.permute.xlu0 5
    %724 = vperm.xlu0 %723, %v415
    %v725 = vpop.permute.xlu0 %724
    %727 = vset.pattern.permute.xlu0 13
    %728 = vperm.xlu0 %727, %v412
    %v729 = vpop.permute.xlu0 %728
    %731 = vset.pattern.permute.xlu0 13
    %732 = vperm.xlu0 %731, %v415
    %v733 = vpop.permute.xlu0 %732
    %v735 = vsel %vm324, %v721, %v729
    %v736 = vsel %vm324, %v725, %v733
    %v737 = vperm.slane %v432, 5
    %v738 = vmul.f32 %v737, %v735
    %v739 = vmul.f32 %v737, %v736
    %s740 = scalar_lea.vmem [#allocation3], 80
    %741 = vst [vmem:[%s740] sm:$0xff] %v738
    %742 = vst [vmem:[%s740 + $0x8] sm:$0xff] %v739
    %743 = vset.pattern.permute.xlu0 5
    %744 = vperm.xlu0 %743, %v418
    %v745 = vpop.permute.xlu0 %744
    %747 = vset.pattern.permute.xlu0 5
    %748 = vperm.xlu0 %747, %v421
    %v749 = vpop.permute.xlu0 %748
    %751 = vset.pattern.permute.xlu0 13
    %752 = vperm.xlu0 %751, %v418
    %v753 = vpop.permute.xlu0 %752
    %755 = vset.pattern.permute.xlu0 13
    %756 = vperm.xlu0 %755, %v421
    %v757 = vpop.permute.xlu0 %756
    %v759 = vsel %vm324, %v745, %v753
    %v760 = vsel %vm324, %v749, %v757
    %s761 = scalar_lea.vmem [#allocation4], 80
    %762 = vst [vmem:[%s761] sm:$0xff] %v759
    %763 = vst [vmem:[%s761 + $0x8] sm:$0xff] %v760
    %v764 = vperm.slane %v427, 6
    %v765 = vmul.f32 %v764, %v321
    %v766 = vmul.f32 %v764, %v322
    %v767 = vmul.f32 %v765, 1.442695
    %v768 = vpow.pop %v767
    %v769 = vmul.f32 %v766, 1.442695
    %v770 = vpow.pop %v769
    %s771 = scalar_lea.vmem [#allocation2], 96
    %772 = vst [vmem:[%s771] sm:$0xff] %v768
    %773 = vst [vmem:[%s771 + $0x8] sm:$0xff] %v770
    %774 = vset.pattern.permute.xlu0 6
    %775 = vperm.xlu0 %774, %v412
    %v776 = vpop.permute.xlu0 %775
    %778 = vset.pattern.permute.xlu0 6
    %779 = vperm.xlu0 %778, %v415
    %v780 = vpop.permute.xlu0 %779
    %782 = vset.pattern.permute.xlu0 14
    %783 = vperm.xlu0 %782, %v412
    %v784 = vpop.permute.xlu0 %783
    %786 = vset.pattern.permute.xlu0 14
    %787 = vperm.xlu0 %786, %v415
    %v788 = vpop.permute.xlu0 %787
    %v790 = vsel %vm324, %v776, %v784
    %v791 = vsel %vm324, %v780, %v788
    %v792 = vperm.slane %v432, 6
    %v793 = vmul.f32 %v792, %v790
    %v794 = vmul.f32 %v792, %v791
    %s795 = scalar_lea.vmem [#allocation3], 96
    %796 = vst [vmem:[%s795] sm:$0xff] %v793
    %797 = vst [vmem:[%s795 + $0x8] sm:$0xff] %v794
    %798 = vset.pattern.permute.xlu0 6
    %799 = vperm.xlu0 %798, %v418
    %v800 = vpop.permute.xlu0 %799
    %802 = vset.pattern.permute.xlu0 6
    %803 = vperm.xlu0 %802, %v421
    %v804 = vpop.permute.xlu0 %803
    %806 = vset.pattern.permute.xlu0 14
    %807 = vperm.xlu0 %806, %v418
    %v808 = vpop.permute.xlu0 %807
    %810 = vset.pattern.permute.xlu0 14
    %811 = vperm.xlu0 %810, %v421
    %v812 = vpop.permute.xlu0 %811
    %v814 = vsel %vm324, %v800, %v808
    %v815 = vsel %vm324, %v804, %v812
    %s816 = scalar_lea.vmem [#allocation4], 96
    %817 = vst [vmem:[%s816] sm:$0xff] %v814
    %818 = vst [vmem:[%s816 + $0x8] sm:$0xff] %v815
    %v819 = vperm.slane %v427, 7
    %v820 = vmul.f32 %v819, %v321
    %v821 = vmul.f32 %v819, %v322
    %v822 = vmul.f32 %v820, 1.442695
    %v823 = vpow.pop %v822
    %v824 = vmul.f32 %v821, 1.442695
    %v825 = vpow.pop %v824
    %s826 = scalar_lea.vmem [#allocation2], 112
    %827 = vst [vmem:[%s826] sm:$0xff] %v823
    %828 = vst [vmem:[%s826 + $0x8] sm:$0xff] %v825
    %829 = vset.pattern.permute.xlu0 7
    %830 = vperm.xlu0 %829, %v412
    %v831 = vpop.permute.xlu0 %830
    %833 = vset.pattern.permute.xlu0 7
    %834 = vperm.xlu0 %833, %v415
    %v835 = vpop.permute.xlu0 %834
    %837 = vset.pattern.permute.xlu0 15
    %838 = vperm.xlu0 %837, %v412
    %v839 = vpop.permute.xlu0 %838
    %841 = vset.pattern.permute.xlu0 15
    %842 = vperm.xlu0 %841, %v415
    %v843 = vpop.permute.xlu0 %842
    %v845 = vsel %vm324, %v831, %v839
    %v846 = vsel %vm324, %v835, %v843
    %v847 = vperm.slane %v432, 7
    %v848 = vmul.f32 %v847, %v845
    %v849 = vmul.f32 %v847, %v846
    %s850 = scalar_lea.vmem [#allocation3], 112
    %851 = vst [vmem:[%s850] sm:$0xff] %v848
    %852 = vst [vmem:[%s850 + $0x8] sm:$0xff] %v849
    %853 = vset.pattern.permute.xlu0 7
    %854 = vperm.xlu0 %853, %v418
    %v855 = vpop.permute.xlu0 %854
    %857 = vset.pattern.permute.xlu0 7
    %858 = vperm.xlu0 %857, %v421
    %v859 = vpop.permute.xlu0 %858
    %861 = vset.pattern.permute.xlu0 15
    %862 = vperm.xlu0 %861, %v418
    %v863 = vpop.permute.xlu0 %862
    %865 = vset.pattern.permute.xlu0 15
    %866 = vperm.xlu0 %865, %v421
    %v867 = vpop.permute.xlu0 %866
    %v869 = vsel %vm324, %v855, %v863
    %v870 = vsel %vm324, %v859, %v867
    %s871 = scalar_lea.vmem [#allocation4], 112
    %872 = vst [vmem:[%s871] sm:$0xff] %v869
    %873 = vst [vmem:[%s871 + $0x8] sm:$0xff] %v870
    %v874 = vld [vmem:[#allocation2] sm:$0xff]
    %v875 = vld [vmem:[#allocation2 + $0x8] sm:$0xff]
    %v876 = vmul.f32 %v874, 0.0
    %v877 = vmul.f32 %v875, 0.0
    %v878 = vld [vmem:[#allocation3] sm:$0xff]
    %v879 = vld [vmem:[#allocation3 + $0x8] sm:$0xff]
    %v880 = vadd.f32 %v876, %v878
    %v881 = vadd.f32 %v877, %v879
    %v882 = vld [vmem:[#allocation4] sm:$0xff]
    %v883 = vld [vmem:[#allocation4 + $0x8] sm:$0xff]
    %v884 = vmul.f32 %v880, %v882
    %v885 = vmul.f32 %v881, %v883
    %v886 = vadd.f32 %v884, %v885
    %v887 = vrot.slane %v886, 4
    %v888 = vadd.f32 %v886, %v887
    %v889 = vrot.slane %v888, 2
    %v890 = vadd.f32 %v888, %v889
    %v891 = vrot.slane %v890, 1
    %v892 = vadd.f32 %v890, %v891
    %893 = vst [vmem:[#allocation5] sm:$0x1] %v892
    %v894 = vld [vmem:[%s496] sm:$0xff]
    %v895 = vld [vmem:[%s496 + $0x8] sm:$0xff]
    %v896 = vmul.f32 %v894, %v880
    %v897 = vmul.f32 %v895, %v881
    %v898 = vld [vmem:[%s520] sm:$0xff]
    %v899 = vld [vmem:[%s520 + $0x8] sm:$0xff]
    %v900 = vadd.f32 %v896, %v898
    %v901 = vadd.f32 %v897, %v899
    %v902 = vld [vmem:[%s541] sm:$0xff]
    %v903 = vld [vmem:[%s541 + $0x8] sm:$0xff]
    %v904 = vmul.f32 %v900, %v902
    %v905 = vmul.f32 %v901, %v903
    %v906 = vadd.f32 %v904, %v905
    %v907 = vrot.slane %v906, 4
    %v908 = vadd.f32 %v906, %v907
    %v909 = vrot.slane %v908, 2
    %v910 = vadd.f32 %v908, %v909
    %v911 = vrot.slane %v910, 1
    %v912 = vadd.f32 %v910, %v911
    %913 = vst [vmem:[#allocation5 + $0x1] sm:$0x1] %v912
    %v914 = vld [vmem:[%s551] sm:$0xff]
    %v915 = vld [vmem:[%s551 + $0x8] sm:$0xff]
    %v916 = vmul.f32 %v914, %v900
    %v917 = vmul.f32 %v915, %v901
    %v918 = vld [vmem:[%s575] sm:$0xff]
    %v919 = vld [vmem:[%s575 + $0x8] sm:$0xff]
    %v920 = vadd.f32 %v916, %v918
    %v921 = vadd.f32 %v917, %v919
    %v922 = vld [vmem:[%s596] sm:$0xff]
    %v923 = vld [vmem:[%s596 + $0x8] sm:$0xff]
    %v924 = vmul.f32 %v920, %v922
    %v925 = vmul.f32 %v921, %v923
    %v926 = vadd.f32 %v924, %v925
    %v927 = vrot.slane %v926, 4
    %v928 = vadd.f32 %v926, %v927
    %v929 = vrot.slane %v928, 2
    %v930 = vadd.f32 %v928, %v929
    %v931 = vrot.slane %v930, 1
    %v932 = vadd.f32 %v930, %v931
    %933 = vst [vmem:[#allocation5 + $0x2] sm:$0x1] %v932
    %v934 = vld [vmem:[%s606] sm:$0xff]
    %v935 = vld [vmem:[%s606 + $0x8] sm:$0xff]
    %v936 = vmul.f32 %v934, %v920
    %v937 = vmul.f32 %v935, %v921
    %v938 = vld [vmem:[%s630] sm:$0xff]
    %v939 = vld [vmem:[%s630 + $0x8] sm:$0xff]
    %v940 = vadd.f32 %v936, %v938
    %v941 = vadd.f32 %v937, %v939
    %v942 = vld [vmem:[%s651] sm:$0xff]
    %v943 = vld [vmem:[%s651 + $0x8] sm:$0xff]
    %v944 = vmul.f32 %v940, %v942
    %v945 = vmul.f32 %v941, %v943
    %v946 = vadd.f32 %v944, %v945
    %v947 = vrot.slane %v946, 4
    %v948 = vadd.f32 %v946, %v947
    %v949 = vrot.slane %v948, 2
    %v950 = vadd.f32 %v948, %v949
    %v951 = vrot.slane %v950, 1
    %v952 = vadd.f32 %v950, %v951
    %953 = vst [vmem:[#allocation5 + $0x3] sm:$0x1] %v952
    %v954 = vld [vmem:[%s661] sm:$0xff]
    %v955 = vld [vmem:[%s661 + $0x8] sm:$0xff]
    %v956 = vmul.f32 %v954, %v940
    %v957 = vmul.f32 %v955, %v941
    %v958 = vld [vmem:[%s685] sm:$0xff]
    %v959 = vld [vmem:[%s685 + $0x8] sm:$0xff]
    %v960 = vadd.f32 %v956, %v958
    %v961 = vadd.f32 %v957, %v959
    %v962 = vld [vmem:[%s706] sm:$0xff]
    %v963 = vld [vmem:[%s706 + $0x8] sm:$0xff]
    %v964 = vmul.f32 %v960, %v962
    %v965 = vmul.f32 %v961, %v963
    %v966 = vadd.f32 %v964, %v965
    %v967 = vrot.slane %v966, 4
    %v968 = vadd.f32 %v966, %v967
    %v969 = vrot.slane %v968, 2
    %v970 = vadd.f32 %v968, %v969
    %v971 = vrot.slane %v970, 1
    %v972 = vadd.f32 %v970, %v971
    %973 = vst [vmem:[#allocation5 + $0x4] sm:$0x1] %v972
    %v974 = vld [vmem:[%s716] sm:$0xff]
    %v975 = vld [vmem:[%s716 + $0x8] sm:$0xff]
    %v976 = vmul.f32 %v974, %v960
    %v977 = vmul.f32 %v975, %v961
    %v978 = vld [vmem:[%s740] sm:$0xff]
    %v979 = vld [vmem:[%s740 + $0x8] sm:$0xff]
    %v980 = vadd.f32 %v976, %v978
    %v981 = vadd.f32 %v977, %v979
    %v982 = vld [vmem:[%s761] sm:$0xff]
    %v983 = vld [vmem:[%s761 + $0x8] sm:$0xff]
    %v984 = vmul.f32 %v980, %v982
    %v985 = vmul.f32 %v981, %v983
    %v986 = vadd.f32 %v984, %v985
    %v987 = vrot.slane %v986, 4
    %v988 = vadd.f32 %v986, %v987
    %v989 = vrot.slane %v988, 2
    %v990 = vadd.f32 %v988, %v989
    %v991 = vrot.slane %v990, 1
    %v992 = vadd.f32 %v990, %v991
    %993 = vst [vmem:[#allocation5 + $0x5] sm:$0x1] %v992
    %v994 = vld [vmem:[%s771] sm:$0xff]
    %v995 = vld [vmem:[%s771 + $0x8] sm:$0xff]
    %v996 = vmul.f32 %v994, %v980
    %v997 = vmul.f32 %v995, %v981
    %v998 = vld [vmem:[%s795] sm:$0xff]
    %v999 = vld [vmem:[%s795 + $0x8] sm:$0xff]
    %v1000 = vadd.f32 %v996, %v998
    %v1001 = vadd.f32 %v997, %v999
    %v1002 = vld [vmem:[%s816] sm:$0xff]
    %v1003 = vld [vmem:[%s816 + $0x8] sm:$0xff]
    %v1004 = vmul.f32 %v1000, %v1002
    %v1005 = vmul.f32 %v1001, %v1003
    %v1006 = vadd.f32 %v1004, %v1005
    %v1007 = vrot.slane %v1006, 4
    %v1008 = vadd.f32 %v1006, %v1007
    %v1009 = vrot.slane %v1008, 2
    %v1010 = vadd.f32 %v1008, %v1009
    %v1011 = vrot.slane %v1010, 1
    %v1012 = vadd.f32 %v1010, %v1011
    %1013 = vst [vmem:[#allocation5 + $0x6] sm:$0x1] %v1012
    %v1014 = vld [vmem:[%s826] sm:$0xff]
    %v1015 = vld [vmem:[%s826 + $0x8] sm:$0xff]
    %v1016 = vmul.f32 %v1014, %v1000
    %v1017 = vmul.f32 %v1015, %v1001
    %v1018 = vld [vmem:[%s850] sm:$0xff]
    %v1019 = vld [vmem:[%s850 + $0x8] sm:$0xff]
    %v1020 = vadd.f32 %v1016, %v1018
    %v1021 = vadd.f32 %v1017, %v1019
    %v1022 = vld [vmem:[%s871] sm:$0xff]
    %v1023 = vld [vmem:[%s871 + $0x8] sm:$0xff]
    %v1024 = vmul.f32 %v1020, %v1022
    %v1025 = vmul.f32 %v1021, %v1023
    %v1026 = vadd.f32 %v1024, %v1025
    %v1027 = vrot.slane %v1026, 4
    %v1028 = vadd.f32 %v1026, %v1027
    %v1029 = vrot.slane %v1028, 2
    %v1030 = vadd.f32 %v1028, %v1029
    %v1031 = vrot.slane %v1030, 1
    %v1032 = vadd.f32 %v1030, %v1031
    %1033 = vst [vmem:[#allocation5 + $0x7] sm:$0x1] %v1032
    %v1034 = vld [vmem:[#allocation5] sm:$0xff]
    %1036 = vrot.lane.b32.xlu0 %v1034, 64
    %v1037 = vpop.permute.xlu0 %1036
    %v1039 = vperm.slane %v124, 0
    %v1040 = vmul.f32 %v307, %v1039
    %v1041 = vmul.f32 %v308, %v1039
    %v1042 = vadd.f32 %v1034, %v1040
    %v1043 = vadd.f32 %v1037, %v1041
    %v1044 = vsub.f32 0.0, %v222
    %v1045 = vsub.f32 0.0, %v225
    %v1046 = vmul.f32 %v1044, 1.442695
    %v1047 = vpow.pop %v1046
    %v1048 = vmul.f32 %v1045, 1.442695
    %v1049 = vpow.pop %v1048
    %v1050 = vadd.f32 %v1047, 1.0
    %v1051 = vadd.f32 %v1049, 1.0
    %v1052 = vrcp.pop %v1050
    %v1053 = vmul.f32 %v1050, %v1052
    %v1054 = vsub.f32 1.0, %v1053
    %v1055 = vmul.f32 %v1052, %v1054
    %v1056 = vadd.f32 %v1052, %v1055
    %vm1057 = vweird.f32 %v1050
    %vm1058 = vweird.f32 %v1052
    %vm1059 = vmor %vm1057, %vm1058
    %v1060 = vsel %vm1059, %v1052, %v1056
    %v1061 = vand.u32 2147483647, %v1050
    %vm1062 = vcmp.eq.f32.partialorder %v1061, 8.507059e+37
    %v1063 = vand.u32 %v1050, 2147483648
    %v1064 = vor.u32 1.1754944e-38, %v1063
    %v1065 = vsel %vm1062, %v1064, %v1060
    %v1066 = vmul.f32 1.0, %v1065
    %v1067 = vrcp.pop %v1051
    %v1068 = vmul.f32 %v1051, %v1067
    %v1069 = vsub.f32 1.0, %v1068
    %v1070 = vmul.f32 %v1067, %v1069
    %v1071 = vadd.f32 %v1067, %v1070
    %vm1072 = vweird.f32 %v1051
    %vm1073 = vweird.f32 %v1067
    %vm1074 = vmor %vm1072, %vm1073
    %v1075 = vsel %vm1074, %v1067, %v1071
    %v1076 = vand.u32 2147483647, %v1051
    %vm1077 = vcmp.eq.f32.partialorder %v1076, 8.507059e+37
    %v1078 = vand.u32 %v1051, 2147483648
    %v1079 = vor.u32 1.1754944e-38, %v1078
    %v1080 = vsel %vm1077, %v1079, %v1075
    %v1081 = vmul.f32 1.0, %v1080
    %v1082 = vmul.f32 %v222, %v1066
    %v1083 = vmul.f32 %v225, %v1081
    %1086 = vrot.lane.b32.xlu0 %v1082, 64
    %v1087 = vpop.permute.xlu0 %1086
    %1088 = vrot.lane.b32.xlu0 %v1083, 64
    %v1089 = vpop.permute.xlu0 %1088
    %v1092 = vmul.f32 %v1042, %v1087
    %v1093 = vmul.f32 %v1043, %v1089
    %s1094 = scalar_lea.vmem %s2, 8
    %v1095 = vld [vmem:[%s1094] sm:$0x1]
    %v1096 = vld [vmem:[%s1094 + $0x1] sm:$0x1]
    %v1097 = vld [vmem:[%s1094 + $0x2] sm:$0x1]
    %v1098 = vld [vmem:[%s1094 + $0x3] sm:$0x1]
    %v1099 = vld [vmem:[%s1094 + $0x4] sm:$0xf]
    %1108 = vrot.lane.b32.xlu0 %v309, 64
    %v1109 = vpop.permute.xlu0 %1108
    %1110 = vrot.lane.b32.xlu0 %v310, 64
    %v1111 = vpop.permute.xlu0 %1110
    %1112 = vrot.lane.b32.xlu0 %v311, 64
    %v1113 = vpop.permute.xlu0 %1112
    %1114 = vrot.lane.b32.xlu0 %v312, 64
    %v1115 = vpop.permute.xlu0 %1114
    %1116 = vrot.lane.b32.xlu0 %v313, 64
    %v1117 = vpop.permute.xlu0 %1116
    %1118 = vrot.lane.b32.xlu0 %v314, 64
    %v1119 = vpop.permute.xlu0 %1118
    %1120 = vrot.lane.b32.xlu0 %v315, 64
    %v1121 = vpop.permute.xlu0 %1120
    %1122 = vrot.lane.b32.xlu0 %v316, 64
    %v1123 = vpop.permute.xlu0 %1122
    %v1133 = vsel %vm324, %v1092, 0
    %v1136 = vsel %vm324, %v1093, 0
    %1138 = vmatpush.msra.mxu0 0.0
    %1139 = vmatpush.msra.mxu0 0.0
    %1140 = vmatpush.msra.mxu0 0.0
    %1141 = vmatpush.msra.mxu0 0.0
    %1142 = vmatpush.msra.mxu0 0.0
    %1143 = vmatpush.msra.mxu0 0.0
    %1144 = vmatpush.msra.mxu0 0.0
    %1145 = vmatpush.msra.mxu0 0.0
    %1146 = vmatpush.msra.mxu0 %v1123
    %1147 = vmatpush.msra.mxu0 %v1121
    %1148 = vmatpush.msra.mxu0 %v1119
    %1149 = vmatpush.msra.mxu0 %v1117
    %1150 = vmatpush.msra.mxu0 %v1115
    %1151 = vmatpush.msra.mxu0 %v1113
    %1152 = vmatpush.msra.mxu0 %v1111
    %1153 = vmatpush.msra.mxu0 %v1109
    %1154 = vmatmul.f32.gmra.mxu0 %v1133
    %v1155 = vpop.f32.mrf.mxu0
    %v1156 = vadd.f32 %v144, %v1155
    %1157 = vmatmul.f32.gmra.mxu0 %v1136
    %v1158 = vpop.f32.mrf.mxu0
    %v1159 = vadd.f32 %v147, %v1158
    %1160 = vdwg.mxu0
    %v1161 = vmul.f32 %v1156, %v1156
    %v1162 = vmul.f32 %v1159, %v1159
    %v1163 = vsel %vm151, %v1161, 0.0
    %1164 = vadd.xlane.f32.xlu0 %v1163
    %v1165 = vpop.xlane.xlu0 %1164
    %v1166 = vsel %vm151, %v1162, 0.0
    %1167 = vadd.xlane.f32.xlu0 %v1166
    %v1168 = vpop.xlane.xlu0 %1167
    %v1169 = vmul.f32 %v1165, %v164
    %v1170 = vmul.f32 %v1168, %v164
    %v1171 = vadd.f32 %v1169, 1e-05
    %v1172 = vadd.f32 %v1170, 1e-05
    %v1173 = vrsqrt.pop %v1171
    %v1174 = vmul.f32 %v1173, %v1171
    %v1175 = vmul.f32 %v1174, %v1173
    %v1176 = vmul.f32 0.5, %v1175
    %v1177 = vsub.f32 1.5, %v1176
    %v1178 = vmul.f32 %v1173, %v1177
    %vm1179 = vweird.f32 %v1171
    %vm1180 = vweird.f32 %v1173
    %vm1181 = vmor %vm1179, %vm1180
    %v1182 = vsel %vm1181, %v1173, %v1178
    %v1183 = vrsqrt.pop %v1172
    %v1184 = vmul.f32 %v1183, %v1172
    %v1185 = vmul.f32 %v1184, %v1183
    %v1186 = vmul.f32 0.5, %v1185
    %v1187 = vsub.f32 1.5, %v1186
    %v1188 = vmul.f32 %v1183, %v1187
    %vm1189 = vweird.f32 %v1172
    %vm1190 = vweird.f32 %v1183
    %vm1191 = vmor %vm1189, %vm1190
    %v1192 = vsel %vm1191, %v1183, %v1188
    %v1193 = vmul.f32 %v1156, %v1182
    %v1194 = vmul.f32 %v1159, %v1192
    %v1195 = vperm.slane %v1095, 0
    %v1196 = vmul.f32 %v1193, %v1195
    %v1197 = vmul.f32 %v1194, %v1195
    %s1198 = scalar_lea.vmem [#allocation6], 32
    %v1199 = vld [vmem:[%s1198] sm:$0xff]
    %v1200 = vld [vmem:[%s1198 + $0x8] sm:$0xff]
    %v1201 = vld [vmem:[%s1198 + $0x10] sm:$0xff]
    %v1202 = vld [vmem:[%s1198 + $0x18] sm:$0xff]
    %v1204 = vsel %vm151, %v1196, 0
    %v1207 = vsel %vm151, %v1197, 0
    %1209 = vmatpush.msra.mxu0 0.0
    %1210 = vmatpush.msra.mxu0 0.0
    %1211 = vmatpush.msra.mxu0 0.0
    %1212 = vmatpush.msra.mxu0 0.0
    %1213 = vmatpush.msra.mxu0 0.0
    %1214 = vmatpush.msra.mxu0 0.0
    %1215 = vmatpush.msra.mxu0 0.0
    %1216 = vmatpush.msra.mxu0 0.0
    %1217 = vmatpush.msra.mxu0 0.0
    %1218 = vmatpush.msra.mxu0 0.0
    %1219 = vmatpush.msra.mxu0 0.0
    %1220 = vmatpush.msra.mxu0 0.0
    %1221 = vmatpush.msra.mxu0 %v1202
    %1222 = vmatpush.msra.mxu0 %v1201
    %1223 = vmatpush.msra.mxu0 %v1200
    %1224 = vmatpush.msra.mxu0 %v1199
    %1225 = vmatmul.f32.gmra.mxu0 %v1204
    %v1226 = vpop.f32.mrf.mxu0
    %v1227 = vadd.f32 0.0, %v1226
    %1228 = vmatmul.f32.gmra.mxu0 %v1207
    %v1229 = vpop.f32.mrf.mxu0
    %v1230 = vadd.f32 0.0, %v1229
    %1231 = vdwg.mxu0
    %v1232 = vperm.slane %v1099, 3
    %v1233 = vmul.f32 %v1227, %v1232
    %v1234 = vmul.f32 %v1230, %v1232
    %v1235 = vperm.slane %v1096, 0
    %v1236 = vadd.f32 %v1235, %v1233
    %v1237 = vadd.f32 %v1235, %v1234
    %v1238 = vrot.slane %v1227, 7
    %v1239 = vrot.slane %v1230, 7
    %v1240 = vsel %vm235, %v1238, %v1239
    %v1241 = vsel %vm235, %v1239, %v1238
    %v1242 = vsel %vm115, %v1241, 0.0
    %v1243 = vsel %vm116, %v1240, 0.0
    %v1244 = vperm.slane %v1099, 2
    %v1245 = vmul.f32 %v1242, %v1244
    %v1246 = vmul.f32 %v1243, %v1244
    %v1247 = vadd.f32 %v1236, %v1245
    %v1248 = vadd.f32 %v1237, %v1246
    %v1249 = vrot.slane %v1227, 6
    %v1250 = vrot.slane %v1230, 6
    %v1251 = vsel %vm247, %v1249, %v1250
    %v1252 = vsel %vm247, %v1250, %v1249
    %v1253 = vsel %vm117, %v1252, 0.0
    %v1254 = vsel %vm118, %v1251, 0.0
    %v1255 = vperm.slane %v1099, 1
    %v1256 = vmul.f32 %v1253, %v1255
    %v1257 = vmul.f32 %v1254, %v1255
    %v1258 = vadd.f32 %v1247, %v1256
    %v1259 = vadd.f32 %v1248, %v1257
    %v1260 = vrot.slane %v1227, 5
    %v1261 = vrot.slane %v1230, 5
    %v1262 = vsel %vm259, %v1260, %v1261
    %v1263 = vsel %vm259, %v1261, %v1260
    %v1264 = vsel %vm119, %v1263, 0.0
    %v1265 = vsel %vm120, %v1262, 0.0
    %v1266 = vperm.slane %v1099, 0
    %v1267 = vmul.f32 %v1264, %v1266
    %v1268 = vmul.f32 %v1265, %v1266
    %v1269 = vadd.f32 %v1258, %v1267
    %v1270 = vadd.f32 %v1259, %v1268
    %v1271 = vsub.f32 0.0, %v1269
    %v1272 = vsub.f32 0.0, %v1270
    %v1273 = vmul.f32 %v1271, 1.442695
    %v1274 = vpow.pop %v1273
    %v1275 = vmul.f32 %v1272, 1.442695
    %v1276 = vpow.pop %v1275
    %v1277 = vadd.f32 %v1274, 1.0
    %v1278 = vadd.f32 %v1276, 1.0
    %v1279 = vrcp.pop %v1277
    %v1280 = vmul.f32 %v1277, %v1279
    %v1281 = vsub.f32 1.0, %v1280
    %v1282 = vmul.f32 %v1279, %v1281
    %v1283 = vadd.f32 %v1279, %v1282
    %vm1284 = vweird.f32 %v1277
    %vm1285 = vweird.f32 %v1279
    %vm1286 = vmor %vm1284, %vm1285
    %v1287 = vsel %vm1286, %v1279, %v1283
    %v1288 = vand.u32 2147483647, %v1277
    %vm1289 = vcmp.eq.f32.partialorder %v1288, 8.507059e+37
    %v1290 = vand.u32 %v1277, 2147483648
    %v1291 = vor.u32 1.1754944e-38, %v1290
    %v1292 = vsel %vm1289, %v1291, %v1287
    %v1293 = vmul.f32 1.0, %v1292
    %v1294 = vrcp.pop %v1278
    %v1295 = vmul.f32 %v1278, %v1294
    %v1296 = vsub.f32 1.0, %v1295
    %v1297 = vmul.f32 %v1294, %v1296
    %v1298 = vadd.f32 %v1294, %v1297
    %vm1299 = vweird.f32 %v1278
    %vm1300 = vweird.f32 %v1294
    %vm1301 = vmor %vm1299, %vm1300
    %v1302 = vsel %vm1301, %v1294, %v1298
    %v1303 = vand.u32 2147483647, %v1278
    %vm1304 = vcmp.eq.f32.partialorder %v1303, 8.507059e+37
    %v1305 = vand.u32 %v1278, 2147483648
    %v1306 = vor.u32 1.1754944e-38, %v1305
    %v1307 = vsel %vm1304, %v1306, %v1302
    %v1308 = vmul.f32 1.0, %v1307
    %v1309 = vmul.f32 %v1269, %v1293
    %v1310 = vmul.f32 %v1270, %v1308
    %s1311 = scalar_lea.vmem %s4, 64
    %v1312 = vld [vmem:[%s1311] sm:$0xff]
    %v1313 = vld [vmem:[%s1311 + $0x8] sm:$0xff]
    %v1314 = vld [vmem:[%s1311 + $0x10] sm:$0xff]
    %v1315 = vld [vmem:[%s1311 + $0x18] sm:$0xff]
    %v1316 = vld [vmem:[%s1311 + $0x20] sm:$0xff]
    %v1317 = vld [vmem:[%s1311 + $0x28] sm:$0xff]
    %v1318 = vld [vmem:[%s1311 + $0x30] sm:$0xff]
    %v1319 = vld [vmem:[%s1311 + $0x38] sm:$0xff]
    %s1320 = scalar_lea.vmem [#allocation9], 48
    %v1321 = vld [vmem:[%s1320] sm:$0xff]
    %v1322 = vld [vmem:[%s1320 + $0x8] sm:$0xff]
    %v1323 = vld [vmem:[%s1320 + $0x10] sm:$0xff]
    %v1324 = vld [vmem:[%s1320 + $0x18] sm:$0xff]
    %v1325 = vld [vmem:[%s1320 + $0x20] sm:$0xff]
    %v1326 = vld [vmem:[%s1320 + $0x28] sm:$0xff]
    %v1327 = vperm.slane %v1097, 0
    %v1329 = vsel %vm324, %v1309, 0
    %v1332 = vsel %vm324, %v1310, 0
    %1334 = vmatpush.msra.mxu0 0.0
    %1335 = vmatpush.msra.mxu0 0.0
    %1336 = vmatpush.msra.mxu0 0.0
    %1337 = vmatpush.msra.mxu0 0.0
    %1338 = vmatpush.msra.mxu0 0.0
    %1339 = vmatpush.msra.mxu0 0.0
    %1340 = vmatpush.msra.mxu0 0.0
    %1341 = vmatpush.msra.mxu0 0.0
    %1342 = vmatpush.msra.mxu0 %v1319
    %1343 = vmatpush.msra.mxu0 %v1318
    %1344 = vmatpush.msra.mxu0 %v1317
    %1345 = vmatpush.msra.mxu0 %v1316
    %1346 = vmatpush.msra.mxu0 %v1315
    %1347 = vmatpush.msra.mxu0 %v1314
    %1348 = vmatpush.msra.mxu0 %v1313
    %1349 = vmatpush.msra.mxu0 %v1312
    %1350 = vmatmul.f32.gmra.mxu0 %v1329
    %v1351 = vpop.f32.mrf.mxu0
    %v1352 = vadd.f32 %v1327, %v1351
    %1353 = vmatmul.f32.gmra.mxu0 %v1332
    %v1354 = vpop.f32.mrf.mxu0
    %v1355 = vadd.f32 %v1327, %v1354
    %1356 = vdwg.mxu0
    %v1357 = vmax.f32 %v1352, -20.0
    %v1358 = vmax.f32 %v1355, -20.0
    %v1359 = vmin.f32 %v1357, 20.0
    %v1360 = vmin.f32 %v1358, 20.0
    %v1361 = vmul.f32 %v1359, 1.442695
    %v1362 = vpow.pop %v1361
    %v1363 = vmul.f32 %v1360, 1.442695
    %v1364 = vpow.pop %v1363
    %v1365 = vadd.f32 %v1362, 1.0
    %v1366 = vadd.f32 %v1364, 1.0
    %v1367 = vlog2.pop %v1365
    %v1368 = vmul.f32 %v1367, 0.6931472
    %v1369 = vlog2.pop %v1366
    %v1370 = vmul.f32 %v1369, 0.6931472
    %vm1371 = vcmp.gt.f32.partialorder %v1352, 20.0
    %vm1372 = vcmp.gt.f32.partialorder %v1355, 20.0
    %vm1373 = vcmp.lt.f32.partialorder %v1352, -20.0
    %vm1374 = vcmp.lt.f32.partialorder %v1355, -20.0
    %v1375 = vmul.f32 %v1352, 1.442695
    %v1376 = vpow.pop %v1375
    %v1377 = vmul.f32 %v1355, 1.442695
    %v1378 = vpow.pop %v1377
    %v1379 = vsel %vm1373, %v1376, %v1368
    %v1380 = vsel %vm1374, %v1378, %v1370
    %v1381 = vsel %vm1371, %v1352, %v1379
    %v1382 = vsel %vm1372, %v1355, %v1380
    %v1383 = vmul.f32 %v1381, %v1309
    %v1384 = vmul.f32 %v1382, %v1310
    %v1386 = vsel %vm324, %v1321, 0
    %v1389 = vsel %vm324, %v1322, 0
    %v1392 = vsel %vm324, %v1323, 0
    %v1395 = vsel %vm324, %v1324, 0
    %1397 = vmatpush.xpose.msra.mxu0 0.0
    %1398 = vmatpush.xpose.msra.mxu0 0.0
    %1399 = vmatpush.xpose.msra.mxu0 0.0
    %1400 = vmatpush.xpose.msra.mxu0 0.0
    %1401 = vmatpush.xpose.msra.mxu0 0.0
    %1402 = vmatpush.xpose.msra.mxu0 0.0
    %1403 = vmatpush.xpose.msra.mxu0 0.0
    %1404 = vmatpush.xpose.msra.mxu0 0.0
    %1405 = vmatpush.xpose.msra.mxu0 0.0
    %1406 = vmatpush.xpose.msra.mxu0 0.0
    %1407 = vmatpush.xpose.msra.mxu0 0.0
    %1408 = vmatpush.xpose.msra.mxu0 0.0
    %1409 = vmatpush.xpose.msra.mxu0 0.0
    %1410 = vmatpush.xpose.msra.mxu0 0.0
    %1411 = vmatpush.xpose.msra.mxu0 %v1332
    %1412 = vmatpush.xpose.msra.mxu0 %v1329
    %1413 = vmatmul.f32.gmra.mxu0 %v1386
    %v1414 = vpop.f32.mrf.mxu0
    %v1415 = vadd.f32 0.0, %v1414
    %1416 = vmatmul.f32.gmra.mxu0 %v1389
    %v1417 = vpop.f32.mrf.mxu0
    %v1418 = vadd.f32 0.0, %v1417
    %1419 = vmatmul.f32.gmra.mxu0 %v1392
    %v1420 = vpop.f32.mrf.mxu0
    %v1421 = vadd.f32 0.0, %v1420
    %1422 = vmatmul.f32.gmra.mxu0 %v1395
    %v1423 = vpop.f32.mrf.mxu0
    %v1424 = vadd.f32 0.0, %v1423
    %1425 = vdwg.mxu0
    %1427 = vrot.lane.b32.xlu0 %v1382, 64
    %v1428 = vpop.permute.xlu0 %1427
    %v1430 = vsel %vm324, %v1381, %v1428
    %1432 = vrot.lane.b32.xlu0 %v1384, 64
    %v1433 = vpop.permute.xlu0 %1432
    %v1435 = vsel %vm324, %v1383, %v1433
    %v1436 = vperm.slane %v1430, 0
    %v1437 = vmul.f32 %v1436, %v1325
    %v1438 = vmul.f32 %v1436, %v1326
    %v1439 = vmul.f32 %v1437, 1.442695
    %v1440 = vpow.pop %v1439
    %v1441 = vmul.f32 %v1438, 1.442695
    %v1442 = vpow.pop %v1441
    %1443 = vst [vmem:[#allocation2] sm:$0xff] %v1440
    %1444 = vst [vmem:[#allocation2 + $0x8] sm:$0xff] %v1442
    %1446 = vset.pattern.permute.xlu0 0
    %1447 = vperm.xlu0 %1446, %v1415
    %v1448 = vpop.permute.xlu0 %1447
    %1451 = vset.pattern.permute.xlu0 0
    %1452 = vperm.xlu0 %1451, %v1418
    %v1453 = vpop.permute.xlu0 %1452
    %1455 = vset.pattern.permute.xlu0 8
    %1456 = vperm.xlu0 %1455, %v1415
    %v1457 = vpop.permute.xlu0 %1456
    %1459 = vset.pattern.permute.xlu0 8
    %1460 = vperm.xlu0 %1459, %v1418
    %v1461 = vpop.permute.xlu0 %1460
    %v1463 = vsel %vm324, %v1448, %v1457
    %v1464 = vsel %vm324, %v1453, %v1461
    %v1465 = vperm.slane %v1435, 0
    %v1466 = vmul.f32 %v1465, %v1463
    %v1467 = vmul.f32 %v1465, %v1464
    %1468 = vst [vmem:[#allocation3] sm:$0xff] %v1466
    %1469 = vst [vmem:[#allocation3 + $0x8] sm:$0xff] %v1467
    %1471 = vset.pattern.permute.xlu0 0
    %1472 = vperm.xlu0 %1471, %v1421
    %v1473 = vpop.permute.xlu0 %1472
    %1476 = vset.pattern.permute.xlu0 0
    %1477 = vperm.xlu0 %1476, %v1424
    %v1478 = vpop.permute.xlu0 %1477
    %1480 = vset.pattern.permute.xlu0 8
    %1481 = vperm.xlu0 %1480, %v1421
    %v1482 = vpop.permute.xlu0 %1481
    %1484 = vset.pattern.permute.xlu0 8
    %1485 = vperm.xlu0 %1484, %v1424
    %v1486 = vpop.permute.xlu0 %1485
    %v1488 = vsel %vm324, %v1473, %v1482
    %v1489 = vsel %vm324, %v1478, %v1486
    %1490 = vst [vmem:[#allocation4] sm:$0xff] %v1488
    %1491 = vst [vmem:[#allocation4 + $0x8] sm:$0xff] %v1489
    %v1492 = vperm.slane %v1430, 1
    %v1493 = vmul.f32 %v1492, %v1325
    %v1494 = vmul.f32 %v1492, %v1326
    %v1495 = vmul.f32 %v1493, 1.442695
    %v1496 = vpow.pop %v1495
    %v1497 = vmul.f32 %v1494, 1.442695
    %v1498 = vpow.pop %v1497
    %1499 = vst [vmem:[%s496] sm:$0xff] %v1496
    %1500 = vst [vmem:[%s496 + $0x8] sm:$0xff] %v1498
    %1501 = vset.pattern.permute.xlu0 1
    %1502 = vperm.xlu0 %1501, %v1415
    %v1503 = vpop.permute.xlu0 %1502
    %1505 = vset.pattern.permute.xlu0 1
    %1506 = vperm.xlu0 %1505, %v1418
    %v1507 = vpop.permute.xlu0 %1506
    %1509 = vset.pattern.permute.xlu0 9
    %1510 = vperm.xlu0 %1509, %v1415
    %v1511 = vpop.permute.xlu0 %1510
    %1513 = vset.pattern.permute.xlu0 9
    %1514 = vperm.xlu0 %1513, %v1418
    %v1515 = vpop.permute.xlu0 %1514
    %v1517 = vsel %vm324, %v1503, %v1511
    %v1518 = vsel %vm324, %v1507, %v1515
    %v1519 = vperm.slane %v1435, 1
    %v1520 = vmul.f32 %v1519, %v1517
    %v1521 = vmul.f32 %v1519, %v1518
    %1522 = vst [vmem:[%s520] sm:$0xff] %v1520
    %1523 = vst [vmem:[%s520 + $0x8] sm:$0xff] %v1521
    %1524 = vset.pattern.permute.xlu0 1
    %1525 = vperm.xlu0 %1524, %v1421
    %v1526 = vpop.permute.xlu0 %1525
    %1528 = vset.pattern.permute.xlu0 1
    %1529 = vperm.xlu0 %1528, %v1424
    %v1530 = vpop.permute.xlu0 %1529
    %1532 = vset.pattern.permute.xlu0 9
    %1533 = vperm.xlu0 %1532, %v1421
    %v1534 = vpop.permute.xlu0 %1533
    %1536 = vset.pattern.permute.xlu0 9
    %1537 = vperm.xlu0 %1536, %v1424
    %v1538 = vpop.permute.xlu0 %1537
    %v1540 = vsel %vm324, %v1526, %v1534
    %v1541 = vsel %vm324, %v1530, %v1538
    %1542 = vst [vmem:[%s541] sm:$0xff] %v1540
    %1543 = vst [vmem:[%s541 + $0x8] sm:$0xff] %v1541
    %v1544 = vperm.slane %v1430, 2
    %v1545 = vmul.f32 %v1544, %v1325
    %v1546 = vmul.f32 %v1544, %v1326
    %v1547 = vmul.f32 %v1545, 1.442695
    %v1548 = vpow.pop %v1547
    %v1549 = vmul.f32 %v1546, 1.442695
    %v1550 = vpow.pop %v1549
    %1551 = vst [vmem:[%s551] sm:$0xff] %v1548
    %1552 = vst [vmem:[%s551 + $0x8] sm:$0xff] %v1550
    %1553 = vset.pattern.permute.xlu0 2
    %1554 = vperm.xlu0 %1553, %v1415
    %v1555 = vpop.permute.xlu0 %1554
    %1557 = vset.pattern.permute.xlu0 2
    %1558 = vperm.xlu0 %1557, %v1418
    %v1559 = vpop.permute.xlu0 %1558
    %1561 = vset.pattern.permute.xlu0 10
    %1562 = vperm.xlu0 %1561, %v1415
    %v1563 = vpop.permute.xlu0 %1562
    %1565 = vset.pattern.permute.xlu0 10
    %1566 = vperm.xlu0 %1565, %v1418
    %v1567 = vpop.permute.xlu0 %1566
    %v1569 = vsel %vm324, %v1555, %v1563
    %v1570 = vsel %vm324, %v1559, %v1567
    %v1571 = vperm.slane %v1435, 2
    %v1572 = vmul.f32 %v1571, %v1569
    %v1573 = vmul.f32 %v1571, %v1570
    %1574 = vst [vmem:[%s575] sm:$0xff] %v1572
    %1575 = vst [vmem:[%s575 + $0x8] sm:$0xff] %v1573
    %1576 = vset.pattern.permute.xlu0 2
    %1577 = vperm.xlu0 %1576, %v1421
    %v1578 = vpop.permute.xlu0 %1577
    %1580 = vset.pattern.permute.xlu0 2
    %1581 = vperm.xlu0 %1580, %v1424
    %v1582 = vpop.permute.xlu0 %1581
    %1584 = vset.pattern.permute.xlu0 10
    %1585 = vperm.xlu0 %1584, %v1421
    %v1586 = vpop.permute.xlu0 %1585
    %1588 = vset.pattern.permute.xlu0 10
    %1589 = vperm.xlu0 %1588, %v1424
    %v1590 = vpop.permute.xlu0 %1589
    %v1592 = vsel %vm324, %v1578, %v1586
    %v1593 = vsel %vm324, %v1582, %v1590
    %1594 = vst [vmem:[%s596] sm:$0xff] %v1592
    %1595 = vst [vmem:[%s596 + $0x8] sm:$0xff] %v1593
    %v1596 = vperm.slane %v1430, 3
    %v1597 = vmul.f32 %v1596, %v1325
    %v1598 = vmul.f32 %v1596, %v1326
    %v1599 = vmul.f32 %v1597, 1.442695
    %v1600 = vpow.pop %v1599
    %v1601 = vmul.f32 %v1598, 1.442695
    %v1602 = vpow.pop %v1601
    %1603 = vst [vmem:[%s606] sm:$0xff] %v1600
    %1604 = vst [vmem:[%s606 + $0x8] sm:$0xff] %v1602
    %1605 = vset.pattern.permute.xlu0 3
    %1606 = vperm.xlu0 %1605, %v1415
    %v1607 = vpop.permute.xlu0 %1606
    %1609 = vset.pattern.permute.xlu0 3
    %1610 = vperm.xlu0 %1609, %v1418
    %v1611 = vpop.permute.xlu0 %1610
    %1613 = vset.pattern.permute.xlu0 11
    %1614 = vperm.xlu0 %1613, %v1415
    %v1615 = vpop.permute.xlu0 %1614
    %1617 = vset.pattern.permute.xlu0 11
    %1618 = vperm.xlu0 %1617, %v1418
    %v1619 = vpop.permute.xlu0 %1618
    %v1621 = vsel %vm324, %v1607, %v1615
    %v1622 = vsel %vm324, %v1611, %v1619
    %v1623 = vperm.slane %v1435, 3
    %v1624 = vmul.f32 %v1623, %v1621
    %v1625 = vmul.f32 %v1623, %v1622
    %1626 = vst [vmem:[%s630] sm:$0xff] %v1624
    %1627 = vst [vmem:[%s630 + $0x8] sm:$0xff] %v1625
    %1628 = vset.pattern.permute.xlu0 3
    %1629 = vperm.xlu0 %1628, %v1421
    %v1630 = vpop.permute.xlu0 %1629
    %1632 = vset.pattern.permute.xlu0 3
    %1633 = vperm.xlu0 %1632, %v1424
    %v1634 = vpop.permute.xlu0 %1633
    %1636 = vset.pattern.permute.xlu0 11
    %1637 = vperm.xlu0 %1636, %v1421
    %v1638 = vpop.permute.xlu0 %1637
    %1640 = vset.pattern.permute.xlu0 11
    %1641 = vperm.xlu0 %1640, %v1424
    %v1642 = vpop.permute.xlu0 %1641
    %v1644 = vsel %vm324, %v1630, %v1638
    %v1645 = vsel %vm324, %v1634, %v1642
    %1646 = vst [vmem:[%s651] sm:$0xff] %v1644
    %1647 = vst [vmem:[%s651 + $0x8] sm:$0xff] %v1645
    %v1648 = vperm.slane %v1430, 4
    %v1649 = vmul.f32 %v1648, %v1325
    %v1650 = vmul.f32 %v1648, %v1326
    %v1651 = vmul.f32 %v1649, 1.442695
    %v1652 = vpow.pop %v1651
    %v1653 = vmul.f32 %v1650, 1.442695
    %v1654 = vpow.pop %v1653
    %1655 = vst [vmem:[%s661] sm:$0xff] %v1652
    %1656 = vst [vmem:[%s661 + $0x8] sm:$0xff] %v1654
    %1657 = vset.pattern.permute.xlu0 4
    %1658 = vperm.xlu0 %1657, %v1415
    %v1659 = vpop.permute.xlu0 %1658
    %1661 = vset.pattern.permute.xlu0 4
    %1662 = vperm.xlu0 %1661, %v1418
    %v1663 = vpop.permute.xlu0 %1662
    %1665 = vset.pattern.permute.xlu0 12
    %1666 = vperm.xlu0 %1665, %v1415
    %v1667 = vpop.permute.xlu0 %1666
    %1669 = vset.pattern.permute.xlu0 12
    %1670 = vperm.xlu0 %1669, %v1418
    %v1671 = vpop.permute.xlu0 %1670
    %v1673 = vsel %vm324, %v1659, %v1667
    %v1674 = vsel %vm324, %v1663, %v1671
    %v1675 = vperm.slane %v1435, 4
    %v1676 = vmul.f32 %v1675, %v1673
    %v1677 = vmul.f32 %v1675, %v1674
    %1678 = vst [vmem:[%s685] sm:$0xff] %v1676
    %1679 = vst [vmem:[%s685 + $0x8] sm:$0xff] %v1677
    %1680 = vset.pattern.permute.xlu0 4
    %1681 = vperm.xlu0 %1680, %v1421
    %v1682 = vpop.permute.xlu0 %1681
    %1684 = vset.pattern.permute.xlu0 4
    %1685 = vperm.xlu0 %1684, %v1424
    %v1686 = vpop.permute.xlu0 %1685
    %1688 = vset.pattern.permute.xlu0 12
    %1689 = vperm.xlu0 %1688, %v1421
    %v1690 = vpop.permute.xlu0 %1689
    %1692 = vset.pattern.permute.xlu0 12
    %1693 = vperm.xlu0 %1692, %v1424
    %v1694 = vpop.permute.xlu0 %1693
    %v1696 = vsel %vm324, %v1682, %v1690
    %v1697 = vsel %vm324, %v1686, %v1694
    %1698 = vst [vmem:[%s706] sm:$0xff] %v1696
    %1699 = vst [vmem:[%s706 + $0x8] sm:$0xff] %v1697
    %v1700 = vperm.slane %v1430, 5
    %v1701 = vmul.f32 %v1700, %v1325
    %v1702 = vmul.f32 %v1700, %v1326
    %v1703 = vmul.f32 %v1701, 1.442695
    %v1704 = vpow.pop %v1703
    %v1705 = vmul.f32 %v1702, 1.442695
    %v1706 = vpow.pop %v1705
    %1707 = vst [vmem:[%s716] sm:$0xff] %v1704
    %1708 = vst [vmem:[%s716 + $0x8] sm:$0xff] %v1706
    %1709 = vset.pattern.permute.xlu0 5
    %1710 = vperm.xlu0 %1709, %v1415
    %v1711 = vpop.permute.xlu0 %1710
    %1713 = vset.pattern.permute.xlu0 5
    %1714 = vperm.xlu0 %1713, %v1418
    %v1715 = vpop.permute.xlu0 %1714
    %1717 = vset.pattern.permute.xlu0 13
    %1718 = vperm.xlu0 %1717, %v1415
    %v1719 = vpop.permute.xlu0 %1718
    %1721 = vset.pattern.permute.xlu0 13
    %1722 = vperm.xlu0 %1721, %v1418
    %v1723 = vpop.permute.xlu0 %1722
    %v1725 = vsel %vm324, %v1711, %v1719
    %v1726 = vsel %vm324, %v1715, %v1723
    %v1727 = vperm.slane %v1435, 5
    %v1728 = vmul.f32 %v1727, %v1725
    %v1729 = vmul.f32 %v1727, %v1726
    %1730 = vst [vmem:[%s740] sm:$0xff] %v1728
    %1731 = vst [vmem:[%s740 + $0x8] sm:$0xff] %v1729
    %1732 = vset.pattern.permute.xlu0 5
    %1733 = vperm.xlu0 %1732, %v1421
    %v1734 = vpop.permute.xlu0 %1733
    %1736 = vset.pattern.permute.xlu0 5
    %1737 = vperm.xlu0 %1736, %v1424
    %v1738 = vpop.permute.xlu0 %1737
    %1740 = vset.pattern.permute.xlu0 13
    %1741 = vperm.xlu0 %1740, %v1421
    %v1742 = vpop.permute.xlu0 %1741
    %1744 = vset.pattern.permute.xlu0 13
    %1745 = vperm.xlu0 %1744, %v1424
    %v1746 = vpop.permute.xlu0 %1745
    %v1748 = vsel %vm324, %v1734, %v1742
    %v1749 = vsel %vm324, %v1738, %v1746
    %1750 = vst [vmem:[%s761] sm:$0xff] %v1748
    %1751 = vst [vmem:[%s761 + $0x8] sm:$0xff] %v1749
    %v1752 = vperm.slane %v1430, 6
    %v1753 = vmul.f32 %v1752, %v1325
    %v1754 = vmul.f32 %v1752, %v1326
    %v1755 = vmul.f32 %v1753, 1.442695
    %v1756 = vpow.pop %v1755
    %v1757 = vmul.f32 %v1754, 1.442695
    %v1758 = vpow.pop %v1757
    %1759 = vst [vmem:[%s771] sm:$0xff] %v1756
    %1760 = vst [vmem:[%s771 + $0x8] sm:$0xff] %v1758
    %1761 = vset.pattern.permute.xlu0 6
    %1762 = vperm.xlu0 %1761, %v1415
    %v1763 = vpop.permute.xlu0 %1762
    %1765 = vset.pattern.permute.xlu0 6
    %1766 = vperm.xlu0 %1765, %v1418
    %v1767 = vpop.permute.xlu0 %1766
    %1769 = vset.pattern.permute.xlu0 14
    %1770 = vperm.xlu0 %1769, %v1415
    %v1771 = vpop.permute.xlu0 %1770
    %1773 = vset.pattern.permute.xlu0 14
    %1774 = vperm.xlu0 %1773, %v1418
    %v1775 = vpop.permute.xlu0 %1774
    %v1777 = vsel %vm324, %v1763, %v1771
    %v1778 = vsel %vm324, %v1767, %v1775
    %v1779 = vperm.slane %v1435, 6
    %v1780 = vmul.f32 %v1779, %v1777
    %v1781 = vmul.f32 %v1779, %v1778
    %1782 = vst [vmem:[%s795] sm:$0xff] %v1780
    %1783 = vst [vmem:[%s795 + $0x8] sm:$0xff] %v1781
    %1784 = vset.pattern.permute.xlu0 6
    %1785 = vperm.xlu0 %1784, %v1421
    %v1786 = vpop.permute.xlu0 %1785
    %1788 = vset.pattern.permute.xlu0 6
    %1789 = vperm.xlu0 %1788, %v1424
    %v1790 = vpop.permute.xlu0 %1789
    %1792 = vset.pattern.permute.xlu0 14
    %1793 = vperm.xlu0 %1792, %v1421
    %v1794 = vpop.permute.xlu0 %1793
    %1796 = vset.pattern.permute.xlu0 14
    %1797 = vperm.xlu0 %1796, %v1424
    %v1798 = vpop.permute.xlu0 %1797
    %v1800 = vsel %vm324, %v1786, %v1794
    %v1801 = vsel %vm324, %v1790, %v1798
    %1802 = vst [vmem:[%s816] sm:$0xff] %v1800
    %1803 = vst [vmem:[%s816 + $0x8] sm:$0xff] %v1801
    %v1804 = vperm.slane %v1430, 7
    %v1805 = vmul.f32 %v1804, %v1325
    %v1806 = vmul.f32 %v1804, %v1326
    %v1807 = vmul.f32 %v1805, 1.442695
    %v1808 = vpow.pop %v1807
    %v1809 = vmul.f32 %v1806, 1.442695
    %v1810 = vpow.pop %v1809
    %1811 = vst [vmem:[%s826] sm:$0xff] %v1808
    %1812 = vst [vmem:[%s826 + $0x8] sm:$0xff] %v1810
    %1813 = vset.pattern.permute.xlu0 7
    %1814 = vperm.xlu0 %1813, %v1415
    %v1815 = vpop.permute.xlu0 %1814
    %1817 = vset.pattern.permute.xlu0 7
    %1818 = vperm.xlu0 %1817, %v1418
    %v1819 = vpop.permute.xlu0 %1818
    %1821 = vset.pattern.permute.xlu0 15
    %1822 = vperm.xlu0 %1821, %v1415
    %v1823 = vpop.permute.xlu0 %1822
    %1825 = vset.pattern.permute.xlu0 15
    %1826 = vperm.xlu0 %1825, %v1418
    %v1827 = vpop.permute.xlu0 %1826
    %v1829 = vsel %vm324, %v1815, %v1823
    %v1830 = vsel %vm324, %v1819, %v1827
    %v1831 = vperm.slane %v1435, 7
    %v1832 = vmul.f32 %v1831, %v1829
    %v1833 = vmul.f32 %v1831, %v1830
    %1834 = vst [vmem:[%s850] sm:$0xff] %v1832
    %1835 = vst [vmem:[%s850 + $0x8] sm:$0xff] %v1833
    %1836 = vset.pattern.permute.xlu0 7
    %1837 = vperm.xlu0 %1836, %v1421
    %v1838 = vpop.permute.xlu0 %1837
    %1840 = vset.pattern.permute.xlu0 7
    %1841 = vperm.xlu0 %1840, %v1424
    %v1842 = vpop.permute.xlu0 %1841
    %1844 = vset.pattern.permute.xlu0 15
    %1845 = vperm.xlu0 %1844, %v1421
    %v1846 = vpop.permute.xlu0 %1845
    %1848 = vset.pattern.permute.xlu0 15
    %1849 = vperm.xlu0 %1848, %v1424
    %v1850 = vpop.permute.xlu0 %1849
    %v1852 = vsel %vm324, %v1838, %v1846
    %v1853 = vsel %vm324, %v1842, %v1850
    %1854 = vst [vmem:[%s871] sm:$0xff] %v1852
    %1855 = vst [vmem:[%s871 + $0x8] sm:$0xff] %v1853
    %v1856 = vld [vmem:[#allocation2] sm:$0xff]
    %v1857 = vld [vmem:[#allocation2 + $0x8] sm:$0xff]
    %v1858 = vmul.f32 %v1856, 0.0
    %v1859 = vmul.f32 %v1857, 0.0
    %v1860 = vld [vmem:[#allocation3] sm:$0xff]
    %v1861 = vld [vmem:[#allocation3 + $0x8] sm:$0xff]
    %v1862 = vadd.f32 %v1858, %v1860
    %v1863 = vadd.f32 %v1859, %v1861
    %v1864 = vld [vmem:[#allocation4] sm:$0xff]
    %v1865 = vld [vmem:[#allocation4 + $0x8] sm:$0xff]
    %v1866 = vmul.f32 %v1862, %v1864
    %v1867 = vmul.f32 %v1863, %v1865
    %v1868 = vadd.f32 %v1866, %v1867
    %v1869 = vrot.slane %v1868, 4
    %v1870 = vadd.f32 %v1868, %v1869
    %v1871 = vrot.slane %v1870, 2
    %v1872 = vadd.f32 %v1870, %v1871
    %v1873 = vrot.slane %v1872, 1
    %v1874 = vadd.f32 %v1872, %v1873
    %1875 = vst [vmem:[#allocation5] sm:$0x1] %v1874
    %v1876 = vld [vmem:[%s496] sm:$0xff]
    %v1877 = vld [vmem:[%s496 + $0x8] sm:$0xff]
    %v1878 = vmul.f32 %v1876, %v1862
    %v1879 = vmul.f32 %v1877, %v1863
    %v1880 = vld [vmem:[%s520] sm:$0xff]
    %v1881 = vld [vmem:[%s520 + $0x8] sm:$0xff]
    %v1882 = vadd.f32 %v1878, %v1880
    %v1883 = vadd.f32 %v1879, %v1881
    %v1884 = vld [vmem:[%s541] sm:$0xff]
    %v1885 = vld [vmem:[%s541 + $0x8] sm:$0xff]
    %v1886 = vmul.f32 %v1882, %v1884
    %v1887 = vmul.f32 %v1883, %v1885
    %v1888 = vadd.f32 %v1886, %v1887
    %v1889 = vrot.slane %v1888, 4
    %v1890 = vadd.f32 %v1888, %v1889
    %v1891 = vrot.slane %v1890, 2
    %v1892 = vadd.f32 %v1890, %v1891
    %v1893 = vrot.slane %v1892, 1
    %v1894 = vadd.f32 %v1892, %v1893
    %1895 = vst [vmem:[#allocation5 + $0x1] sm:$0x1] %v1894
    %v1896 = vld [vmem:[%s551] sm:$0xff]
    %v1897 = vld [vmem:[%s551 + $0x8] sm:$0xff]
    %v1898 = vmul.f32 %v1896, %v1882
    %v1899 = vmul.f32 %v1897, %v1883
    %v1900 = vld [vmem:[%s575] sm:$0xff]
    %v1901 = vld [vmem:[%s575 + $0x8] sm:$0xff]
    %v1902 = vadd.f32 %v1898, %v1900
    %v1903 = vadd.f32 %v1899, %v1901
    %v1904 = vld [vmem:[%s596] sm:$0xff]
    %v1905 = vld [vmem:[%s596 + $0x8] sm:$0xff]
    %v1906 = vmul.f32 %v1902, %v1904
    %v1907 = vmul.f32 %v1903, %v1905
    %v1908 = vadd.f32 %v1906, %v1907
    %v1909 = vrot.slane %v1908, 4
    %v1910 = vadd.f32 %v1908, %v1909
    %v1911 = vrot.slane %v1910, 2
    %v1912 = vadd.f32 %v1910, %v1911
    %v1913 = vrot.slane %v1912, 1
    %v1914 = vadd.f32 %v1912, %v1913
    %1915 = vst [vmem:[#allocation5 + $0x2] sm:$0x1] %v1914
    %v1916 = vld [vmem:[%s606] sm:$0xff]
    %v1917 = vld [vmem:[%s606 + $0x8] sm:$0xff]
    %v1918 = vmul.f32 %v1916, %v1902
    %v1919 = vmul.f32 %v1917, %v1903
    %v1920 = vld [vmem:[%s630] sm:$0xff]
    %v1921 = vld [vmem:[%s630 + $0x8] sm:$0xff]
    %v1922 = vadd.f32 %v1918, %v1920
    %v1923 = vadd.f32 %v1919, %v1921
    %v1924 = vld [vmem:[%s651] sm:$0xff]
    %v1925 = vld [vmem:[%s651 + $0x8] sm:$0xff]
    %v1926 = vmul.f32 %v1922, %v1924
    %v1927 = vmul.f32 %v1923, %v1925
    %v1928 = vadd.f32 %v1926, %v1927
    %v1929 = vrot.slane %v1928, 4
    %v1930 = vadd.f32 %v1928, %v1929
    %v1931 = vrot.slane %v1930, 2
    %v1932 = vadd.f32 %v1930, %v1931
    %v1933 = vrot.slane %v1932, 1
    %v1934 = vadd.f32 %v1932, %v1933
    %1935 = vst [vmem:[#allocation5 + $0x3] sm:$0x1] %v1934
    %v1936 = vld [vmem:[%s661] sm:$0xff]
    %v1937 = vld [vmem:[%s661 + $0x8] sm:$0xff]
    %v1938 = vmul.f32 %v1936, %v1922
    %v1939 = vmul.f32 %v1937, %v1923
    %v1940 = vld [vmem:[%s685] sm:$0xff]
    %v1941 = vld [vmem:[%s685 + $0x8] sm:$0xff]
    %v1942 = vadd.f32 %v1938, %v1940
    %v1943 = vadd.f32 %v1939, %v1941
    %v1944 = vld [vmem:[%s706] sm:$0xff]
    %v1945 = vld [vmem:[%s706 + $0x8] sm:$0xff]
    %v1946 = vmul.f32 %v1942, %v1944
    %v1947 = vmul.f32 %v1943, %v1945
    %v1948 = vadd.f32 %v1946, %v1947
    %v1949 = vrot.slane %v1948, 4
    %v1950 = vadd.f32 %v1948, %v1949
    %v1951 = vrot.slane %v1950, 2
    %v1952 = vadd.f32 %v1950, %v1951
    %v1953 = vrot.slane %v1952, 1
    %v1954 = vadd.f32 %v1952, %v1953
    %1955 = vst [vmem:[#allocation5 + $0x4] sm:$0x1] %v1954
    %v1956 = vld [vmem:[%s716] sm:$0xff]
    %v1957 = vld [vmem:[%s716 + $0x8] sm:$0xff]
    %v1958 = vmul.f32 %v1956, %v1942
    %v1959 = vmul.f32 %v1957, %v1943
    %v1960 = vld [vmem:[%s740] sm:$0xff]
    %v1961 = vld [vmem:[%s740 + $0x8] sm:$0xff]
    %v1962 = vadd.f32 %v1958, %v1960
    %v1963 = vadd.f32 %v1959, %v1961
    %v1964 = vld [vmem:[%s761] sm:$0xff]
    %v1965 = vld [vmem:[%s761 + $0x8] sm:$0xff]
    %v1966 = vmul.f32 %v1962, %v1964
    %v1967 = vmul.f32 %v1963, %v1965
    %v1968 = vadd.f32 %v1966, %v1967
    %v1969 = vrot.slane %v1968, 4
    %v1970 = vadd.f32 %v1968, %v1969
    %v1971 = vrot.slane %v1970, 2
    %v1972 = vadd.f32 %v1970, %v1971
    %v1973 = vrot.slane %v1972, 1
    %v1974 = vadd.f32 %v1972, %v1973
    %1975 = vst [vmem:[#allocation5 + $0x5] sm:$0x1] %v1974
    %v1976 = vld [vmem:[%s771] sm:$0xff]
    %v1977 = vld [vmem:[%s771 + $0x8] sm:$0xff]
    %v1978 = vmul.f32 %v1976, %v1962
    %v1979 = vmul.f32 %v1977, %v1963
    %v1980 = vld [vmem:[%s795] sm:$0xff]
    %v1981 = vld [vmem:[%s795 + $0x8] sm:$0xff]
    %v1982 = vadd.f32 %v1978, %v1980
    %v1983 = vadd.f32 %v1979, %v1981
    %v1984 = vld [vmem:[%s816] sm:$0xff]
    %v1985 = vld [vmem:[%s816 + $0x8] sm:$0xff]
    %v1986 = vmul.f32 %v1982, %v1984
    %v1987 = vmul.f32 %v1983, %v1985
    %v1988 = vadd.f32 %v1986, %v1987
    %v1989 = vrot.slane %v1988, 4
    %v1990 = vadd.f32 %v1988, %v1989
    %v1991 = vrot.slane %v1990, 2
    %v1992 = vadd.f32 %v1990, %v1991
    %v1993 = vrot.slane %v1992, 1
    %v1994 = vadd.f32 %v1992, %v1993
    %1995 = vst [vmem:[#allocation5 + $0x6] sm:$0x1] %v1994
    %v1996 = vld [vmem:[%s826] sm:$0xff]
    %v1997 = vld [vmem:[%s826 + $0x8] sm:$0xff]
    %v1998 = vmul.f32 %v1996, %v1982
    %v1999 = vmul.f32 %v1997, %v1983
    %v2000 = vld [vmem:[%s850] sm:$0xff]
    %v2001 = vld [vmem:[%s850 + $0x8] sm:$0xff]
    %v2002 = vadd.f32 %v1998, %v2000
    %v2003 = vadd.f32 %v1999, %v2001
    %v2004 = vld [vmem:[%s871] sm:$0xff]
    %v2005 = vld [vmem:[%s871 + $0x8] sm:$0xff]
    %v2006 = vmul.f32 %v2002, %v2004
    %v2007 = vmul.f32 %v2003, %v2005
    %v2008 = vadd.f32 %v2006, %v2007
    %v2009 = vrot.slane %v2008, 4
    %v2010 = vadd.f32 %v2008, %v2009
    %v2011 = vrot.slane %v2010, 2
    %v2012 = vadd.f32 %v2010, %v2011
    %v2013 = vrot.slane %v2012, 1
    %v2014 = vadd.f32 %v2012, %v2013
    %2015 = vst [vmem:[#allocation5 + $0x7] sm:$0x1] %v2014
    %v2016 = vld [vmem:[#allocation5] sm:$0xff]
    %2018 = vrot.lane.b32.xlu0 %v2016, 64
    %v2019 = vpop.permute.xlu0 %2018
    %v2021 = vperm.slane %v1098, 0
    %v2022 = vmul.f32 %v1309, %v2021
    %v2023 = vmul.f32 %v1310, %v2021
    %v2024 = vadd.f32 %v2016, %v2022
    %v2025 = vadd.f32 %v2019, %v2023
    %v2026 = vsub.f32 0.0, %v1227
    %v2027 = vsub.f32 0.0, %v1230
    %v2028 = vmul.f32 %v2026, 1.442695
    %v2029 = vpow.pop %v2028
    %v2030 = vmul.f32 %v2027, 1.442695
    %v2031 = vpow.pop %v2030
    %v2032 = vadd.f32 %v2029, 1.0
    %v2033 = vadd.f32 %v2031, 1.0
    %v2034 = vrcp.pop %v2032
    %v2035 = vmul.f32 %v2032, %v2034
    %v2036 = vsub.f32 1.0, %v2035
    %v2037 = vmul.f32 %v2034, %v2036
    %v2038 = vadd.f32 %v2034, %v2037
    %vm2039 = vweird.f32 %v2032
    %vm2040 = vweird.f32 %v2034
    %vm2041 = vmor %vm2039, %vm2040
    %v2042 = vsel %vm2041, %v2034, %v2038
    %v2043 = vand.u32 2147483647, %v2032
    %vm2044 = vcmp.eq.f32.partialorder %v2043, 8.507059e+37
    %v2045 = vand.u32 %v2032, 2147483648
    %v2046 = vor.u32 1.1754944e-38, %v2045
    %v2047 = vsel %vm2044, %v2046, %v2042
    %v2048 = vmul.f32 1.0, %v2047
    %v2049 = vrcp.pop %v2033
    %v2050 = vmul.f32 %v2033, %v2049
    %v2051 = vsub.f32 1.0, %v2050
    %v2052 = vmul.f32 %v2049, %v2051
    %v2053 = vadd.f32 %v2049, %v2052
    %vm2054 = vweird.f32 %v2033
    %vm2055 = vweird.f32 %v2049
    %vm2056 = vmor %vm2054, %vm2055
    %v2057 = vsel %vm2056, %v2049, %v2053
    %v2058 = vand.u32 2147483647, %v2033
    %vm2059 = vcmp.eq.f32.partialorder %v2058, 8.507059e+37
    %v2060 = vand.u32 %v2033, 2147483648
    %v2061 = vor.u32 1.1754944e-38, %v2060
    %v2062 = vsel %vm2059, %v2061, %v2057
    %v2063 = vmul.f32 1.0, %v2062
    %v2064 = vmul.f32 %v1227, %v2048
    %v2065 = vmul.f32 %v1230, %v2063
    %2068 = vrot.lane.b32.xlu0 %v2064, 64
    %v2069 = vpop.permute.xlu0 %2068
    %2070 = vrot.lane.b32.xlu0 %v2065, 64
    %v2071 = vpop.permute.xlu0 %2070
    %v2074 = vmul.f32 %v2024, %v2069
    %v2075 = vmul.f32 %v2025, %v2071
    %2084 = vrot.lane.b32.xlu0 %v1312, 64
    %v2085 = vpop.permute.xlu0 %2084
    %2086 = vrot.lane.b32.xlu0 %v1313, 64
    %v2087 = vpop.permute.xlu0 %2086
    %2088 = vrot.lane.b32.xlu0 %v1314, 64
    %v2089 = vpop.permute.xlu0 %2088
    %2090 = vrot.lane.b32.xlu0 %v1315, 64
    %v2091 = vpop.permute.xlu0 %2090
    %2092 = vrot.lane.b32.xlu0 %v1316, 64
    %v2093 = vpop.permute.xlu0 %2092
    %2094 = vrot.lane.b32.xlu0 %v1317, 64
    %v2095 = vpop.permute.xlu0 %2094
    %2096 = vrot.lane.b32.xlu0 %v1318, 64
    %v2097 = vpop.permute.xlu0 %2096
    %2098 = vrot.lane.b32.xlu0 %v1319, 64
    %v2099 = vpop.permute.xlu0 %2098
    %v2109 = vsel %vm324, %v2074, 0
    %v2112 = vsel %vm324, %v2075, 0
    %2114 = vmatpush.msra.mxu0 0.0
    %2115 = vmatpush.msra.mxu0 0.0
    %2116 = vmatpush.msra.mxu0 0.0
    %2117 = vmatpush.msra.mxu0 0.0
    %2118 = vmatpush.msra.mxu0 0.0
    %2119 = vmatpush.msra.mxu0 0.0
    %2120 = vmatpush.msra.mxu0 0.0
    %2121 = vmatpush.msra.mxu0 0.0
    %2122 = vmatpush.msra.mxu0 %v2099
    %2123 = vmatpush.msra.mxu0 %v2097
    %2124 = vmatpush.msra.mxu0 %v2095
    %2125 = vmatpush.msra.mxu0 %v2093
    %2126 = vmatpush.msra.mxu0 %v2091
    %2127 = vmatpush.msra.mxu0 %v2089
    %2128 = vmatpush.msra.mxu0 %v2087
    %2129 = vmatpush.msra.mxu0 %v2085
    %2130 = vmatmul.f32.gmra.mxu0 %v2109
    %v2131 = vpop.f32.mrf.mxu0
    %v2132 = vadd.f32 %v1156, %v2131
    %2133 = vmatmul.f32.gmra.mxu0 %v2112
    %v2134 = vpop.f32.mrf.mxu0
    %v2135 = vadd.f32 %v1159, %v2134
    %2136 = vdwg.mxu0
    %v2137 = vld [vmem:[%s2] sm:$0x1]
    %v2138 = vmul.f32 %v2132, %v2132
    %v2139 = vmul.f32 %v2135, %v2135
    %v2140 = vsel %vm151, %v2138, 0.0
    %2141 = vadd.xlane.f32.xlu0 %v2140
    %v2142 = vpop.xlane.xlu0 %2141
    %v2143 = vsel %vm151, %v2139, 0.0
    %2144 = vadd.xlane.f32.xlu0 %v2143
    %v2145 = vpop.xlane.xlu0 %2144
    %v2146 = vmul.f32 %v2142, %v164
    %v2147 = vmul.f32 %v2145, %v164
    %v2148 = vadd.f32 %v2146, 1e-05
    %v2149 = vadd.f32 %v2147, 1e-05
    %v2150 = vrsqrt.pop %v2148
    %v2151 = vmul.f32 %v2150, %v2148
    %v2152 = vmul.f32 %v2151, %v2150
    %v2153 = vmul.f32 0.5, %v2152
    %v2154 = vsub.f32 1.5, %v2153
    %v2155 = vmul.f32 %v2150, %v2154
    %vm2156 = vweird.f32 %v2148
    %vm2157 = vweird.f32 %v2150
    %vm2158 = vmor %vm2156, %vm2157
    %v2159 = vsel %vm2158, %v2150, %v2155
    %v2160 = vrsqrt.pop %v2149
    %v2161 = vmul.f32 %v2160, %v2149
    %v2162 = vmul.f32 %v2161, %v2160
    %v2163 = vmul.f32 0.5, %v2162
    %v2164 = vsub.f32 1.5, %v2163
    %v2165 = vmul.f32 %v2160, %v2164
    %vm2166 = vweird.f32 %v2149
    %vm2167 = vweird.f32 %v2160
    %vm2168 = vmor %vm2166, %vm2167
    %v2169 = vsel %vm2168, %v2160, %v2165
    %v2170 = vmul.f32 %v2132, %v2159
    %v2171 = vmul.f32 %v2135, %v2169
    %v2172 = vperm.slane %v2137, 0
    %2174 = vrot.lane.b32.xlu0 %v2172, 64
    %v2175 = vpop.permute.xlu0 %2174
    %v2177 = vmul.f32 %v2170, %v2175
    %v2178 = vmul.f32 %v2171, %v2175
    %v2180 = vsel %vm151, %v2177, 0
    %v2183 = vsel %vm151, %v2178, 0
    %v2186 = vsel %vm151, %v56, 0
    %v2189 = vsel %vm151, %v57, 0
    %v2192 = vsel %vm151, %v58, 0
    %v2195 = vsel %vm151, %v59, 0
    %v2198 = vsel %vm151, %v60, 0
    %v2201 = vsel %vm151, %v61, 0
    %v2204 = vsel %vm151, %v62, 0
    %v2207 = vsel %vm151, %v63, 0
    %v2210 = vsel %vm151, %v64, 0
    %v2213 = vsel %vm151, %v65, 0
    %v2216 = vsel %vm151, %v66, 0
    %v2219 = vsel %vm151, %v67, 0
    %v2222 = vsel %vm151, %v68, 0
    %v2225 = vsel %vm151, %v69, 0
    %v2228 = vsel %vm151, %v70, 0
    %v2231 = vsel %vm151, %v71, 0
    %2233 = vmatpush.xpose.msra.mxu0 %v2231
    %2234 = vmatpush.xpose.msra.mxu0 %v2228
    %2235 = vmatpush.xpose.msra.mxu0 %v2225
    %2236 = vmatpush.xpose.msra.mxu0 %v2222
    %2237 = vmatpush.xpose.msra.mxu0 %v2219
    %2238 = vmatpush.xpose.msra.mxu0 %v2216
    %2239 = vmatpush.xpose.msra.mxu0 %v2213
    %2240 = vmatpush.xpose.msra.mxu0 %v2210
    %2241 = vmatpush.xpose.msra.mxu0 %v2207
    %2242 = vmatpush.xpose.msra.mxu0 %v2204
    %2243 = vmatpush.xpose.msra.mxu0 %v2201
    %2244 = vmatpush.xpose.msra.mxu0 %v2198
    %2245 = vmatpush.xpose.msra.mxu0 %v2195
    %2246 = vmatpush.xpose.msra.mxu0 %v2192
    %2247 = vmatpush.xpose.msra.mxu0 %v2189
    %2248 = vmatpush.xpose.msra.mxu0 %v2186
    %2249 = vmatmul.f32.gmra.mxu0 %v2180
    %v2250 = vpop.f32.mrf.mxu0
    %v2251 = vadd.f32 0.0, %v2250
    %2252 = vmatmul.f32.gmra.mxu0 %v2183
    %v2253 = vpop.f32.mrf.mxu0
    %v2254 = vadd.f32 0.0, %v2253
    %2255 = vdwg.mxu0
    %2256 = vst [vmem:[#allocation11] sm:$0xff] %v2251
    %2257 = vst [vmem:[#allocation11 + $0x8] sm:$0xff] %v2254
    // Predicated region
    $region34: #{forward.1} parent=1 // pred_check
      _
    $region35: #{forward.1} parent=1 // pred_check_branch
      %2259 = sbr.rel (0) target = $region37
    $region36: #{forward.1} parent=1 // pred_region
      %2261 = vsyncadd [#allocation8], 0
      %s2262 = sshll.u32 [#allocation11], 4
      %s2263 = int_to_ptr.vmem [resolvable:$true] %s2262
      %s2264 = sshll.u32 %s6, 4
      %s2265 = int_to_ptr.hbm [resolvable:$true] %s2264
      %2270 = dma.vmem_to_hbm [thread:$0]  %s2263, 256, %s2265, [#allocation8], 128, 128, 8
    $region37: #{forward.1} parent=1 // pred_fallthru
      _
    // Predicated region
    $region38: #{forward.1} parent=1 // pred_check
      _
    $region39: #{forward.1} parent=1 // pred_check_branch
      %2272 = sbr.rel (0) target = $region41
    $region40: #{forward.1} parent=1 // pred_region
      %2274 = dma.done [#allocation8], 256
    $region41: #{forward.1} parent=1 // pred_fallthru
      _
    %2275 = vsyncpa [#allocation7], 1
    %2276 = vsyncpa [#allocation10], 1
    %2277 = vsyncpa [#allocation8], 1

</llo_original>
